<compile_context>
chip_gen: v6e
topology: v6e:2x2x1
jax: 0.10.0
libtpu: 0.0.40
codegen_flags: <defaults>
</compile_context>

<pallas_src>
import functools

import jax
import jax.numpy as jnp
from jax.experimental import pallas as pl
from jax.experimental.pallas import tpu as pltpu

BN_EPS = 1e-5
LANE = 128                        # channel dims padded to a multiple of this
TM = 512                          # row padding granularity for matmul stages
VMEM_LIMIT = 48 * 1024 * 1024     # <= v7x physical (64 MiB), fine on v5e/v6e
MM_BUDGET = 20 * 1024 * 1024      # per-step working-set budget, matmul kernel
CONV_ROW_BUDGET = 6 * 1024 * 1024 # per-step working-set budget, 3x3 conv kernel


def _round_up(x, m):
    return (x + m - 1) // m * m


def _pick_mm_tiles(mp, kp, np_):
    """Largest (tm, tn) whose double-buffered working set fits the budget."""
    for tm in (512, 256, 128):
        if mp % tm:
            continue
        for tn in (512, 256, 128):
            if np_ % tn:
                continue
            need = (2 * 2 * (tm * kp + kp * tn + tm * tn)    # dbl-buf bf16 I/O
                    + 4 * (tm * tn + 8 * tn))                # f32 acc + stats
            if need <= MM_BUDGET:
                return tm, tn
    return 128, 128


def _pick_co_tile(cop):
    for t in (512, 256, 128):
        if cop % t == 0:
            return t
    return cop


def _pick_row_tile(h, w, c3, tco):
    """Largest divisor of h whose halo'd block fits the per-step budget."""
    per_row = w * (2 * 2 * c3 + tco * (2 * 2 + 4))
    cap = max(1, min(h, CONV_ROW_BUDGET // max(per_row, 1)))
    for tr in range(int(cap), 0, -1):
        if h % tr == 0:
            return tr
    return 1


# ----------------------------------------------------------------------------
# Kernel A: single-shot matmul (1x1 conv) + optional fused input
#           scale/shift/ReLU + per-M-tile BatchNorm partial stats.
# grid = (M tiles, N tiles); the whole K dim stays resident (no K axis).
# ----------------------------------------------------------------------------
def _make_mm_kernel(fuse_in_bn, mask_rows, m_real, tm):
    def kernel(*refs):
        if fuse_in_bn:
            x_ref, w_ref, s_ref, b_ref, out_ref, part_ref = refs
        else:
            x_ref, w_ref, out_ref, part_ref = refs

        x = x_ref[...]
        if fuse_in_bn:
            # BatchNorm + ReLU of the previous stage, fused into this matmul's
            # input transform (saves an HBM round trip of the activation).
            xf = x.astype(jnp.float32) * s_ref[...] + b_ref[...]
            xf = jnp.maximum(xf, 0.0)
            if mask_rows:
                row = (jax.lax.broadcasted_iota(jnp.int32, xf.shape, 0)
                       + pl.program_id(0) * tm)
                xf = jnp.where(row < m_real, xf, 0.0)
            x = xf.astype(jnp.bfloat16)

        acc = jnp.dot(x, w_ref[...], preferred_element_type=jnp.float32)
        out_ref[...] = acc.astype(out_ref.dtype)

        tn = acc.shape[1]
        csum = jnp.sum(acc, axis=0, keepdims=True)          # (1, tn)
        csq = jnp.sum(acc * acc, axis=0, keepdims=True)     # (1, tn)
        rows = jax.lax.broadcasted_iota(jnp.int32, (8, tn), 0)
        part_ref[...] = jnp.where(
            rows == 0, jnp.broadcast_to(csum, (8, tn)),
            jnp.where(rows == 1, jnp.broadcast_to(csq, (8, tn)), 0.0))

    return kernel


def matmul_bn_stats(x, w, *, m_real, in_scale=None, in_shift=None,
                    out_dtype=jnp.bfloat16):
    """out = x' @ w (bf16 MXU, f32 accumulation) + BN partial statistics.

    x' = relu(x * in_scale + in_shift) when in_scale is given, else x.
    x: (Mp, Kp) with Kp % 128 == 0;  w: (Kp, Np) with Np % 128 == 0.
    Returns (out (Mp, Np), part (Mp//tm, 8, Np)); part[:, 0] = column sums,
    part[:, 1] = column sums of squares over the real rows.
    """
    mp, kp = x.shape
    np_ = w.shape[1]
    tm, tn = _pick_mm_tiles(mp, kp, np_)
    nmi, nnj = mp // tm, np_ // tn
    fuse = in_scale is not None
    mask_rows = fuse and (mp != m_real)

    in_specs = [pl.BlockSpec((tm, kp), lambda i, j: (i, 0)),
                pl.BlockSpec((kp, tn), lambda i, j: (0, j))]
    args = [x, w]
    if fuse:
        in_specs += [pl.BlockSpec((1, kp), lambda i, j: (0, 0)),
                     pl.BlockSpec((1, kp), lambda i, j: (0, 0))]
        args += [in_scale, in_shift]

    out, part = pl.pallas_call(
        _make_mm_kernel(fuse, mask_rows, m_real, tm),
        grid=(nmi, nnj),
        in_specs=in_specs,
        out_specs=(pl.BlockSpec((tm, tn), lambda i, j: (i, j)),
                   pl.BlockSpec((None, 8, tn), lambda i, j: (i, 0, j))),
        out_shape=(jax.ShapeDtypeStruct((mp, np_), out_dtype),
                   jax.ShapeDtypeStruct((nmi, 8, np_), jnp.float32)),
        compiler_params=pltpu.CompilerParams(
            dimension_semantics=("parallel", "parallel"),
            vmem_limit_bytes=VMEM_LIMIT),
    )(*args)
    return out, part


# ----------------------------------------------------------------------------
# Kernel B: elementwise BN-apply:  y = [relu]( x*s + b [+ (r*rs + rb | r)] )
# ----------------------------------------------------------------------------
def _make_affine_kernel(has_res, res_bn, relu):
    def kernel(*refs):
        x_ref, s_ref, b_ref = refs[0], refs[1], refs[2]
        idx = 3
        if has_res:
            r_ref = refs[idx]
            idx += 1
            if res_bn:
                rs_ref, rb_ref = refs[idx], refs[idx + 1]
                idx += 2
        o_ref = refs[idx]

        y = x_ref[...].astype(jnp.float32) * s_ref[...] + b_ref[...]
        if has_res:
            r = r_ref[...].astype(jnp.float32)
            if res_bn:
                r = r * rs_ref[...] + rb_ref[...]
            y = y + r
        if relu:
            y = jnp.maximum(y, 0.0)
        o_ref[...] = y.astype(o_ref.dtype)

    return kernel


def affine_apply(x, scale, shift, residual=None, res_scale=None,
                 res_shift=None, relu=True, out_dtype=jnp.bfloat16):
    mp, np_ = x.shape
    tm = next((t for t in (1024, 512, 256, 128) if mp % t == 0), mp)
    tn = next((t for t in (512, 256, 128) if np_ % t == 0), np_)
    has_res = residual is not None
    res_bn = has_res and (res_scale is not None)

    in_specs = [pl.BlockSpec((tm, tn), lambda i, j: (i, j)),
                pl.BlockSpec((1, tn), lambda i, j: (0, j)),
                pl.BlockSpec((1, tn), lambda i, j: (0, j))]
    args = [x, scale, shift]
    if has_res:
        in_specs.append(pl.BlockSpec((tm, tn), lambda i, j: (i, j)))
        args.append(residual)
        if res_bn:
            in_specs += [pl.BlockSpec((1, tn), lambda i, j: (0, j)),
                         pl.BlockSpec((1, tn), lambda i, j: (0, j))]
            args += [res_scale, res_shift]

    return pl.pallas_call(
        _make_affine_kernel(has_res, res_bn, relu),
        grid=(mp // tm, np_ // tn),
        in_specs=in_specs,
        out_specs=pl.BlockSpec((tm, tn), lambda i, j: (i, j)),
        out_shape=jax.ShapeDtypeStruct((mp, np_), out_dtype),
        compiler_params=pltpu.CompilerParams(
            dimension_semantics=("parallel", "parallel"),
            vmem_limit_bytes=VMEM_LIMIT),
    )(*args)


# ----------------------------------------------------------------------------
# Kernel C: stride-1 3x3 conv, spatially tiled, dx folded into K.
#   Input block:  (tr+2, W, 3C)  raw (pre-BN) conv_1_1 output, width-unrolled
#                 and zero-padded; BN1 + ReLU is applied here (halo re-zeroed).
#   Three dy taps -> three sublane-aligned (tr*W, 3C) @ (3C, Co) MXU matmuls
#   accumulated in a local value; one output store per tile + BN partial stats.
# grid = (n * row_tiles, out-channel tiles)
# ----------------------------------------------------------------------------
def _make_conv3x3_kernel(tr, w, c_pad, c3, nrt):
    def kernel(x_ref, w_ref, s_ref, b_ref, out_ref, part_ref):
        x = x_ref[...].astype(jnp.float32)                 # (tr+2, w, 3C)
        xt = jnp.maximum(x * s_ref[...] + b_ref[...], 0.0)

        # Re-zero the spatial zero-padding (BN shift would otherwise leak in).
        lane = jax.lax.broadcasted_iota(jnp.int32, xt.shape, 2)
        col = jax.lax.broadcasted_iota(jnp.int32, xt.shape, 1)
        row = jax.lax.broadcasted_iota(jnp.int32, xt.shape, 0)
        pad_col = jnp.logical_or(
            jnp.logical_and(lane < c_pad, col == 0),
            jnp.logical_and(lane >= 2 * c_pad, col == w - 1))
        t_in_img = pl.program_id(0) % nrt
        pad_row = jnp.logical_or(
            jnp.logical_and(t_in_img == 0, row == 0),
            jnp.logical_and(t_in_img == nrt - 1, row == tr + 1))
        xt = jnp.where(jnp.logical_or(pad_col, pad_row), 0.0, xt)
        xb = xt.astype(jnp.bfloat16)

        acc = jnp.dot(xb[0:tr].reshape(tr * w, c3), w_ref[0],
                      preferred_element_type=jnp.float32)
        acc = acc + jnp.dot(xb[1:tr + 1].reshape(tr * w, c3), w_ref[1],
                            preferred_element_type=jnp.float32)
        acc = acc + jnp.dot(xb[2:tr + 2].reshape(tr * w, c3), w_ref[2],
                            preferred_element_type=jnp.float32)

        out_ref[...] = acc.astype(out_ref.dtype)
        tco = acc.shape[1]
        csum = jnp.sum(acc, axis=0, keepdims=True)
        csq = jnp.sum(acc * acc, axis=0, keepdims=True)
        rows8 = jax.lax.broadcasted_iota(jnp.int32, (8, tco), 0)
        part_ref[...] = jnp.where(
            rows8 == 0, jnp.broadcast_to(csum, (8, tco)),
            jnp.where(rows8 == 1, jnp.broadcast_to(csq, (8, tco)), 0.0))

    return kernel


def conv3x3_bn_stats(xw_halo, w3, scale3c, shift3c, *, nrt,
                     out_dtype=jnp.bfloat16):
    """xw_halo: (n*nrt, tr+2, W, 3C) bf16;  w3: (3, 3C, Co) bf16."""
    nt, trp2, w, c3 = xw_halo.shape
    tr = trp2 - 2
    cop = w3.shape[-1]
    c_pad = c3 // 3
    tco = _pick_co_tile(cop)

    out, part = pl.pallas_call(
        _make_conv3x3_kernel(tr, w, c_pad, c3, nrt),
        grid=(nt, cop // tco),
        in_specs=[
            pl.BlockSpec((None, trp2, w, c3), lambda i, j: (i, 0, 0, 0)),
            pl.BlockSpec((3, c3, tco), lambda i, j: (0, 0, j)),
            pl.BlockSpec((1, 1, c3), lambda i, j: (0, 0, 0)),
            pl.BlockSpec((1, 1, c3), lambda i, j: (0, 0, 0)),
        ],
        out_specs=(pl.BlockSpec((None, tr * w, tco), lambda i, j: (i, 0, j)),
                   pl.BlockSpec((None, 8, tco), lambda i, j: (i, 0, j))),
        out_shape=(jax.ShapeDtypeStruct((nt, tr * w, cop), out_dtype),
                   jax.ShapeDtypeStruct((nt, 8, cop), jnp.float32)),
        compiler_params=pltpu.CompilerParams(
            dimension_semantics=("parallel", "parallel"),
            vmem_limit_bytes=VMEM_LIMIT),
    )(xw_halo, w3, scale3c, shift3c)
    return out, part


# ----------------------------------------------------------------------------
# Plain-JAX glue: tiny per-channel BN finalization (mean/var -> scale/shift).
# ----------------------------------------------------------------------------
def _reduce_parts(part):
    return part[:, 0, :].sum(axis=0), part[:, 1, :].sum(axis=0)


def _bn_scale_shift(col_sum, col_sumsq, count, gamma, beta, c_pad):
    # TODO(synk): E[x^2]-E[x]^2 in f32 can lose precision for very large counts.
    g = jnp.pad(gamma.astype(jnp.float32), (0, c_pad - gamma.shape[0]))
    b = jnp.pad(beta.astype(jnp.float32), (0, c_pad - beta.shape[0]))
    mean = col_sum / count
    var = jnp.maximum(col_sumsq / count - mean * mean, 0.0)
    scale = g * jax.lax.rsqrt(var + BN_EPS)
    shift = b - mean * scale
    return scale.reshape(1, -1), shift.reshape(1, -1)


# ----------------------------------------------------------------------------
# Full ResidualModule forward (training-mode BatchNorm, like the PyTorch module)
# ----------------------------------------------------------------------------
def residual_module_forward(x_nchw, params, down_sample=False):
    stride = 2 if down_sample else 1
    x = jnp.transpose(x_nchw, (0, 2, 3, 1)).astype(jnp.float32)      # NHWC
    n, h, w, cin = x.shape

    w11, w12, w13 = params["conv_1_1"], params["conv_1_2"], params["conv_1_3"]
    c11, c13 = w11.shape[0], w13.shape[0]
    cin_p = _round_up(cin, LANE)
    c11_p = _round_up(c11, LANE)
    c13_p = _round_up(c13, LANE)

    xp = jnp.pad(x, ((0, 0), (0, 0), (0, 0), (0, cin_p - cin))).astype(jnp.bfloat16)

    # ---- stage 1: conv_1_1 (1x1) + BN1 partial stats -------------------------
    m0 = n * h * w
    m0_p = _round_up(m0, TM)
    x_flat = jnp.pad(xp.reshape(m0, cin_p), ((0, m0_p - m0), (0, 0)))
    w11_mat = jnp.pad(w11.reshape(c11, cin).T,
                      ((0, cin_p - cin), (0, c11_p - c11))).astype(jnp.bfloat16)
    conv1, part1 = matmul_bn_stats(x_flat, w11_mat, m_real=m0)
    scale1, shift1 = _bn_scale_shift(*_reduce_parts(part1), m0,
                                     params["bn_1_1_gamma"],
                                     params["bn_1_1_beta"], c11_p)

    # ---- stage 2: conv_1_2 (3x3, pad 1) + BN2 partial stats -------------------
    w12_t = jnp.pad(jnp.transpose(w12, (2, 3, 1, 0)),
                    ((0, 0), (0, 0), (0, c11_p - c11), (0, c11_p - c11)))
    if stride == 1:
        ho, wo = h, w
        m1 = n * h * w
        c3 = 3 * c11_p
        # Width-only im2col (dx folded into K) + halo'd row tiles; BN1+ReLU is
        # applied inside the conv kernel, so no standalone BN1 pass is needed.
        y_raw = conv1[:m0].reshape(n, h, w, c11_p)
        xsp = jnp.pad(y_raw, ((0, 0), (1, 1), (1, 1), (0, 0)))
        xw = jnp.concatenate([xsp[:, :, 0:w, :], xsp[:, :, 1:w + 1, :],
                              xsp[:, :, 2:w + 2, :]], axis=-1)       # (n,h+2,w,3C)
        tco = _pick_co_tile(c11_p)
        tr = _pick_row_tile(h, w, c3, tco)
        nrt = h // tr
        xh = jnp.stack([xw[:, t * tr: t * tr + tr + 2] for t in range(nrt)],
                       axis=1).reshape(n * nrt, tr + 2, w, c3)
        w12_mat = w12_t.reshape(3, c3, c11_p).astype(jnp.bfloat16)
        scale1_3 = jnp.tile(scale1, (1, 3)).reshape(1, 1, c3)
        shift1_3 = jnp.tile(shift1, (1, 3)).reshape(1, 1, c3)
        conv2_t, part2 = conv3x3_bn_stats(xh, w12_mat, scale1_3, shift1_3,
                                          nrt=nrt)
        conv2 = conv2_t.reshape(m1, c11_p)
    else:
        # Stride-2: BN1+ReLU (fused elementwise kernel), then a 9C im2col on
        # the 4x-smaller output grid so stage 2 is a plain MXU matmul with
        # in-kernel BN stats (no redundant stride-1 conv + subsample).
        ho, wo = (h - 1) // 2 + 1, (w - 1) // 2 + 1
        m1 = n * ho * wo
        y1 = affine_apply(conv1, scale1, shift1, relu=True)[:m0]
        y1 = y1.reshape(n, h, w, c11_p)
        y1p = jnp.pad(y1, ((0, 0), (1, 1), (1, 1), (0, 0)))
        cols = [y1p[:, dy:dy + 2 * ho:2, dx:dx + 2 * wo:2, :]
                for dy in range(3) for dx in range(3)]
        patches = jnp.concatenate(cols, axis=-1).reshape(m1, 9 * c11_p)
        patches = jnp.pad(patches, ((0, _round_up(m1, TM) - m1), (0, 0)))
        w12_mat = w12_t.reshape(9 * c11_p, c11_p).astype(jnp.bfloat16)
        conv2, part2 = matmul_bn_stats(patches, w12_mat, m_real=m1)
    scale2, shift2 = _bn_scale_shift(*_reduce_parts(part2), m1,
                                     params["bn_1_2_gamma"],
                                     params["bn_1_2_beta"], c11_p)

    # ---- stage 3: conv_1_3 (1x1); BN2+ReLU fused as its input transform ------
    m1_p = _round_up(m1, TM)
    conv2 = jnp.pad(conv2, ((0, m1_p - conv2.shape[0]), (0, 0)))
    w13_mat = jnp.pad(w13.reshape(c13, c11).T,
                      ((0, c11_p - c11), (0, c13_p - c13))).astype(jnp.bfloat16)
    conv3, part3 = matmul_bn_stats(conv2, w13_mat, m_real=m1,
                                   in_scale=scale2, in_shift=shift2)
    scale3, shift3 = _bn_scale_shift(*_reduce_parts(part3), m1,
                                     params["bn_1_3_gamma"],
                                     params["bn_1_3_beta"], c13_p)

    # ---- shortcut branch + fused (BN3 + BN21 + add + ReLU) epilogue ----------
    if "conv_2_1" in params:
        w21 = params["conv_2_1"]
        c21 = w21.shape[0]
        c21_p = _round_up(c21, LANE)
        assert c21 == c13, "shortcut / main branch channel mismatch"
        xs = jnp.pad(xp[:, ::stride, ::stride, :].reshape(m1, cin_p),
                     ((0, m1_p - m1), (0, 0)))
        w21_mat = jnp.pad(w21.reshape(c21, cin).T,
                          ((0, cin_p - cin), (0, c21_p - c21))).astype(jnp.bfloat16)
        conv4, part4 = matmul_bn_stats(xs, w21_mat, m_real=m1)
        scale4, shift4 = _bn_scale_shift(*_reduce_parts(part4), m1,
                                         params["bn_2_1_gamma"],
                                         params["bn_2_1_beta"], c21_p)
        out = affine_apply(conv3, scale3, shift3,
                           residual=conv4, res_scale=scale4, res_shift=shift4,
                           relu=True, out_dtype=jnp.float32)
    else:
        assert cin == c13, "identity shortcut needs matching channels"
        xs = jnp.pad(x[:, ::stride, ::stride, :].reshape(m1, cin),
                     ((0, m1_p - m1), (0, c13_p - cin)))
        out = affine_apply(conv3, scale3, shift3, residual=xs,
                           relu=True, out_dtype=jnp.float32)

    out = out[:m1, :c13].reshape(n, ho, wo, c13)
    return jnp.transpose(out, (0, 3, 1, 2))                          # NCHW


# ----------------------------------------------------------------------------
# Deterministic synthetic parameters
# ----------------------------------------------------------------------------
def init_params(key, n_channels, multiplicators):
    c11 = int(n_channels * multiplicators[11])
    c13 = int(c11 * multiplicators[13])
    c21 = int(n_channels * multiplicators[21])
    ks = jax.random.split(key, 12)
    p = {
        "conv_1_1": 0.1 * jax.random.normal(ks[0], (c11, n_channels, 1, 1), jnp.float32),
        "bn_1_1_gamma": 1.0 + 0.1 * jax.random.normal(ks[1], (c11,), jnp.float32),
        "bn_1_1_beta": 0.1 * jax.random.normal(ks[2], (c11,), jnp.float32),
        "conv_1_2": 0.1 * jax.random.normal(ks[3], (c11, c11, 3, 3), jnp.float32),
        "bn_1_2_gamma": 1.0 + 0.1 * jax.random.normal(ks[4], (c11,), jnp.float32),
        "bn_1_2_beta": 0.1 * jax.random.normal(ks[5], (c11,), jnp.float32),
        "conv_1_3": 0.1 * jax.random.normal(ks[6], (c13, c11, 1, 1), jnp.float32),
        "bn_1_3_gamma": 1.0 + 0.1 * jax.random.normal(ks[7], (c13,), jnp.float32),
        "bn_1_3_beta": 0.1 * jax.random.normal(ks[8], (c13,), jnp.float32),
    }
    if c21 != 0:
        p["conv_2_1"] = 0.1 * jax.random.normal(ks[9], (c21, n_channels, 1, 1), jnp.float32)
        p["bn_2_1_gamma"] = 1.0 + 0.1 * jax.random.normal(ks[10], (c21,), jnp.float32)
        p["bn_2_1_beta"] = 0.1 * jax.random.normal(ks[11], (c21,), jnp.float32)
    return p


# ----------------------------------------------------------------------------
# Pure-JAX reference (mirrors the PyTorch forward with training-mode BN)
# ----------------------------------------------------------------------------
def reference_forward(x_nchw, params, down_sample=False):
    stride = 2 if down_sample else 1

    def conv(x, w, s, pad):
        return jax.lax.conv_general_dilated(
            x, w, window_strides=(s, s), padding=[(pad, pad), (pad, pad)],
            dimension_numbers=("NCHW", "OIHW", "NCHW"),
            precision=jax.lax.Precision.HIGHEST)

    def bn(x, g, b):
        mean = jnp.mean(x, axis=(0, 2, 3), keepdims=True)
        var = jnp.mean((x - mean) ** 2, axis=(0, 2, 3), keepdims=True)
        xn = (x - mean) * jax.lax.rsqrt(var + BN_EPS)
        return xn * g.reshape(1, -1, 1, 1) + b.reshape(1, -1, 1, 1)

    x1 = jax.nn.relu(bn(conv(x_nchw, params["conv_1_1"], 1, 0),
                        params["bn_1_1_gamma"], params["bn_1_1_beta"]))
    x1 = jax.nn.relu(bn(conv(x1, params["conv_1_2"], stride, 1),
                        params["bn_1_2_gamma"], params["bn_1_2_beta"]))
    x1 = bn(conv(x1, params["conv_1_3"], 1, 0),
            params["bn_1_3_gamma"], params["bn_1_3_beta"])
    if "conv_2_1" in params:
        x2 = bn(conv(x_nchw, params["conv_2_1"], stride, 0),
                params["bn_2_1_gamma"], params["bn_2_1_beta"])
    else:
        x2 = x_nchw[:, :, ::stride, ::stride]
    return jax.nn.relu(x1 + x2)


if __name__ == "__main__":
    key = jax.random.PRNGKey(0)
    k_params, k_x = jax.random.split(key)

    n_channels = 8
    multiplicators = {11: 0.5, 13: 4.0, 21: 2.0}    # C11=4, C13=16, C21=16
    params = init_params(k_params, n_channels, multiplicators)
    x = jax.random.normal(k_x, (2, n_channels, 16, 16), jnp.float32)

    for down_sample in (False, True):
        fwd = jax.jit(functools.partial(residual_module_forward,
                                        down_sample=down_sample))
        out = jax.block_until_ready(fwd(x, params))
        ref = reference_forward(x, params, down_sample)
        assert out.shape == ref.shape, (down_sample, out.shape, ref.shape)
        err = float(jnp.max(jnp.abs(out - ref)))
        assert err < 5e-2, f"down_sample={down_sample}: max abs error {err}"

    print("KERNEL_OK")
</pallas_src>

<mosaic_0001>
module attributes {stable_mosaic.version = 11 : i64} {
  func.func @kernel(%arg0: i32, %arg1: i32, %arg2: memref<512x128xbf16, #tpu.memory_space<vmem>>, %arg3: memref<128x128xbf16, #tpu.memory_space<vmem>>, %arg4: memref<512x128xbf16, #tpu.memory_space<vmem>>, %arg5: memref<1x8x128xf32, #tpu.memory_space<vmem>>) attributes {dimension_semantics = [#tpu.dimension_semantics<parallel>, #tpu.dimension_semantics<parallel>], iteration_bounds = array<i64: 1, 1>, scalar_prefetch = 0 : i64, scratch_operands = 0 : i64, tpu.core_type = #tpu.core_type<tc>, window_params = [{transform_indices = @transform_0, window_bounds = array<i64: 512, 128>}, {transform_indices = @transform_1, window_bounds = array<i64: 128, 128>}, {transform_indices = @transform_2, window_bounds = array<i64: 512, 128>}, {transform_indices = @transform_3, window_bounds = array<i64: 1, 8, 128>}]} {
    %c0 = arith.constant 0 : index
    %c0_0 = arith.constant 0 : index
    %0 = vector.load %arg2[%c0, %c0_0] : memref<512x128xbf16, #tpu.memory_space<vmem>>, vector<512x128xbf16>
    %c0_1 = arith.constant 0 : index
    %c0_2 = arith.constant 0 : index
    %1 = vector.load %arg3[%c0_1, %c0_2] : memref<128x128xbf16, #tpu.memory_space<vmem>>, vector<128x128xbf16>
    %cst = arith.constant dense<0.000000e+00> : vector<512x128xf32>
    %2 = tpu.matmul %0, %1, %cst {dimension_numbers = #tpu.dot_dimension_numbers<[1], [0], [0], [1], [0, 0, 1, 1], [], []>} : vector<512x128xbf16>, vector<128x128xbf16>, vector<512x128xf32> -> vector<512x128xf32>
    %3 = arith.truncf %2 : vector<512x128xf32> to vector<512x128xbf16>
    %c0_3 = arith.constant 0 : index
    %c0_4 = arith.constant 0 : index
    %4 = vector.load %arg4[%c0_3, %c0_4] : memref<512x128xbf16, #tpu.memory_space<vmem>>, vector<512x128xbf16>
    tpu.vector_store %arg4[%c0_3, %c0_4], %3 {strides = array<i32>} : memref<512x128xbf16, #tpu.memory_space<vmem>>, vector<512x128xbf16>,
    %cst_5 = arith.constant dense<0.000000e+00> : vector<128xf32>
    %5 = vector.multi_reduction <add>, %2, %cst_5 [0] : vector<512x128xf32> to vector<128xf32>
    %6 = vector.shape_cast %5 : vector<128xf32> to vector<1x128xf32>
    %7 = arith.mulf %2, %2 : vector<512x128xf32>
    %cst_6 = arith.constant dense<0.000000e+00> : vector<128xf32>
    %8 = vector.multi_reduction <add>, %7, %cst_6 [0] : vector<512x128xf32> to vector<128xf32>
    %9 = vector.shape_cast %8 : vector<128xf32> to vector<1x128xf32>
    %10 = tpu.iota {dimensions = array<i32: 0>} : vector<8x128xi32>
    %c0_i32 = arith.constant 0 : i32
    %11 = vector.broadcast %c0_i32 : i32 to vector<8x128xi32>
    %12 = arith.cmpi eq, %10, %11 : vector<8x128xi32>
    %13 = vector.shape_cast %6 : vector<1x128xf32> to vector<1x128xf32>
    %14 = vector.broadcast %13 : vector<1x128xf32> to vector<8x128xf32>
    %c1_i32 = arith.constant 1 : i32
    %15 = vector.broadcast %c1_i32 : i32 to vector<8x128xi32>
    %16 = arith.cmpi eq, %10, %15 : vector<8x128xi32>
    %17 = vector.shape_cast %9 : vector<1x128xf32> to vector<1x128xf32>
    %18 = vector.broadcast %17 : vector<1x128xf32> to vector<8x128xf32>
    %cst_7 = arith.constant 0.000000e+00 : f32
    %19 = vector.broadcast %cst_7 : f32 to vector<8x128xf32>
    %20 = arith.select %16, %18, %19 : vector<8x128xi1>, vector<8x128xf32>
    %21 = arith.select %12, %14, %20 : vector<8x128xi1>, vector<8x128xf32>
    %c0_8 = arith.constant 0 : index
    %c0_9 = arith.constant 0 : index
    %c0_10 = arith.constant 0 : index
    %22 = vector.load %arg5[%c0_8, %c0_9, %c0_10] : memref<1x8x128xf32, #tpu.memory_space<vmem>>, vector<1x8x128xf32>
    %23 = vector.shape_cast %22 : vector<1x8x128xf32> to vector<8x128xf32>
    %24 = vector.shape_cast %21 : vector<8x128xf32> to vector<1x8x128xf32>
    tpu.vector_store %arg5[%c0_8, %c0_9, %c0_10], %24 {strides = array<i32>} : memref<1x8x128xf32, #tpu.memory_space<vmem>>, vector<1x8x128xf32>,
    return
  }
  func.func @transform_0(%arg0: i32, %arg1: i32) -> (i32, i32) {
    %c0_i32 = arith.constant 0 : i32
    %c0_i32_0 = arith.constant 0 : i32
    return %arg0, %c0_i32 : i32, i32
  }
  func.func @transform_1(%arg0: i32, %arg1: i32) -> (i32, i32) {
    %c0_i32 = arith.constant 0 : i32
    %c0_i32_0 = arith.constant 0 : i32
    return %c0_i32, %arg1 : i32, i32
  }
  func.func @transform_2(%arg0: i32, %arg1: i32) -> (i32, i32) {
    %c0_i32 = arith.constant 0 : i32
    return %arg0, %arg1 : i32, i32
  }
  func.func @transform_3(%arg0: i32, %arg1: i32) -> (i32, i32, i32) {
    %c0_i32 = arith.constant 0 : i32
    %c0_i32_0 = arith.constant 0 : i32
    return %arg0, %c0_i32, %arg1 : i32, i32, i32
  }
}

module attributes {stable_mosaic.version = 11 : i64} {
  func.func @kernel(%arg0: i32, %arg1: i32, %arg2: memref<1x18x16x384xbf16, #tpu.memory_space<vmem>>, %arg3: memref<3x384x128xbf16, #tpu.memory_space<vmem>>, %arg4: memref<1x1x384xf32, #tpu.memory_space<vmem>>, %arg5: memref<1x1x384xf32, #tpu.memory_space<vmem>>, %arg6: memref<1x256x128xbf16, #tpu.memory_space<vmem>>, %arg7: memref<1x8x128xf32, #tpu.memory_space<vmem>>) attributes {dimension_semantics = [#tpu.dimension_semantics<parallel>, #tpu.dimension_semantics<parallel>], iteration_bounds = array<i64: 2, 1>, scalar_prefetch = 0 : i64, scratch_operands = 0 : i64, tpu.core_type = #tpu.core_type<tc>, window_params = [{transform_indices = @transform_0, window_bounds = array<i64: 1, 18, 16, 384>}, {transform_indices = @transform_1, window_bounds = array<i64: 3, 384, 128>}, {pipeline_mode = #tpu.pipeline_mode<synchronous>, transform_indices = @transform_2, window_bounds = array<i64: 1, 1, 384>}, {pipeline_mode = #tpu.pipeline_mode<synchronous>, transform_indices = @transform_3, window_bounds = array<i64: 1, 1, 384>}, {transform_indices = @transform_4, window_bounds = array<i64: 1, 256, 128>}, {transform_indices = @transform_5, window_bounds = array<i64: 1, 8, 128>}]} {
    %c0 = arith.constant 0 : index
    %c0_0 = arith.constant 0 : index
    %c0_1 = arith.constant 0 : index
    %c0_2 = arith.constant 0 : index
    %0 = vector.load %arg2[%c0, %c0_0, %c0_1, %c0_2] : memref<1x18x16x384xbf16, #tpu.memory_space<vmem>>, vector<1x18x16x384xbf16>
    %1 = vector.shape_cast %0 : vector<1x18x16x384xbf16> to vector<18x16x384xbf16>
    %2 = arith.extf %1 : vector<18x16x384xbf16> to vector<18x16x384xf32>
    %c0_3 = arith.constant 0 : index
    %c0_4 = arith.constant 0 : index
    %c0_5 = arith.constant 0 : index
    %3 = vector.load %arg4[%c0_3, %c0_4, %c0_5] : memref<1x1x384xf32, #tpu.memory_space<vmem>>, vector<1x1x384xf32>
    %4 = vector.broadcast %3 : vector<1x1x384xf32> to vector<18x16x384xf32>
    %5 = arith.mulf %2, %4 : vector<18x16x384xf32>
    %c0_6 = arith.constant 0 : index
    %c0_7 = arith.constant 0 : index
    %c0_8 = arith.constant 0 : index
    %6 = vector.load %arg5[%c0_6, %c0_7, %c0_8] : memref<1x1x384xf32, #tpu.memory_space<vmem>>, vector<1x1x384xf32>
    %7 = vector.broadcast %6 : vector<1x1x384xf32> to vector<18x16x384xf32>
    %8 = arith.addf %5, %7 : vector<18x16x384xf32>
    %cst = arith.constant 0.000000e+00 : f32
    %9 = vector.broadcast %cst : f32 to vector<18x16x384xf32>
    %10 = arith.maximumf %8, %9 : vector<18x16x384xf32>
    %11 = tpu.iota {dimensions = array<i32: 2>} : vector<18x16x384xi32>
    %12 = tpu.iota {dimensions = array<i32: 1>} : vector<18x16x384xi32>
    %13 = tpu.iota {dimensions = array<i32: 0>} : vector<18x16x384xi32>
    %c128_i32 = arith.constant 128 : i32
    %14 = vector.broadcast %c128_i32 : i32 to vector<18x16x384xi32>
    %15 = arith.cmpi slt, %11, %14 : vector<18x16x384xi32>
    %c0_i32 = arith.constant 0 : i32
    %16 = vector.broadcast %c0_i32 : i32 to vector<18x16x384xi32>
    %17 = arith.cmpi eq, %12, %16 : vector<18x16x384xi32>
    %18 = arith.andi %15, %17 : vector<18x16x384xi1>
    %c256_i32 = arith.constant 256 : i32
    %19 = vector.broadcast %c256_i32 : i32 to vector<18x16x384xi32>
    %20 = arith.cmpi sge, %11, %19 : vector<18x16x384xi32>
    %c15_i32 = arith.constant 15 : i32
    %21 = vector.broadcast %c15_i32 : i32 to vector<18x16x384xi32>
    %22 = arith.cmpi eq, %12, %21 : vector<18x16x384xi32>
    %23 = arith.andi %20, %22 : vector<18x16x384xi1>
    %24 = arith.ori %18, %23 : vector<18x16x384xi1>
    %c1_i32 = arith.constant 1 : i32
    %c0_i32_9 = arith.constant 0 : i32
    %25 = arith.cmpi eq, %c1_i32, %c0_i32_9 : i32
    %c1_i32_10 = arith.constant 1 : i32
    %26 = arith.select %25, %c1_i32_10, %c1_i32 : i32
    %27 = arith.remsi %arg0, %26 : i32
    %c0_i32_11 = arith.constant 0 : i32
    %28 = arith.cmpi ne, %27, %c0_i32_11 : i32
    %c0_i32_12 = arith.constant 0 : i32
    %29 = arith.cmpi slt, %27, %c0_i32_12 : i32
    %c0_i32_13 = arith.constant 0 : i32
    %30 = arith.cmpi slt, %26, %c0_i32_13 : i32
    %31 = arith.xori %29, %30 : i1
    %32 = arith.andi %31, %28 : i1
    %33 = arith.addi %27, %26 : i32
    %34 = arith.select %32, %33, %27 : i32
    %c0_i32_14 = arith.constant 0 : i32
    %35 = arith.cmpi eq, %34, %c0_i32_14 : i32
    %c0_i32_15 = arith.constant 0 : i32
    %36 = vector.broadcast %c0_i32_15 : i32 to vector<18x16x384xi32>
    %37 = arith.cmpi eq, %13, %36 : vector<18x16x384xi32>
    %38 = vector.broadcast %35 : i1 to vector<18x16x384xi1>
    %39 = arith.andi %38, %37 : vector<18x16x384xi1>
    %c0_i32_16 = arith.constant 0 : i32
    %40 = arith.cmpi eq, %34, %c0_i32_16 : i32
    %c17_i32 = arith.constant 17 : i32
    %41 = vector.broadcast %c17_i32 : i32 to vector<18x16x384xi32>
    %42 = arith.cmpi eq, %13, %41 : vector<18x16x384xi32>
    %43 = vector.broadcast %40 : i1 to vector<18x16x384xi1>
    %44 = arith.andi %43, %42 : vector<18x16x384xi1>
    %45 = arith.ori %39, %44 : vector<18x16x384xi1>
    %46 = arith.ori %24, %45 : vector<18x16x384xi1>
    %cst_17 = arith.constant 0.000000e+00 : f32
    %47 = vector.broadcast %cst_17 : f32 to vector<18x16x384xf32>
    %48 = arith.select %46, %47, %10 : vector<18x16x384xi1>, vector<18x16x384xf32>
    %49 = arith.truncf %48 : vector<18x16x384xf32> to vector<18x16x384xbf16>
    %50 = vector.extract_strided_slice %49 {offsets = [0, 0, 0], sizes = [16, 16, 384], strides = [1, 1, 1]} : vector<18x16x384xbf16> to vector<16x16x384xbf16>
    %51 = vector.shape_cast %50 : vector<16x16x384xbf16> to vector<256x384xbf16>
    %c0_18 = arith.constant 0 : index
    %c0_19 = arith.constant 0 : index
    %c0_20 = arith.constant 0 : index
    %52 = vector.load %arg3[%c0_18, %c0_19, %c0_20] : memref<3x384x128xbf16, #tpu.memory_space<vmem>>, vector<1x384x128xbf16>
    %53 = vector.shape_cast %52 : vector<1x384x128xbf16> to vector<384x128xbf16>
    %cst_21 = arith.constant dense<0.000000e+00> : vector<256x128xf32>
    %54 = tpu.matmul %51, %53, %cst_21 {dimension_numbers = #tpu.dot_dimension_numbers<[1], [0], [0], [1], [0, 0, 1, 1], [], []>} : vector<256x384xbf16>, vector<384x128xbf16>, vector<256x128xf32> -> vector<256x128xf32>
    %55 = vector.extract_strided_slice %49 {offsets = [1, 0, 0], sizes = [16, 16, 384], strides = [1, 1, 1]} : vector<18x16x384xbf16> to vector<16x16x384xbf16>
    %56 = vector.shape_cast %55 : vector<16x16x384xbf16> to vector<256x384xbf16>
    %c1 = arith.constant 1 : index
    %c0_22 = arith.constant 0 : index
    %c0_23 = arith.constant 0 : index
    %57 = vector.load %arg3[%c1, %c0_22, %c0_23] : memref<3x384x128xbf16, #tpu.memory_space<vmem>>, vector<1x384x128xbf16>
    %58 = vector.shape_cast %57 : vector<1x384x128xbf16> to vector<384x128xbf16>
    %cst_24 = arith.constant dense<0.000000e+00> : vector<256x128xf32>
    %59 = tpu.matmul %56, %58, %cst_24 {dimension_numbers = #tpu.dot_dimension_numbers<[1], [0], [0], [1], [0, 0, 1, 1], [], []>} : vector<256x384xbf16>, vector<384x128xbf16>, vector<256x128xf32> -> vector<256x128xf32>
    %60 = arith.addf %54, %59 : vector<256x128xf32>
    %61 = vector.extract_strided_slice %49 {offsets = [2, 0, 0], sizes = [16, 16, 384], strides = [1, 1, 1]} : vector<18x16x384xbf16> to vector<16x16x384xbf16>
    %62 = vector.shape_cast %61 : vector<16x16x384xbf16> to vector<256x384xbf16>
    %c2 = arith.constant 2 : index
    %c0_25 = arith.constant 0 : index
    %c0_26 = arith.constant 0 : index
    %63 = vector.load %arg3[%c2, %c0_25, %c0_26] : memref<3x384x128xbf16, #tpu.memory_space<vmem>>, vector<1x384x128xbf16>
    %64 = vector.shape_cast %63 : vector<1x384x128xbf16> to vector<384x128xbf16>
    %cst_27 = arith.constant dense<0.000000e+00> : vector<256x128xf32>
    %65 = tpu.matmul %62, %64, %cst_27 {dimension_numbers = #tpu.dot_dimension_numbers<[1], [0], [0], [1], [0, 0, 1, 1], [], []>} : vector<256x384xbf16>, vector<384x128xbf16>, vector<256x128xf32> -> vector<256x128xf32>
    %66 = arith.addf %60, %65 : vector<256x128xf32>
    %67 = arith.truncf %66 : vector<256x128xf32> to vector<256x128xbf16>
    %c0_28 = arith.constant 0 : index
    %c0_29 = arith.constant 0 : index
    %c0_30 = arith.constant 0 : index
    %68 = vector.load %arg6[%c0_28, %c0_29, %c0_30] : memref<1x256x128xbf16, #tpu.memory_space<vmem>>, vector<1x256x128xbf16>
    %69 = vector.shape_cast %68 : vector<1x256x128xbf16> to vector<256x128xbf16>
    %70 = vector.shape_cast %67 : vector<256x128xbf16> to vector<1x256x128xbf16>
    tpu.vector_store %arg6[%c0_28, %c0_29, %c0_30], %70 {strides = array<i32>} : memref<1x256x128xbf16, #tpu.memory_space<vmem>>, vector<1x256x128xbf16>,
    %cst_31 = arith.constant dense<0.000000e+00> : vector<128xf32>
    %71 = vector.multi_reduction <add>, %66, %cst_31 [0] : vector<256x128xf32> to vector<128xf32>
    %72 = vector.shape_cast %71 : vector<128xf32> to vector<1x128xf32>
    %73 = arith.mulf %66, %66 : vector<256x128xf32>
    %cst_32 = arith.constant dense<0.000000e+00> : vector<128xf32>
    %74 = vector.multi_reduction <add>, %73, %cst_32 [0] : vector<256x128xf32> to vector<128xf32>
    %75 = vector.shape_cast %74 : vector<128xf32> to vector<1x128xf32>
    %76 = tpu.iota {dimensions = array<i32: 0>} : vector<8x128xi32>
    %c0_i32_33 = arith.constant 0 : i32
    %77 = vector.broadcast %c0_i32_33 : i32 to vector<8x128xi32>
    %78 = arith.cmpi eq, %76, %77 : vector<8x128xi32>
    %79 = vector.shape_cast %72 : vector<1x128xf32> to vector<1x128xf32>
    %80 = vector.broadcast %79 : vector<1x128xf32> to vector<8x128xf32>
    %c1_i32_34 = arith.constant 1 : i32
    %81 = vector.broadcast %c1_i32_34 : i32 to vector<8x128xi32>
    %82 = arith.cmpi eq, %76, %81 : vector<8x128xi32>
    %83 = vector.shape_cast %75 : vector<1x128xf32> to vector<1x128xf32>
    %84 = vector.broadcast %83 : vector<1x128xf32> to vector<8x128xf32>
    %cst_35 = arith.constant 0.000000e+00 : f32
    %85 = vector.broadcast %cst_35 : f32 to vector<8x128xf32>
    %86 = arith.select %82, %84, %85 : vector<8x128xi1>, vector<8x128xf32>
    %87 = arith.select %78, %80, %86 : vector<8x128xi1>, vector<8x128xf32>
    %c0_36 = arith.constant 0 : index
    %c0_37 = arith.constant 0 : index
    %c0_38 = arith.constant 0 : index
    %88 = vector.load %arg7[%c0_36, %c0_37, %c0_38] : memref<1x8x128xf32, #tpu.memory_space<vmem>>, vector<1x8x128xf32>
    %89 = vector.shape_cast %88 : vector<1x8x128xf32> to vector<8x128xf32>
    %90 = vector.shape_cast %87 : vector<8x128xf32> to vector<1x8x128xf32>
    tpu.vector_store %arg7[%c0_36, %c0_37, %c0_38], %90 {strides = array<i32>} : memref<1x8x128xf32, #tpu.memory_space<vmem>>, vector<1x8x128xf32>,
    return
  }
  func.func @transform_0(%arg0: i32, %arg1: i32) -> (i32, i32, i32, i32) {
    %c0_i32 = arith.constant 0 : i32
    %c0_i32_0 = arith.constant 0 : i32
    %c0_i32_1 = arith.constant 0 : i32
    %c0_i32_2 = arith.constant 0 : i32
    return %arg0, %c0_i32, %c0_i32_0, %c0_i32_1 : i32, i32, i32, i32
  }
  func.func @transform_1(%arg0: i32, %arg1: i32) -> (i32, i32, i32) {
    %c0_i32 = arith.constant 0 : i32
    %c0_i32_0 = arith.constant 0 : i32
    %c0_i32_1 = arith.constant 0 : i32
    return %c0_i32, %c0_i32_0, %arg1 : i32, i32, i32
  }
  func.func @transform_2(%arg0: i32, %arg1: i32) -> (i32, i32, i32) {
    %c0_i32 = arith.constant 0 : i32
    %c0_i32_0 = arith.constant 0 : i32
    %c0_i32_1 = arith.constant 0 : i32
    %c0_i32_2 = arith.constant 0 : i32
    return %c0_i32, %c0_i32_0, %c0_i32_1 : i32, i32, i32
  }
  func.func @transform_3(%arg0: i32, %arg1: i32) -> (i32, i32, i32) {
    %c0_i32 = arith.constant 0 : i32
    %c0_i32_0 = arith.constant 0 : i32
    %c0_i32_1 = arith.constant 0 : i32
    %c0_i32_2 = arith.constant 0 : i32
    return %c0_i32, %c0_i32_0, %c0_i32_1 : i32, i32, i32
  }
  func.func @transform_4(%arg0: i32, %arg1: i32) -> (i32, i32, i32) {
    %c0_i32 = arith.constant 0 : i32
    %c0_i32_0 = arith.constant 0 : i32
    return %arg0, %c0_i32, %arg1 : i32, i32, i32
  }
  func.func @transform_5(%arg0: i32, %arg1: i32) -> (i32, i32, i32) {
    %c0_i32 = arith.constant 0 : i32
    %c0_i32_0 = arith.constant 0 : i32
    return %arg0, %c0_i32, %arg1 : i32, i32, i32
  }
}

module attributes {stable_mosaic.version = 11 : i64} {
  func.func @kernel(%arg0: i32, %arg1: i32, %arg2: memref<512x128xbf16, #tpu.memory_space<vmem>>, %arg3: memref<128x128xbf16, #tpu.memory_space<vmem>>, %arg4: memref<1x128xf32, #tpu.memory_space<vmem>>, %arg5: memref<1x128xf32, #tpu.memory_space<vmem>>, %arg6: memref<512x128xbf16, #tpu.memory_space<vmem>>, %arg7: memref<1x8x128xf32, #tpu.memory_space<vmem>>) attributes {dimension_semantics = [#tpu.dimension_semantics<parallel>, #tpu.dimension_semantics<parallel>], iteration_bounds = array<i64: 1, 1>, scalar_prefetch = 0 : i64, scratch_operands = 0 : i64, tpu.core_type = #tpu.core_type<tc>, window_params = [{transform_indices = @transform_0, window_bounds = array<i64: 512, 128>}, {transform_indices = @transform_1, window_bounds = array<i64: 128, 128>}, {pipeline_mode = #tpu.pipeline_mode<synchronous>, transform_indices = @transform_2, window_bounds = array<i64: 1, 128>}, {pipeline_mode = #tpu.pipeline_mode<synchronous>, transform_indices = @transform_3, window_bounds = array<i64: 1, 128>}, {transform_indices = @transform_4, window_bounds = array<i64: 512, 128>}, {transform_indices = @transform_5, window_bounds = array<i64: 1, 8, 128>}]} {
    %c0 = arith.constant 0 : index
    %c0_0 = arith.constant 0 : index
    %0 = vector.load %arg2[%c0, %c0_0] : memref<512x128xbf16, #tpu.memory_space<vmem>>, vector<512x128xbf16>
    %1 = arith.extf %0 : vector<512x128xbf16> to vector<512x128xf32>
    %c0_1 = arith.constant 0 : index
    %c0_2 = arith.constant 0 : index
    %2 = vector.load %arg4[%c0_1, %c0_2] : memref<1x128xf32, #tpu.memory_space<vmem>>, vector<1x128xf32>
    %3 = vector.broadcast %2 : vector<1x128xf32> to vector<512x128xf32>
    %4 = arith.mulf %1, %3 : vector<512x128xf32>
    %c0_3 = arith.constant 0 : index
    %c0_4 = arith.constant 0 : index
    %5 = vector.load %arg5[%c0_3, %c0_4] : memref<1x128xf32, #tpu.memory_space<vmem>>, vector<1x128xf32>
    %6 = vector.broadcast %5 : vector<1x128xf32> to vector<512x128xf32>
    %7 = arith.addf %4, %6 : vector<512x128xf32>
    %cst = arith.constant 0.000000e+00 : f32
    %8 = vector.broadcast %cst : f32 to vector<512x128xf32>
    %9 = arith.maximumf %7, %8 : vector<512x128xf32>
    %10 = arith.truncf %9 : vector<512x128xf32> to vector<512x128xbf16>
    %c0_5 = arith.constant 0 : index
    %c0_6 = arith.constant 0 : index
    %11 = vector.load %arg3[%c0_5, %c0_6] : memref<128x128xbf16, #tpu.memory_space<vmem>>, vector<128x128xbf16>
    %cst_7 = arith.constant dense<0.000000e+00> : vector<512x128xf32>
    %12 = tpu.matmul %10, %11, %cst_7 {dimension_numbers = #tpu.dot_dimension_numbers<[1], [0], [0], [1], [0, 0, 1, 1], [], []>} : vector<512x128xbf16>, vector<128x128xbf16>, vector<512x128xf32> -> vector<512x128xf32>
    %13 = arith.truncf %12 : vector<512x128xf32> to vector<512x128xbf16>
    %c0_8 = arith.constant 0 : index
    %c0_9 = arith.constant 0 : index
    %14 = vector.load %arg6[%c0_8, %c0_9] : memref<512x128xbf16, #tpu.memory_space<vmem>>, vector<512x128xbf16>
    tpu.vector_store %arg6[%c0_8, %c0_9], %13 {strides = array<i32>} : memref<512x128xbf16, #tpu.memory_space<vmem>>, vector<512x128xbf16>,
    %cst_10 = arith.constant dense<0.000000e+00> : vector<128xf32>
    %15 = vector.multi_reduction <add>, %12, %cst_10 [0] : vector<512x128xf32> to vector<128xf32>
    %16 = vector.shape_cast %15 : vector<128xf32> to vector<1x128xf32>
    %17 = arith.mulf %12, %12 : vector<512x128xf32>
    %cst_11 = arith.constant dense<0.000000e+00> : vector<128xf32>
    %18 = vector.multi_reduction <add>, %17, %cst_11 [0] : vector<512x128xf32> to vector<128xf32>
    %19 = vector.shape_cast %18 : vector<128xf32> to vector<1x128xf32>
    %20 = tpu.iota {dimensions = array<i32: 0>} : vector<8x128xi32>
    %c0_i32 = arith.constant 0 : i32
    %21 = vector.broadcast %c0_i32 : i32 to vector<8x128xi32>
    %22 = arith.cmpi eq, %20, %21 : vector<8x128xi32>
    %23 = vector.shape_cast %16 : vector<1x128xf32> to vector<1x128xf32>
    %24 = vector.broadcast %23 : vector<1x128xf32> to vector<8x128xf32>
    %c1_i32 = arith.constant 1 : i32
    %25 = vector.broadcast %c1_i32 : i32 to vector<8x128xi32>
    %26 = arith.cmpi eq, %20, %25 : vector<8x128xi32>
    %27 = vector.shape_cast %19 : vector<1x128xf32> to vector<1x128xf32>
    %28 = vector.broadcast %27 : vector<1x128xf32> to vector<8x128xf32>
    %cst_12 = arith.constant 0.000000e+00 : f32
    %29 = vector.broadcast %cst_12 : f32 to vector<8x128xf32>
    %30 = arith.select %26, %28, %29 : vector<8x128xi1>, vector<8x128xf32>
    %31 = arith.select %22, %24, %30 : vector<8x128xi1>, vector<8x128xf32>
    %c0_13 = arith.constant 0 : index
    %c0_14 = arith.constant 0 : index
    %c0_15 = arith.constant 0 : index
    %32 = vector.load %arg7[%c0_13, %c0_14, %c0_15] : memref<1x8x128xf32, #tpu.memory_space<vmem>>, vector<1x8x128xf32>
    %33 = vector.shape_cast %32 : vector<1x8x128xf32> to vector<8x128xf32>
    %34 = vector.shape_cast %31 : vector<8x128xf32> to vector<1x8x128xf32>
    tpu.vector_store %arg7[%c0_13, %c0_14, %c0_15], %34 {strides = array<i32>} : memref<1x8x128xf32, #tpu.memory_space<vmem>>, vector<1x8x128xf32>,
    return
  }
  func.func @transform_0(%arg0: i32, %arg1: i32) -> (i32, i32) {
    %c0_i32 = arith.constant 0 : i32
    %c0_i32_0 = arith.constant 0 : i32
    return %arg0, %c0_i32 : i32, i32
  }
  func.func @transform_1(%arg0: i32, %arg1: i32) -> (i32, i32) {
    %c0_i32 = arith.constant 0 : i32
    %c0_i32_0 = arith.constant 0 : i32
    return %c0_i32, %arg1 : i32, i32
  }
  func.func @transform_2(%arg0: i32, %arg1: i32) -> (i32, i32) {
    %c0_i32 = arith.constant 0 : i32
    %c0_i32_0 = arith.constant 0 : i32
    %c0_i32_1 = arith.constant 0 : i32
    return %c0_i32, %c0_i32_0 : i32, i32
  }
  func.func @transform_3(%arg0: i32, %arg1: i32) -> (i32, i32) {
    %c0_i32 = arith.constant 0 : i32
    %c0_i32_0 = arith.constant 0 : i32
    %c0_i32_1 = arith.constant 0 : i32
    return %c0_i32, %c0_i32_0 : i32, i32
  }
  func.func @transform_4(%arg0: i32, %arg1: i32) -> (i32, i32) {
    %c0_i32 = arith.constant 0 : i32
    return %arg0, %arg1 : i32, i32
  }
  func.func @transform_5(%arg0: i32, %arg1: i32) -> (i32, i32, i32) {
    %c0_i32 = arith.constant 0 : i32
    %c0_i32_0 = arith.constant 0 : i32
    return %arg0, %c0_i32, %arg1 : i32, i32, i32
  }
}

module attributes {stable_mosaic.version = 11 : i64} {
  func.func @kernel(%arg0: i32, %arg1: i32, %arg2: memref<512x128xbf16, #tpu.memory_space<vmem>>, %arg3: memref<1x128xf32, #tpu.memory_space<vmem>>, %arg4: memref<1x128xf32, #tpu.memory_space<vmem>>, %arg5: memref<512x128xbf16, #tpu.memory_space<vmem>>, %arg6: memref<1x128xf32, #tpu.memory_space<vmem>>, %arg7: memref<1x128xf32, #tpu.memory_space<vmem>>, %arg8: memref<512x128xf32, #tpu.memory_space<vmem>>) attributes {dimension_semantics = [#tpu.dimension_semantics<parallel>, #tpu.dimension_semantics<parallel>], iteration_bounds = array<i64: 1, 1>, scalar_prefetch = 0 : i64, scratch_operands = 0 : i64, tpu.core_type = #tpu.core_type<tc>, window_params = [{transform_indices = @transform_0, window_bounds = array<i64: 512, 128>}, {transform_indices = @transform_1, window_bounds = array<i64: 1, 128>}, {transform_indices = @transform_2, window_bounds = array<i64: 1, 128>}, {transform_indices = @transform_3, window_bounds = array<i64: 512, 128>}, {transform_indices = @transform_4, window_bounds = array<i64: 1, 128>}, {transform_indices = @transform_5, window_bounds = array<i64: 1, 128>}, {transform_indices = @transform_6, window_bounds = array<i64: 512, 128>}]} {
    %c0 = arith.constant 0 : index
    %c0_0 = arith.constant 0 : index
    %0 = vector.load %arg2[%c0, %c0_0] : memref<512x128xbf16, #tpu.memory_space<vmem>>, vector<512x128xbf16>
    %1 = arith.extf %0 : vector<512x128xbf16> to vector<512x128xf32>
    %c0_1 = arith.constant 0 : index
    %c0_2 = arith.constant 0 : index
    %2 = vector.load %arg3[%c0_1, %c0_2] : memref<1x128xf32, #tpu.memory_space<vmem>>, vector<1x128xf32>
    %3 = vector.broadcast %2 : vector<1x128xf32> to vector<512x128xf32>
    %4 = arith.mulf %1, %3 : vector<512x128xf32>
    %c0_3 = arith.constant 0 : index
    %c0_4 = arith.constant 0 : index
    %5 = vector.load %arg4[%c0_3, %c0_4] : memref<1x128xf32, #tpu.memory_space<vmem>>, vector<1x128xf32>
    %6 = vector.broadcast %5 : vector<1x128xf32> to vector<512x128xf32>
    %7 = arith.addf %4, %6 : vector<512x128xf32>
    %c0_5 = arith.constant 0 : index
    %c0_6 = arith.constant 0 : index
    %8 = vector.load %arg5[%c0_5, %c0_6] : memref<512x128xbf16, #tpu.memory_space<vmem>>, vector<512x128xbf16>
    %9 = arith.extf %8 : vector<512x128xbf16> to vector<512x128xf32>
    %c0_7 = arith.constant 0 : index
    %c0_8 = arith.constant 0 : index
    %10 = vector.load %arg6[%c0_7, %c0_8] : memref<1x128xf32, #tpu.memory_space<vmem>>, vector<1x128xf32>
    %11 = vector.broadcast %10 : vector<1x128xf32> to vector<512x128xf32>
    %12 = arith.mulf %9, %11 : vector<512x128xf32>
    %c0_9 = arith.constant 0 : index
    %c0_10 = arith.constant 0 : index
    %13 = vector.load %arg7[%c0_9, %c0_10] : memref<1x128xf32, #tpu.memory_space<vmem>>, vector<1x128xf32>
    %14 = vector.broadcast %13 : vector<1x128xf32> to vector<512x128xf32>
    %15 = arith.addf %12, %14 : vector<512x128xf32>
    %16 = arith.addf %7, %15 : vector<512x128xf32>
    %cst = arith.constant 0.000000e+00 : f32
    %17 = vector.broadcast %cst : f32 to vector<512x128xf32>
    %18 = arith.maximumf %16, %17 : vector<512x128xf32>
    %c0_11 = arith.constant 0 : index
    %c0_12 = arith.constant 0 : index
    %19 = vector.load %arg8[%c0_11, %c0_12] : memref<512x128xf32, #tpu.memory_space<vmem>>, vector<512x128xf32>
    tpu.vector_store %arg8[%c0_11, %c0_12], %18 {strides = array<i32>} : memref<512x128xf32, #tpu.memory_space<vmem>>, vector<512x128xf32>,
    return
  }
  func.func @transform_0(%arg0: i32, %arg1: i32) -> (i32, i32) {
    %c0_i32 = arith.constant 0 : i32
    return %arg0, %arg1 : i32, i32
  }
  func.func @transform_1(%arg0: i32, %arg1: i32) -> (i32, i32) {
    %c0_i32 = arith.constant 0 : i32
    %c0_i32_0 = arith.constant 0 : i32
    return %c0_i32, %arg1 : i32, i32
  }
  func.func @transform_2(%arg0: i32, %arg1: i32) -> (i32, i32) {
    %c0_i32 = arith.constant 0 : i32
    %c0_i32_0 = arith.constant 0 : i32
    return %c0_i32, %arg1 : i32, i32
  }
  func.func @transform_3(%arg0: i32, %arg1: i32) -> (i32, i32) {
    %c0_i32 = arith.constant 0 : i32
    return %arg0, %arg1 : i32, i32
  }
  func.func @transform_4(%arg0: i32, %arg1: i32) -> (i32, i32) {
    %c0_i32 = arith.constant 0 : i32
    %c0_i32_0 = arith.constant 0 : i32
    return %c0_i32, %arg1 : i32, i32
  }
  func.func @transform_5(%arg0: i32, %arg1: i32) -> (i32, i32) {
    %c0_i32 = arith.constant 0 : i32
    %c0_i32_0 = arith.constant 0 : i32
    return %c0_i32, %arg1 : i32, i32
  }
  func.func @transform_6(%arg0: i32, %arg1: i32) -> (i32, i32) {
    %c0_i32 = arith.constant 0 : i32
    return %arg0, %arg1 : i32, i32
  }
}

</mosaic_0001>

<llo_original>
// kernel: residual_module_forward.5
$region0: #{residual_module_forward.5}
  #allocation0 [shape = 'u32[]', space=smem, size = 0x4, offset = 0x4, fixed_abs, tag = 'smem constant byte address 0x4 - core index']
  #allocation1 [shape = 'u32[144,128]{1,0:T(1,128)}', space=vmem, size = 0x12000, scoped, tag = 'internal scratch']
  %s0 = inlined_call_operand.vmem [shape: bf16[512,128], index: 0, kind: input, shape index: {}]
  %s1 = inlined_call_operand.vmem [shape: bf16[128,128], index: 1, kind: input, shape index: {}]
  %s2 = inlined_call_operand.vmem [shape: bf16[512,128], index: 2, kind: output, shape index: {0}]
  %s3 = inlined_call_operand.vmem [shape: f32[1,8,128], index: 3, kind: output, shape index: {1}]
  %4 = xla_tuple %s2, %s3
  %s5 = sld [smem:[#allocation0]]
  $region26: #{residual_module_forward.5} parent=0
    _
  %s7 = ssub.s32 1, %s5
  %s8 = scalar_select 0, %s7, %s5
  // Predicated region
  $region2: #{residual_module_forward.5} parent=0 // pred_check
    _
  $region3: #{residual_module_forward.5} parent=0 // pred_check_branch
    %10 = sbr.rel (0) target = $region5
  $region4: #{residual_module_forward.5} parent=0 // pred_region
    _
  $region5: #{residual_module_forward.5} parent=0 // pred_fallthru
    _
  // Predicated region
  $region6: #{residual_module_forward.5} parent=0 // pred_check
    _
  $region7: #{residual_module_forward.5} parent=0 // pred_check_branch
    %12 = sbr.rel (0) target = $region9
  $region8: #{residual_module_forward.5} parent=0 // pred_region
    _
  $region9: #{residual_module_forward.5} parent=0 // pred_fallthru
    _
  %v14 = vld [vmem:[%s0] sm:$0xf]
  %v15 = vld [vmem:[%s0 + $0x4] sm:$0xf]
  %v16 = vld [vmem:[%s0 + $0x8] sm:$0xf]
  %v17 = vld [vmem:[%s0 + $0xc] sm:$0xf]
  %v18 = vld [vmem:[%s0 + $0x10] sm:$0xf]
  %v19 = vld [vmem:[%s0 + $0x14] sm:$0xf]
  %v20 = vld [vmem:[%s0 + $0x18] sm:$0xf]
  %v21 = vld [vmem:[%s0 + $0x1c] sm:$0xf]
  %v22 = vld [vmem:[%s0 + $0x20] sm:$0xf]
  %v23 = vld [vmem:[%s0 + $0x24] sm:$0xf]
  %v24 = vld [vmem:[%s0 + $0x28] sm:$0xf]
  %v25 = vld [vmem:[%s0 + $0x2c] sm:$0xf]
  %v26 = vld [vmem:[%s0 + $0x30] sm:$0xf]
  %v27 = vld [vmem:[%s0 + $0x34] sm:$0xf]
  %v28 = vld [vmem:[%s0 + $0x38] sm:$0xf]
  %v29 = vld [vmem:[%s0 + $0x3c] sm:$0xf]
  %v30 = vld [vmem:[%s0 + $0x40] sm:$0xf]
  %v31 = vld [vmem:[%s0 + $0x44] sm:$0xf]
  %v32 = vld [vmem:[%s0 + $0x48] sm:$0xf]
  %v33 = vld [vmem:[%s0 + $0x4c] sm:$0xf]
  %v34 = vld [vmem:[%s0 + $0x50] sm:$0xf]
  %v35 = vld [vmem:[%s0 + $0x54] sm:$0xf]
  %v36 = vld [vmem:[%s0 + $0x58] sm:$0xf]
  %v37 = vld [vmem:[%s0 + $0x5c] sm:$0xf]
  %v38 = vld [vmem:[%s0 + $0x60] sm:$0xf]
  %v39 = vld [vmem:[%s0 + $0x64] sm:$0xf]
  %v40 = vld [vmem:[%s0 + $0x68] sm:$0xf]
  %v41 = vld [vmem:[%s0 + $0x6c] sm:$0xf]
  %v42 = vld [vmem:[%s0 + $0x70] sm:$0xf]
  %v43 = vld [vmem:[%s0 + $0x74] sm:$0xf]
  %v44 = vld [vmem:[%s0 + $0x78] sm:$0xf]
  %v45 = vld [vmem:[%s0 + $0x7c] sm:$0xf]
  %v46 = vld [vmem:[%s0 + $0x80] sm:$0xf]
  %v47 = vld [vmem:[%s0 + $0x84] sm:$0xf]
  %v48 = vld [vmem:[%s0 + $0x88] sm:$0xf]
  %v49 = vld [vmem:[%s0 + $0x8c] sm:$0xf]
  %v50 = vld [vmem:[%s0 + $0x90] sm:$0xf]
  %v51 = vld [vmem:[%s0 + $0x94] sm:$0xf]
  %v52 = vld [vmem:[%s0 + $0x98] sm:$0xf]
  %v53 = vld [vmem:[%s0 + $0x9c] sm:$0xf]
  %v54 = vld [vmem:[%s0 + $0xa0] sm:$0xf]
  %v55 = vld [vmem:[%s0 + $0xa4] sm:$0xf]
  %v56 = vld [vmem:[%s0 + $0xa8] sm:$0xf]
  %v57 = vld [vmem:[%s0 + $0xac] sm:$0xf]
  %v58 = vld [vmem:[%s0 + $0xb0] sm:$0xf]
  %v59 = vld [vmem:[%s0 + $0xb4] sm:$0xf]
  %v60 = vld [vmem:[%s0 + $0xb8] sm:$0xf]
  %v61 = vld [vmem:[%s0 + $0xbc] sm:$0xf]
  %v62 = vld [vmem:[%s0 + $0xc0] sm:$0xf]
  %v63 = vld [vmem:[%s0 + $0xc4] sm:$0xf]
  %v64 = vld [vmem:[%s0 + $0xc8] sm:$0xf]
  %v65 = vld [vmem:[%s0 + $0xcc] sm:$0xf]
  %v66 = vld [vmem:[%s0 + $0xd0] sm:$0xf]
  %v67 = vld [vmem:[%s0 + $0xd4] sm:$0xf]
  %v68 = vld [vmem:[%s0 + $0xd8] sm:$0xf]
  %v69 = vld [vmem:[%s0 + $0xdc] sm:$0xf]
  %v70 = vld [vmem:[%s0 + $0xe0] sm:$0xf]
  %v71 = vld [vmem:[%s0 + $0xe4] sm:$0xf]
  %v72 = vld [vmem:[%s0 + $0xe8] sm:$0xf]
  %v73 = vld [vmem:[%s0 + $0xec] sm:$0xf]
  %v74 = vld [vmem:[%s0 + $0xf0] sm:$0xf]
  %v75 = vld [vmem:[%s0 + $0xf4] sm:$0xf]
  %v76 = vld [vmem:[%s0 + $0xf8] sm:$0xf]
  %v77 = vld [vmem:[%s0 + $0xfc] sm:$0xf]
  %v78 = vld [vmem:[%s1] sm:$0xf]
  %v79 = vld [vmem:[%s1 + $0x4] sm:$0xf]
  %v80 = vld [vmem:[%s1 + $0x8] sm:$0xf]
  %v81 = vld [vmem:[%s1 + $0xc] sm:$0xf]
  %v82 = vld [vmem:[%s1 + $0x10] sm:$0xf]
  %v83 = vld [vmem:[%s1 + $0x14] sm:$0xf]
  %v84 = vld [vmem:[%s1 + $0x18] sm:$0xf]
  %v85 = vld [vmem:[%s1 + $0x1c] sm:$0xf]
  %v86 = vld [vmem:[%s1 + $0x20] sm:$0xf]
  %v87 = vld [vmem:[%s1 + $0x24] sm:$0xf]
  %v88 = vld [vmem:[%s1 + $0x28] sm:$0xf]
  %v89 = vld [vmem:[%s1 + $0x2c] sm:$0xf]
  %v90 = vld [vmem:[%s1 + $0x30] sm:$0xf]
  %v91 = vld [vmem:[%s1 + $0x34] sm:$0xf]
  %v92 = vld [vmem:[%s1 + $0x38] sm:$0xf]
  %v93 = vld [vmem:[%s1 + $0x3c] sm:$0xf]
  %v158 = vunpack.c.l.b16 %v14
  %v159 = vunpack.c.l.b16 %v15
  %v160 = vunpack.c.l.b16 %v16
  %v161 = vunpack.c.l.b16 %v17
  %v162 = vunpack.c.l.b16 %v18
  %v163 = vunpack.c.l.b16 %v19
  %v164 = vunpack.c.l.b16 %v20
  %v165 = vunpack.c.l.b16 %v21
  %v166 = vunpack.c.l.b16 %v22
  %v167 = vunpack.c.l.b16 %v23
  %v168 = vunpack.c.l.b16 %v24
  %v169 = vunpack.c.l.b16 %v25
  %v170 = vunpack.c.l.b16 %v26
  %v171 = vunpack.c.l.b16 %v27
  %v172 = vunpack.c.l.b16 %v28
  %v173 = vunpack.c.l.b16 %v29
  %v174 = vunpack.c.l.b16 %v30
  %v175 = vunpack.c.l.b16 %v31
  %v176 = vunpack.c.l.b16 %v32
  %v177 = vunpack.c.l.b16 %v33
  %v178 = vunpack.c.l.b16 %v34
  %v179 = vunpack.c.l.b16 %v35
  %v180 = vunpack.c.l.b16 %v36
  %v181 = vunpack.c.l.b16 %v37
  %v182 = vunpack.c.l.b16 %v38
  %v183 = vunpack.c.l.b16 %v39
  %v184 = vunpack.c.l.b16 %v40
  %v185 = vunpack.c.l.b16 %v41
  %v186 = vunpack.c.l.b16 %v42
  %v187 = vunpack.c.l.b16 %v43
  %v188 = vunpack.c.l.b16 %v44
  %v189 = vunpack.c.l.b16 %v45
  %v190 = vunpack.c.l.b16 %v46
  %v191 = vunpack.c.l.b16 %v47
  %v192 = vunpack.c.l.b16 %v48
  %v193 = vunpack.c.l.b16 %v49
  %v194 = vunpack.c.l.b16 %v50
  %v195 = vunpack.c.l.b16 %v51
  %v196 = vunpack.c.l.b16 %v52
  %v197 = vunpack.c.l.b16 %v53
  %v198 = vunpack.c.l.b16 %v54
  %v199 = vunpack.c.l.b16 %v55
  %v200 = vunpack.c.l.b16 %v56
  %v201 = vunpack.c.l.b16 %v57
  %v202 = vunpack.c.l.b16 %v58
  %v203 = vunpack.c.l.b16 %v59
  %v204 = vunpack.c.l.b16 %v60
  %v205 = vunpack.c.l.b16 %v61
  %v206 = vunpack.c.l.b16 %v62
  %v207 = vunpack.c.l.b16 %v63
  %v208 = vunpack.c.l.b16 %v64
  %v209 = vunpack.c.l.b16 %v65
  %v210 = vunpack.c.l.b16 %v66
  %v211 = vunpack.c.l.b16 %v67
  %v212 = vunpack.c.l.b16 %v68
  %v213 = vunpack.c.l.b16 %v69
  %v214 = vunpack.c.l.b16 %v70
  %v215 = vunpack.c.l.b16 %v71
  %v216 = vunpack.c.l.b16 %v72
  %v217 = vunpack.c.l.b16 %v73
  %v218 = vunpack.c.l.b16 %v74
  %v219 = vunpack.c.l.b16 %v75
  %v220 = vunpack.c.l.b16 %v76
  %v221 = vunpack.c.l.b16 %v77
  %v222 = vpack.c.b16 %v159, %v158
  %v223 = vpack.c.b16 %v161, %v160
  %v224 = vpack.c.b16 %v163, %v162
  %v225 = vpack.c.b16 %v165, %v164
  %v226 = vpack.c.b16 %v167, %v166
  %v227 = vpack.c.b16 %v169, %v168
  %v228 = vpack.c.b16 %v171, %v170
  %v229 = vpack.c.b16 %v173, %v172
  %v230 = vpack.c.b16 %v175, %v174
  %v231 = vpack.c.b16 %v177, %v176
  %v232 = vpack.c.b16 %v179, %v178
  %v233 = vpack.c.b16 %v181, %v180
  %v234 = vpack.c.b16 %v183, %v182
  %v235 = vpack.c.b16 %v185, %v184
  %v236 = vpack.c.b16 %v187, %v186
  %v237 = vpack.c.b16 %v189, %v188
  %v238 = vpack.c.b16 %v191, %v190
  %v239 = vpack.c.b16 %v193, %v192
  %v240 = vpack.c.b16 %v195, %v194
  %v241 = vpack.c.b16 %v197, %v196
  %v242 = vpack.c.b16 %v199, %v198
  %v243 = vpack.c.b16 %v201, %v200
  %v244 = vpack.c.b16 %v203, %v202
  %v245 = vpack.c.b16 %v205, %v204
  %v246 = vpack.c.b16 %v207, %v206
  %v247 = vpack.c.b16 %v209, %v208
  %v248 = vpack.c.b16 %v211, %v210
  %v249 = vpack.c.b16 %v213, %v212
  %v250 = vpack.c.b16 %v215, %v214
  %v251 = vpack.c.b16 %v217, %v216
  %v252 = vpack.c.b16 %v219, %v218
  %v253 = vpack.c.b16 %v221, %v220
  %v302 = vunpack.c.l.b16 %v78
  %v303 = vunpack.c.l.b16 %v79
  %v304 = vunpack.c.l.b16 %v80
  %v305 = vunpack.c.l.b16 %v81
  %v306 = vunpack.c.l.b16 %v82
  %v307 = vunpack.c.l.b16 %v83
  %v308 = vunpack.c.l.b16 %v84
  %v309 = vunpack.c.l.b16 %v85
  %v310 = vunpack.c.l.b16 %v86
  %v311 = vunpack.c.l.b16 %v87
  %v312 = vunpack.c.l.b16 %v88
  %v313 = vunpack.c.l.b16 %v89
  %v314 = vunpack.c.l.b16 %v90
  %v315 = vunpack.c.l.b16 %v91
  %v316 = vunpack.c.l.b16 %v92
  %v317 = vunpack.c.l.b16 %v93
  %v318 = vpack.c.b16 %v303, %v302
  %v319 = vpack.c.b16 %v305, %v304
  %v320 = vpack.c.b16 %v307, %v306
  %v321 = vpack.c.b16 %v309, %v308
  %v322 = vpack.c.b16 %v311, %v310
  %v323 = vpack.c.b16 %v313, %v312
  %v324 = vpack.c.b16 %v315, %v314
  %v325 = vpack.c.b16 %v317, %v316
  %334 = vmatprep.subr.bf16.mxu0 0
  %335 = vmatpush1.bf16.msra.mxu0 %v325
  %336 = vmatprep.subr.bf16.mxu0 0
  %337 = vmatpush1.bf16.msra.mxu0 %v324
  %338 = vmatprep.subr.bf16.mxu0 0
  %339 = vmatpush1.bf16.msra.mxu0 %v323
  %340 = vmatprep.subr.bf16.mxu0 0
  %341 = vmatpush1.bf16.msra.mxu0 %v322
  %342 = vmatprep.subr.bf16.mxu0 0
  %343 = vmatpush1.bf16.msra.mxu0 %v321
  %344 = vmatprep.subr.bf16.mxu0 0
  %345 = vmatpush1.bf16.msra.mxu0 %v320
  %346 = vmatprep.subr.bf16.mxu0 0
  %347 = vmatpush1.bf16.msra.mxu0 %v319
  %348 = vmatprep.subr.bf16.mxu0 0
  %349 = vmatpush1.bf16.msra.mxu0 %v318
  %350 = vmatprep.subr.bf16.mxu0 0
  %351 = vmatpush2.bf16.msra.mxu0 0
  %352 = vmatprep.subr.bf16.mxu0 0
  %353 = vmatpush2.bf16.msra.mxu0 0
  %354 = vmatprep.subr.bf16.mxu0 0
  %355 = vmatpush2.bf16.msra.mxu0 0
  %356 = vmatprep.subr.bf16.mxu0 0
  %357 = vmatpush2.bf16.msra.mxu0 0
  %358 = vmatprep.subr.bf16.mxu0 0
  %359 = vmatpush2.bf16.msra.mxu0 0
  %360 = vmatprep.subr.bf16.mxu0 0
  %361 = vmatpush2.bf16.msra.mxu0 0
  %362 = vmatprep.subr.bf16.mxu0 0
  %363 = vmatpush2.bf16.msra.mxu0 0
  %364 = vmatprep.subr.bf16.mxu0 0
  %365 = vmatpush2.bf16.msra.mxu0 0
  %366 = vmatprep.mubr.bf16.mxu0 0
  %367 = vmatmul.mubr.bf16.gmra.mxu0 %v222
  %v368 = vpop.f32.mrf.mxu0
  %v369 = vadd.f32 0.0, %v368
  %v370 = vpop.f32.mrf.mxu0
  %v371 = vpop.f32.mrf.mxu0
  %v372 = vadd.f32 0.0, %v371
  %v373 = vpop.f32.mrf.mxu0
  %374 = vmatprep.mubr.bf16.mxu0 0
  %375 = vmatmul.mubr.bf16.gmra.mxu0 %v223
  %v376 = vpop.f32.mrf.mxu0
  %v377 = vadd.f32 0.0, %v376
  %v378 = vpop.f32.mrf.mxu0
  %v379 = vpop.f32.mrf.mxu0
  %v380 = vadd.f32 0.0, %v379
  %v381 = vpop.f32.mrf.mxu0
  %382 = vmatprep.mubr.bf16.mxu0 0
  %383 = vmatmul.mubr.bf16.gmra.mxu0 %v224
  %v384 = vpop.f32.mrf.mxu0
  %v385 = vadd.f32 0.0, %v384
  %v386 = vpop.f32.mrf.mxu0
  %v387 = vpop.f32.mrf.mxu0
  %v388 = vadd.f32 0.0, %v387
  %v389 = vpop.f32.mrf.mxu0
  %390 = vmatprep.mubr.bf16.mxu0 0
  %391 = vmatmul.mubr.bf16.gmra.mxu0 %v225
  %v392 = vpop.f32.mrf.mxu0
  %v393 = vadd.f32 0.0, %v392
  %v394 = vpop.f32.mrf.mxu0
  %v395 = vpop.f32.mrf.mxu0
  %v396 = vadd.f32 0.0, %v395
  %v397 = vpop.f32.mrf.mxu0
  %398 = vmatprep.mubr.bf16.mxu0 0
  %399 = vmatmul.mubr.bf16.gmra.mxu0 %v226
  %v400 = vpop.f32.mrf.mxu0
  %v401 = vadd.f32 0.0, %v400
  %v402 = vpop.f32.mrf.mxu0
  %v403 = vpop.f32.mrf.mxu0
  %v404 = vadd.f32 0.0, %v403
  %v405 = vpop.f32.mrf.mxu0
  %406 = vmatprep.mubr.bf16.mxu0 0
  %407 = vmatmul.mubr.bf16.gmra.mxu0 %v227
  %v408 = vpop.f32.mrf.mxu0
  %v409 = vadd.f32 0.0, %v408
  %v410 = vpop.f32.mrf.mxu0
  %v411 = vpop.f32.mrf.mxu0
  %v412 = vadd.f32 0.0, %v411
  %v413 = vpop.f32.mrf.mxu0
  %414 = vmatprep.mubr.bf16.mxu0 0
  %415 = vmatmul.mubr.bf16.gmra.mxu0 %v228
  %v416 = vpop.f32.mrf.mxu0
  %v417 = vadd.f32 0.0, %v416
  %v418 = vpop.f32.mrf.mxu0
  %v419 = vpop.f32.mrf.mxu0
  %v420 = vadd.f32 0.0, %v419
  %v421 = vpop.f32.mrf.mxu0
  %422 = vmatprep.mubr.bf16.mxu0 0
  %423 = vmatmul.mubr.bf16.gmra.mxu0 %v229
  %v424 = vpop.f32.mrf.mxu0
  %v425 = vadd.f32 0.0, %v424
  %v426 = vpop.f32.mrf.mxu0
  %v427 = vpop.f32.mrf.mxu0
  %v428 = vadd.f32 0.0, %v427
  %v429 = vpop.f32.mrf.mxu0
  %430 = vmatprep.mubr.bf16.mxu0 0
  %431 = vmatmul.mubr.bf16.gmra.mxu0 %v230
  %v432 = vpop.f32.mrf.mxu0
  %v433 = vadd.f32 0.0, %v432
  %v434 = vpop.f32.mrf.mxu0
  %v435 = vpop.f32.mrf.mxu0
  %v436 = vadd.f32 0.0, %v435
  %v437 = vpop.f32.mrf.mxu0
  %438 = vmatprep.mubr.bf16.mxu0 0
  %439 = vmatmul.mubr.bf16.gmra.mxu0 %v231
  %v440 = vpop.f32.mrf.mxu0
  %v441 = vadd.f32 0.0, %v440
  %v442 = vpop.f32.mrf.mxu0
  %v443 = vpop.f32.mrf.mxu0
  %v444 = vadd.f32 0.0, %v443
  %v445 = vpop.f32.mrf.mxu0
  %446 = vmatprep.mubr.bf16.mxu0 0
  %447 = vmatmul.mubr.bf16.gmra.mxu0 %v232
  %v448 = vpop.f32.mrf.mxu0
  %v449 = vadd.f32 0.0, %v448
  %v450 = vpop.f32.mrf.mxu0
  %v451 = vpop.f32.mrf.mxu0
  %v452 = vadd.f32 0.0, %v451
  %v453 = vpop.f32.mrf.mxu0
  %454 = vmatprep.mubr.bf16.mxu0 0
  %455 = vmatmul.mubr.bf16.gmra.mxu0 %v233
  %v456 = vpop.f32.mrf.mxu0
  %v457 = vadd.f32 0.0, %v456
  %v458 = vpop.f32.mrf.mxu0
  %v459 = vpop.f32.mrf.mxu0
  %v460 = vadd.f32 0.0, %v459
  %v461 = vpop.f32.mrf.mxu0
  %462 = vmatprep.mubr.bf16.mxu0 0
  %463 = vmatmul.mubr.bf16.gmra.mxu0 %v234
  %v464 = vpop.f32.mrf.mxu0
  %v465 = vadd.f32 0.0, %v464
  %v466 = vpop.f32.mrf.mxu0
  %v467 = vpop.f32.mrf.mxu0
  %v468 = vadd.f32 0.0, %v467
  %v469 = vpop.f32.mrf.mxu0
  %470 = vmatprep.mubr.bf16.mxu0 0
  %471 = vmatmul.mubr.bf16.gmra.mxu0 %v235
  %v472 = vpop.f32.mrf.mxu0
  %v473 = vadd.f32 0.0, %v472
  %v474 = vpop.f32.mrf.mxu0
  %v475 = vpop.f32.mrf.mxu0
  %v476 = vadd.f32 0.0, %v475
  %v477 = vpop.f32.mrf.mxu0
  %478 = vmatprep.mubr.bf16.mxu0 0
  %479 = vmatmul.mubr.bf16.gmra.mxu0 %v236
  %v480 = vpop.f32.mrf.mxu0
  %v481 = vadd.f32 0.0, %v480
  %v482 = vpop.f32.mrf.mxu0
  %v483 = vpop.f32.mrf.mxu0
  %v484 = vadd.f32 0.0, %v483
  %v485 = vpop.f32.mrf.mxu0
  %486 = vmatprep.mubr.bf16.mxu0 0
  %487 = vmatmul.mubr.bf16.gmra.mxu0 %v237
  %v488 = vpop.f32.mrf.mxu0
  %v489 = vadd.f32 0.0, %v488
  %v490 = vpop.f32.mrf.mxu0
  %v491 = vpop.f32.mrf.mxu0
  %v492 = vadd.f32 0.0, %v491
  %v493 = vpop.f32.mrf.mxu0
  %494 = vmatprep.mubr.bf16.mxu0 0
  %495 = vmatmul.mubr.bf16.gmra.mxu0 %v238
  %v496 = vpop.f32.mrf.mxu0
  %v497 = vadd.f32 0.0, %v496
  %v498 = vpop.f32.mrf.mxu0
  %v499 = vpop.f32.mrf.mxu0
  %v500 = vadd.f32 0.0, %v499
  %v501 = vpop.f32.mrf.mxu0
  %502 = vmatprep.mubr.bf16.mxu0 0
  %503 = vmatmul.mubr.bf16.gmra.mxu0 %v239
  %v504 = vpop.f32.mrf.mxu0
  %v505 = vadd.f32 0.0, %v504
  %v506 = vpop.f32.mrf.mxu0
  %v507 = vpop.f32.mrf.mxu0
  %v508 = vadd.f32 0.0, %v507
  %v509 = vpop.f32.mrf.mxu0
  %510 = vmatprep.mubr.bf16.mxu0 0
  %511 = vmatmul.mubr.bf16.gmra.mxu0 %v240
  %v512 = vpop.f32.mrf.mxu0
  %v513 = vadd.f32 0.0, %v512
  %v514 = vpop.f32.mrf.mxu0
  %v515 = vpop.f32.mrf.mxu0
  %v516 = vadd.f32 0.0, %v515
  %v517 = vpop.f32.mrf.mxu0
  %518 = vmatprep.mubr.bf16.mxu0 0
  %519 = vmatmul.mubr.bf16.gmra.mxu0 %v241
  %v520 = vpop.f32.mrf.mxu0
  %v521 = vadd.f32 0.0, %v520
  %v522 = vpop.f32.mrf.mxu0
  %v523 = vpop.f32.mrf.mxu0
  %v524 = vadd.f32 0.0, %v523
  %v525 = vpop.f32.mrf.mxu0
  %526 = vmatprep.mubr.bf16.mxu0 0
  %527 = vmatmul.mubr.bf16.gmra.mxu0 %v242
  %v528 = vpop.f32.mrf.mxu0
  %v529 = vadd.f32 0.0, %v528
  %v530 = vpop.f32.mrf.mxu0
  %v531 = vpop.f32.mrf.mxu0
  %v532 = vadd.f32 0.0, %v531
  %v533 = vpop.f32.mrf.mxu0
  %534 = vmatprep.mubr.bf16.mxu0 0
  %535 = vmatmul.mubr.bf16.gmra.mxu0 %v243
  %v536 = vpop.f32.mrf.mxu0
  %v537 = vadd.f32 0.0, %v536
  %v538 = vpop.f32.mrf.mxu0
  %v539 = vpop.f32.mrf.mxu0
  %v540 = vadd.f32 0.0, %v539
  %v541 = vpop.f32.mrf.mxu0
  %542 = vmatprep.mubr.bf16.mxu0 0
  %543 = vmatmul.mubr.bf16.gmra.mxu0 %v244
  %v544 = vpop.f32.mrf.mxu0
  %v545 = vadd.f32 0.0, %v544
  %v546 = vpop.f32.mrf.mxu0
  %v547 = vpop.f32.mrf.mxu0
  %v548 = vadd.f32 0.0, %v547
  %v549 = vpop.f32.mrf.mxu0
  %550 = vmatprep.mubr.bf16.mxu0 0
  %551 = vmatmul.mubr.bf16.gmra.mxu0 %v245
  %v552 = vpop.f32.mrf.mxu0
  %v553 = vadd.f32 0.0, %v552
  %v554 = vpop.f32.mrf.mxu0
  %v555 = vpop.f32.mrf.mxu0
  %v556 = vadd.f32 0.0, %v555
  %v557 = vpop.f32.mrf.mxu0
  %558 = vmatprep.mubr.bf16.mxu0 0
  %559 = vmatmul.mubr.bf16.gmra.mxu0 %v246
  %v560 = vpop.f32.mrf.mxu0
  %v561 = vadd.f32 0.0, %v560
  %v562 = vpop.f32.mrf.mxu0
  %v563 = vpop.f32.mrf.mxu0
  %v564 = vadd.f32 0.0, %v563
  %v565 = vpop.f32.mrf.mxu0
  %566 = vmatprep.mubr.bf16.mxu0 0
  %567 = vmatmul.mubr.bf16.gmra.mxu0 %v247
  %v568 = vpop.f32.mrf.mxu0
  %v569 = vadd.f32 0.0, %v568
  %v570 = vpop.f32.mrf.mxu0
  %v571 = vpop.f32.mrf.mxu0
  %v572 = vadd.f32 0.0, %v571
  %v573 = vpop.f32.mrf.mxu0
  %574 = vmatprep.mubr.bf16.mxu0 0
  %575 = vmatmul.mubr.bf16.gmra.mxu0 %v248
  %v576 = vpop.f32.mrf.mxu0
  %v577 = vadd.f32 0.0, %v576
  %v578 = vpop.f32.mrf.mxu0
  %v579 = vpop.f32.mrf.mxu0
  %v580 = vadd.f32 0.0, %v579
  %v581 = vpop.f32.mrf.mxu0
  %582 = vmatprep.mubr.bf16.mxu0 0
  %583 = vmatmul.mubr.bf16.gmra.mxu0 %v249
  %v584 = vpop.f32.mrf.mxu0
  %v585 = vadd.f32 0.0, %v584
  %v586 = vpop.f32.mrf.mxu0
  %v587 = vpop.f32.mrf.mxu0
  %v588 = vadd.f32 0.0, %v587
  %v589 = vpop.f32.mrf.mxu0
  %590 = vmatprep.mubr.bf16.mxu0 0
  %591 = vmatmul.mubr.bf16.gmra.mxu0 %v250
  %v592 = vpop.f32.mrf.mxu0
  %v593 = vadd.f32 0.0, %v592
  %v594 = vpop.f32.mrf.mxu0
  %v595 = vpop.f32.mrf.mxu0
  %v596 = vadd.f32 0.0, %v595
  %v597 = vpop.f32.mrf.mxu0
  %598 = vmatprep.mubr.bf16.mxu0 0
  %599 = vmatmul.mubr.bf16.gmra.mxu0 %v251
  %v600 = vpop.f32.mrf.mxu0
  %v601 = vadd.f32 0.0, %v600
  %v602 = vpop.f32.mrf.mxu0
  %v603 = vpop.f32.mrf.mxu0
  %v604 = vadd.f32 0.0, %v603
  %v605 = vpop.f32.mrf.mxu0
  %606 = vmatprep.mubr.bf16.mxu0 0
  %607 = vmatmul.mubr.bf16.gmra.mxu0 %v252
  %v608 = vpop.f32.mrf.mxu0
  %v609 = vadd.f32 0.0, %v608
  %v610 = vpop.f32.mrf.mxu0
  %v611 = vpop.f32.mrf.mxu0
  %v612 = vadd.f32 0.0, %v611
  %v613 = vpop.f32.mrf.mxu0
  %614 = vmatprep.mubr.bf16.mxu0 0
  %615 = vmatmul.mubr.bf16.gmra.mxu0 %v253
  %v616 = vpop.f32.mrf.mxu0
  %v617 = vadd.f32 0.0, %v616
  %v618 = vpop.f32.mrf.mxu0
  %v619 = vpop.f32.mrf.mxu0
  %v620 = vadd.f32 0.0, %v619
  %v621 = vpop.f32.mrf.mxu0
  %622 = vdwg.mxu0
  %v623 = vpack.c.bf16 %v372, %v369
  %v624 = vpack.c.bf16 %v380, %v377
  %v625 = vpack.c.bf16 %v388, %v385
  %v626 = vpack.c.bf16 %v396, %v393
  %v627 = vpack.c.bf16 %v404, %v401
  %v628 = vpack.c.bf16 %v412, %v409
  %v629 = vpack.c.bf16 %v420, %v417
  %v630 = vpack.c.bf16 %v428, %v425
  %v631 = vpack.c.bf16 %v436, %v433
  %v632 = vpack.c.bf16 %v444, %v441
  %v633 = vpack.c.bf16 %v452, %v449
  %v634 = vpack.c.bf16 %v460, %v457
  %v635 = vpack.c.bf16 %v468, %v465
  %v636 = vpack.c.bf16 %v476, %v473
  %v637 = vpack.c.bf16 %v484, %v481
  %v638 = vpack.c.bf16 %v492, %v489
  %v639 = vpack.c.bf16 %v500, %v497
  %v640 = vpack.c.bf16 %v508, %v505
  %v641 = vpack.c.bf16 %v516, %v513
  %v642 = vpack.c.bf16 %v524, %v521
  %v643 = vpack.c.bf16 %v532, %v529
  %v644 = vpack.c.bf16 %v540, %v537
  %v645 = vpack.c.bf16 %v548, %v545
  %v646 = vpack.c.bf16 %v556, %v553
  %v647 = vpack.c.bf16 %v564, %v561
  %v648 = vpack.c.bf16 %v572, %v569
  %v649 = vpack.c.bf16 %v580, %v577
  %v650 = vpack.c.bf16 %v588, %v585
  %v651 = vpack.c.bf16 %v596, %v593
  %v652 = vpack.c.bf16 %v604, %v601
  %v653 = vpack.c.bf16 %v612, %v609
  %v654 = vpack.c.bf16 %v620, %v617
  %v687 = vunpack.c.l.b16 %v623
  %v688 = vunpack.c.h.b16 %v623
  %v689 = vunpack.c.l.b16 %v624
  %v690 = vunpack.c.h.b16 %v624
  %v691 = vunpack.c.l.b16 %v625
  %v692 = vunpack.c.h.b16 %v625
  %v693 = vunpack.c.l.b16 %v626
  %v694 = vunpack.c.h.b16 %v626
  %v695 = vunpack.c.l.b16 %v627
  %v696 = vunpack.c.h.b16 %v627
  %v697 = vunpack.c.l.b16 %v628
  %v698 = vunpack.c.h.b16 %v628
  %v699 = vunpack.c.l.b16 %v629
  %v700 = vunpack.c.h.b16 %v629
  %v701 = vunpack.c.l.b16 %v630
  %v702 = vunpack.c.h.b16 %v630
  %v703 = vunpack.c.l.b16 %v631
  %v704 = vunpack.c.h.b16 %v631
  %v705 = vunpack.c.l.b16 %v632
  %v706 = vunpack.c.h.b16 %v632
  %v707 = vunpack.c.l.b16 %v633
  %v708 = vunpack.c.h.b16 %v633
  %v709 = vunpack.c.l.b16 %v634
  %v710 = vunpack.c.h.b16 %v634
  %v711 = vunpack.c.l.b16 %v635
  %v712 = vunpack.c.h.b16 %v635
  %v713 = vunpack.c.l.b16 %v636
  %v714 = vunpack.c.h.b16 %v636
  %v715 = vunpack.c.l.b16 %v637
  %v716 = vunpack.c.h.b16 %v637
  %v717 = vunpack.c.l.b16 %v638
  %v718 = vunpack.c.h.b16 %v638
  %v719 = vunpack.c.l.b16 %v639
  %v720 = vunpack.c.h.b16 %v639
  %v721 = vunpack.c.l.b16 %v640
  %v722 = vunpack.c.h.b16 %v640
  %v723 = vunpack.c.l.b16 %v641
  %v724 = vunpack.c.h.b16 %v641
  %v725 = vunpack.c.l.b16 %v642
  %v726 = vunpack.c.h.b16 %v642
  %v727 = vunpack.c.l.b16 %v643
  %v728 = vunpack.c.h.b16 %v643
  %v729 = vunpack.c.l.b16 %v644
  %v730 = vunpack.c.h.b16 %v644
  %v731 = vunpack.c.l.b16 %v645
  %v732 = vunpack.c.h.b16 %v645
  %v733 = vunpack.c.l.b16 %v646
  %v734 = vunpack.c.h.b16 %v646
  %v735 = vunpack.c.l.b16 %v647
  %v736 = vunpack.c.h.b16 %v647
  %v737 = vunpack.c.l.b16 %v648
  %v738 = vunpack.c.h.b16 %v648
  %v739 = vunpack.c.l.b16 %v649
  %v740 = vunpack.c.h.b16 %v649
  %v741 = vunpack.c.l.b16 %v650
  %v742 = vunpack.c.h.b16 %v650
  %v743 = vunpack.c.l.b16 %v651
  %v744 = vunpack.c.h.b16 %v651
  %v745 = vunpack.c.l.b16 %v652
  %v746 = vunpack.c.h.b16 %v652
  %v747 = vunpack.c.l.b16 %v653
  %v748 = vunpack.c.h.b16 %v653
  %v749 = vunpack.c.l.b16 %v654
  %v750 = vunpack.c.h.b16 %v654
  %v751 = vpack.c.b16 %v687, %v687
  %v752 = vpack.c.b16 %v688, %v688
  %v753 = vpack.c.b16 %v689, %v689
  %v754 = vpack.c.b16 %v690, %v690
  %v755 = vpack.c.b16 %v691, %v691
  %v756 = vpack.c.b16 %v692, %v692
  %v757 = vpack.c.b16 %v693, %v693
  %v758 = vpack.c.b16 %v694, %v694
  %v759 = vpack.c.b16 %v695, %v695
  %v760 = vpack.c.b16 %v696, %v696
  %v761 = vpack.c.b16 %v697, %v697
  %v762 = vpack.c.b16 %v698, %v698
  %v763 = vpack.c.b16 %v699, %v699
  %v764 = vpack.c.b16 %v700, %v700
  %v765 = vpack.c.b16 %v701, %v701
  %v766 = vpack.c.b16 %v702, %v702
  %v767 = vpack.c.b16 %v703, %v703
  %v768 = vpack.c.b16 %v704, %v704
  %v769 = vpack.c.b16 %v705, %v705
  %v770 = vpack.c.b16 %v706, %v706
  %v771 = vpack.c.b16 %v707, %v707
  %v772 = vpack.c.b16 %v708, %v708
  %v773 = vpack.c.b16 %v709, %v709
  %v774 = vpack.c.b16 %v710, %v710
  %v775 = vpack.c.b16 %v711, %v711
  %v776 = vpack.c.b16 %v712, %v712
  %v777 = vpack.c.b16 %v713, %v713
  %v778 = vpack.c.b16 %v714, %v714
  %v779 = vpack.c.b16 %v715, %v715
  %v780 = vpack.c.b16 %v716, %v716
  %v781 = vpack.c.b16 %v717, %v717
  %v782 = vpack.c.b16 %v718, %v718
  %v783 = vpack.c.b16 %v719, %v719
  %v784 = vpack.c.b16 %v720, %v720
  %v785 = vpack.c.b16 %v721, %v721
  %v786 = vpack.c.b16 %v722, %v722
  %v787 = vpack.c.b16 %v723, %v723
  %v788 = vpack.c.b16 %v724, %v724
  %v789 = vpack.c.b16 %v725, %v725
  %v790 = vpack.c.b16 %v726, %v726
  %v791 = vpack.c.b16 %v727, %v727
  %v792 = vpack.c.b16 %v728, %v728
  %v793 = vpack.c.b16 %v729, %v729
  %v794 = vpack.c.b16 %v730, %v730
  %v795 = vpack.c.b16 %v731, %v731
  %v796 = vpack.c.b16 %v732, %v732
  %v797 = vpack.c.b16 %v733, %v733
  %v798 = vpack.c.b16 %v734, %v734
  %v799 = vpack.c.b16 %v735, %v735
  %v800 = vpack.c.b16 %v736, %v736
  %v801 = vpack.c.b16 %v737, %v737
  %v802 = vpack.c.b16 %v738, %v738
  %v803 = vpack.c.b16 %v739, %v739
  %v804 = vpack.c.b16 %v740, %v740
  %v805 = vpack.c.b16 %v741, %v741
  %v806 = vpack.c.b16 %v742, %v742
  %v807 = vpack.c.b16 %v743, %v743
  %v808 = vpack.c.b16 %v744, %v744
  %v809 = vpack.c.b16 %v745, %v745
  %v810 = vpack.c.b16 %v746, %v746
  %v811 = vpack.c.b16 %v747, %v747
  %v812 = vpack.c.b16 %v748, %v748
  %v813 = vpack.c.b16 %v749, %v749
  %v814 = vpack.c.b16 %v750, %v750
  %879 = vst [vmem:[%s2] sm:$0xf] %v751
  %880 = vst [vmem:[%s2 + $0x4] sm:$0xf] %v752
  %881 = vst [vmem:[%s2 + $0x8] sm:$0xf] %v753
  %882 = vst [vmem:[%s2 + $0xc] sm:$0xf] %v754
  %883 = vst [vmem:[%s2 + $0x10] sm:$0xf] %v755
  %884 = vst [vmem:[%s2 + $0x14] sm:$0xf] %v756
  %885 = vst [vmem:[%s2 + $0x18] sm:$0xf] %v757
  %886 = vst [vmem:[%s2 + $0x1c] sm:$0xf] %v758
  %887 = vst [vmem:[%s2 + $0x20] sm:$0xf] %v759
  %888 = vst [vmem:[%s2 + $0x24] sm:$0xf] %v760
  %889 = vst [vmem:[%s2 + $0x28] sm:$0xf] %v761
  %890 = vst [vmem:[%s2 + $0x2c] sm:$0xf] %v762
  %891 = vst [vmem:[%s2 + $0x30] sm:$0xf] %v763
  %892 = vst [vmem:[%s2 + $0x34] sm:$0xf] %v764
  %893 = vst [vmem:[%s2 + $0x38] sm:$0xf] %v765
  %894 = vst [vmem:[%s2 + $0x3c] sm:$0xf] %v766
  %895 = vst [vmem:[%s2 + $0x40] sm:$0xf] %v767
  %896 = vst [vmem:[%s2 + $0x44] sm:$0xf] %v768
  %897 = vst [vmem:[%s2 + $0x48] sm:$0xf] %v769
  %898 = vst [vmem:[%s2 + $0x4c] sm:$0xf] %v770
  %899 = vst [vmem:[%s2 + $0x50] sm:$0xf] %v771
  %900 = vst [vmem:[%s2 + $0x54] sm:$0xf] %v772
  %901 = vst [vmem:[%s2 + $0x58] sm:$0xf] %v773
  %902 = vst [vmem:[%s2 + $0x5c] sm:$0xf] %v774
  %903 = vst [vmem:[%s2 + $0x60] sm:$0xf] %v775
  %904 = vst [vmem:[%s2 + $0x64] sm:$0xf] %v776
  %905 = vst [vmem:[%s2 + $0x68] sm:$0xf] %v777
  %906 = vst [vmem:[%s2 + $0x6c] sm:$0xf] %v778
  %907 = vst [vmem:[%s2 + $0x70] sm:$0xf] %v779
  %908 = vst [vmem:[%s2 + $0x74] sm:$0xf] %v780
  %909 = vst [vmem:[%s2 + $0x78] sm:$0xf] %v781
  %910 = vst [vmem:[%s2 + $0x7c] sm:$0xf] %v782
  %911 = vst [vmem:[%s2 + $0x80] sm:$0xf] %v783
  %912 = vst [vmem:[%s2 + $0x84] sm:$0xf] %v784
  %913 = vst [vmem:[%s2 + $0x88] sm:$0xf] %v785
  %914 = vst [vmem:[%s2 + $0x8c] sm:$0xf] %v786
  %915 = vst [vmem:[%s2 + $0x90] sm:$0xf] %v787
  %916 = vst [vmem:[%s2 + $0x94] sm:$0xf] %v788
  %917 = vst [vmem:[%s2 + $0x98] sm:$0xf] %v789
  %918 = vst [vmem:[%s2 + $0x9c] sm:$0xf] %v790
  %919 = vst [vmem:[%s2 + $0xa0] sm:$0xf] %v791
  %920 = vst [vmem:[%s2 + $0xa4] sm:$0xf] %v792
  %921 = vst [vmem:[%s2 + $0xa8] sm:$0xf] %v793
  %922 = vst [vmem:[%s2 + $0xac] sm:$0xf] %v794
  %923 = vst [vmem:[%s2 + $0xb0] sm:$0xf] %v795
  %924 = vst [vmem:[%s2 + $0xb4] sm:$0xf] %v796
  %925 = vst [vmem:[%s2 + $0xb8] sm:$0xf] %v797
  %926 = vst [vmem:[%s2 + $0xbc] sm:$0xf] %v798
  %927 = vst [vmem:[%s2 + $0xc0] sm:$0xf] %v799
  %928 = vst [vmem:[%s2 + $0xc4] sm:$0xf] %v800
  %929 = vst [vmem:[%s2 + $0xc8] sm:$0xf] %v801
  %930 = vst [vmem:[%s2 + $0xcc] sm:$0xf] %v802
  %931 = vst [vmem:[%s2 + $0xd0] sm:$0xf] %v803
  %932 = vst [vmem:[%s2 + $0xd4] sm:$0xf] %v804
  %933 = vst [vmem:[%s2 + $0xd8] sm:$0xf] %v805
  %934 = vst [vmem:[%s2 + $0xdc] sm:$0xf] %v806
  %935 = vst [vmem:[%s2 + $0xe0] sm:$0xf] %v807
  %936 = vst [vmem:[%s2 + $0xe4] sm:$0xf] %v808
  %937 = vst [vmem:[%s2 + $0xe8] sm:$0xf] %v809
  %938 = vst [vmem:[%s2 + $0xec] sm:$0xf] %v810
  %939 = vst [vmem:[%s2 + $0xf0] sm:$0xf] %v811
  %940 = vst [vmem:[%s2 + $0xf4] sm:$0xf] %v812
  %941 = vst [vmem:[%s2 + $0xf8] sm:$0xf] %v813
  %942 = vst [vmem:[%s2 + $0xfc] sm:$0xf] %v814
  %v943 = vadd.f32 %v369, %v372
  %v944 = vadd.f32 %v943, %v377
  %v945 = vadd.f32 %v944, %v380
  %v946 = vadd.f32 %v945, %v385
  %v947 = vadd.f32 %v946, %v388
  %v948 = vadd.f32 %v947, %v393
  %v949 = vadd.f32 %v948, %v396
  %v950 = vadd.f32 %v949, %v401
  %v951 = vadd.f32 %v950, %v404
  %v952 = vadd.f32 %v951, %v409
  %v953 = vadd.f32 %v952, %v412
  %v954 = vadd.f32 %v953, %v417
  %v955 = vadd.f32 %v954, %v420
  %v956 = vadd.f32 %v955, %v425
  %v957 = vadd.f32 %v956, %v428
  %v958 = vadd.f32 %v957, %v433
  %v959 = vadd.f32 %v958, %v436
  %v960 = vadd.f32 %v959, %v441
  %v961 = vadd.f32 %v960, %v444
  %v962 = vadd.f32 %v961, %v449
  %v963 = vadd.f32 %v962, %v452
  %v964 = vadd.f32 %v963, %v457
  %v965 = vadd.f32 %v964, %v460
  %v966 = vadd.f32 %v965, %v465
  %v967 = vadd.f32 %v966, %v468
  %v968 = vadd.f32 %v967, %v473
  %v969 = vadd.f32 %v968, %v476
  %v970 = vadd.f32 %v969, %v481
  %v971 = vadd.f32 %v970, %v484
  %v972 = vadd.f32 %v971, %v489
  %v973 = vadd.f32 %v972, %v492
  %v974 = vadd.f32 %v973, %v497
  %v975 = vadd.f32 %v974, %v500
  %v976 = vadd.f32 %v975, %v505
  %v977 = vadd.f32 %v976, %v508
  %v978 = vadd.f32 %v977, %v513
  %v979 = vadd.f32 %v978, %v516
  %v980 = vadd.f32 %v979, %v521
  %v981 = vadd.f32 %v980, %v524
  %v982 = vadd.f32 %v981, %v529
  %v983 = vadd.f32 %v982, %v532
  %v984 = vadd.f32 %v983, %v537
  %v985 = vadd.f32 %v984, %v540
  %v986 = vadd.f32 %v985, %v545
  %v987 = vadd.f32 %v986, %v548
  %v988 = vadd.f32 %v987, %v553
  %v989 = vadd.f32 %v988, %v556
  %v990 = vadd.f32 %v989, %v561
  %v991 = vadd.f32 %v990, %v564
  %v992 = vadd.f32 %v991, %v569
  %v993 = vadd.f32 %v992, %v572
  %v994 = vadd.f32 %v993, %v577
  %v995 = vadd.f32 %v994, %v580
  %v996 = vadd.f32 %v995, %v585
  %v997 = vadd.f32 %v996, %v588
  %v998 = vadd.f32 %v997, %v593
  %v999 = vadd.f32 %v998, %v596
  %v1000 = vadd.f32 %v999, %v601
  %v1001 = vadd.f32 %v1000, %v604
  %v1002 = vadd.f32 %v1001, %v609
  %v1003 = vadd.f32 %v1002, %v612
  %v1004 = vadd.f32 %v1003, %v617
  %v1005 = vadd.f32 %v1004, %v620
  %v1006 = vrot.slane %v1005, 4
  %v1007 = vadd.f32 %v1005, %v1006
  %v1008 = vrot.slane %v1007, 2
  %v1009 = vadd.f32 %v1007, %v1008
  %v1010 = vrot.slane %v1009, 1
  %v1011 = vadd.f32 %v1009, %v1010
  %v1012 = vmul.f32 %v369, %v369
  %v1013 = vmul.f32 %v372, %v372
  %v1014 = vmul.f32 %v377, %v377
  %v1015 = vmul.f32 %v380, %v380
  %v1016 = vmul.f32 %v385, %v385
  %v1017 = vmul.f32 %v388, %v388
  %v1018 = vmul.f32 %v393, %v393
  %v1019 = vmul.f32 %v396, %v396
  %v1020 = vmul.f32 %v401, %v401
  %v1021 = vmul.f32 %v404, %v404
  %v1022 = vmul.f32 %v409, %v409
  %v1023 = vmul.f32 %v412, %v412
  %v1024 = vmul.f32 %v417, %v417
  %v1025 = vmul.f32 %v420, %v420
  %v1026 = vmul.f32 %v425, %v425
  %v1027 = vmul.f32 %v428, %v428
  %v1028 = vmul.f32 %v433, %v433
  %v1029 = vmul.f32 %v436, %v436
  %v1030 = vmul.f32 %v441, %v441
  %v1031 = vmul.f32 %v444, %v444
  %v1032 = vmul.f32 %v449, %v449
  %v1033 = vmul.f32 %v452, %v452
  %v1034 = vmul.f32 %v457, %v457
  %v1035 = vmul.f32 %v460, %v460
  %v1036 = vmul.f32 %v465, %v465
  %v1037 = vmul.f32 %v468, %v468
  %v1038 = vmul.f32 %v473, %v473
  %v1039 = vmul.f32 %v476, %v476
  %v1040 = vmul.f32 %v481, %v481
  %v1041 = vmul.f32 %v484, %v484
  %v1042 = vmul.f32 %v489, %v489
  %v1043 = vmul.f32 %v492, %v492
  %v1044 = vmul.f32 %v497, %v497
  %v1045 = vmul.f32 %v500, %v500
  %v1046 = vmul.f32 %v505, %v505
  %v1047 = vmul.f32 %v508, %v508
  %v1048 = vmul.f32 %v513, %v513
  %v1049 = vmul.f32 %v516, %v516
  %v1050 = vmul.f32 %v521, %v521
  %v1051 = vmul.f32 %v524, %v524
  %v1052 = vmul.f32 %v529, %v529
  %v1053 = vmul.f32 %v532, %v532
  %v1054 = vmul.f32 %v537, %v537
  %v1055 = vmul.f32 %v540, %v540
  %v1056 = vmul.f32 %v545, %v545
  %v1057 = vmul.f32 %v548, %v548
  %v1058 = vmul.f32 %v553, %v553
  %v1059 = vmul.f32 %v556, %v556
  %v1060 = vmul.f32 %v561, %v561
  %v1061 = vmul.f32 %v564, %v564
  %v1062 = vmul.f32 %v569, %v569
  %v1063 = vmul.f32 %v572, %v572
  %v1064 = vmul.f32 %v577, %v577
  %v1065 = vmul.f32 %v580, %v580
  %v1066 = vmul.f32 %v585, %v585
  %v1067 = vmul.f32 %v588, %v588
  %v1068 = vmul.f32 %v593, %v593
  %v1069 = vmul.f32 %v596, %v596
  %v1070 = vmul.f32 %v601, %v601
  %v1071 = vmul.f32 %v604, %v604
  %v1072 = vmul.f32 %v609, %v609
  %v1073 = vmul.f32 %v612, %v612
  %v1074 = vmul.f32 %v617, %v617
  %v1075 = vmul.f32 %v620, %v620
  %v1076 = vadd.f32 %v1012, %v1013
  %v1077 = vadd.f32 %v1076, %v1014
  %v1078 = vadd.f32 %v1077, %v1015
  %v1079 = vadd.f32 %v1078, %v1016
  %v1080 = vadd.f32 %v1079, %v1017
  %v1081 = vadd.f32 %v1080, %v1018
  %v1082 = vadd.f32 %v1081, %v1019
  %v1083 = vadd.f32 %v1082, %v1020
  %v1084 = vadd.f32 %v1083, %v1021
  %v1085 = vadd.f32 %v1084, %v1022
  %v1086 = vadd.f32 %v1085, %v1023
  %v1087 = vadd.f32 %v1086, %v1024
  %v1088 = vadd.f32 %v1087, %v1025
  %v1089 = vadd.f32 %v1088, %v1026
  %v1090 = vadd.f32 %v1089, %v1027
  %v1091 = vadd.f32 %v1090, %v1028
  %v1092 = vadd.f32 %v1091, %v1029
  %v1093 = vadd.f32 %v1092, %v1030
  %v1094 = vadd.f32 %v1093, %v1031
  %v1095 = vadd.f32 %v1094, %v1032
  %v1096 = vadd.f32 %v1095, %v1033
  %v1097 = vadd.f32 %v1096, %v1034
  %v1098 = vadd.f32 %v1097, %v1035
  %v1099 = vadd.f32 %v1098, %v1036
  %v1100 = vadd.f32 %v1099, %v1037
  %v1101 = vadd.f32 %v1100, %v1038
  %v1102 = vadd.f32 %v1101, %v1039
  %v1103 = vadd.f32 %v1102, %v1040
  %v1104 = vadd.f32 %v1103, %v1041
  %v1105 = vadd.f32 %v1104, %v1042
  %v1106 = vadd.f32 %v1105, %v1043
  %v1107 = vadd.f32 %v1106, %v1044
  %v1108 = vadd.f32 %v1107, %v1045
  %v1109 = vadd.f32 %v1108, %v1046
  %v1110 = vadd.f32 %v1109, %v1047
  %v1111 = vadd.f32 %v1110, %v1048
  %v1112 = vadd.f32 %v1111, %v1049
  %v1113 = vadd.f32 %v1112, %v1050
  %v1114 = vadd.f32 %v1113, %v1051
  %v1115 = vadd.f32 %v1114, %v1052
  %v1116 = vadd.f32 %v1115, %v1053
  %v1117 = vadd.f32 %v1116, %v1054
  %v1118 = vadd.f32 %v1117, %v1055
  %v1119 = vadd.f32 %v1118, %v1056
  %v1120 = vadd.f32 %v1119, %v1057
  %v1121 = vadd.f32 %v1120, %v1058
  %v1122 = vadd.f32 %v1121, %v1059
  %v1123 = vadd.f32 %v1122, %v1060
  %v1124 = vadd.f32 %v1123, %v1061
  %v1125 = vadd.f32 %v1124, %v1062
  %v1126 = vadd.f32 %v1125, %v1063
  %v1127 = vadd.f32 %v1126, %v1064
  %v1128 = vadd.f32 %v1127, %v1065
  %v1129 = vadd.f32 %v1128, %v1066
  %v1130 = vadd.f32 %v1129, %v1067
  %v1131 = vadd.f32 %v1130, %v1068
  %v1132 = vadd.f32 %v1131, %v1069
  %v1133 = vadd.f32 %v1132, %v1070
  %v1134 = vadd.f32 %v1133, %v1071
  %v1135 = vadd.f32 %v1134, %v1072
  %v1136 = vadd.f32 %v1135, %v1073
  %v1137 = vadd.f32 %v1136, %v1074
  %v1138 = vadd.f32 %v1137, %v1075
  %v1139 = vrot.slane %v1138, 4
  %v1140 = vadd.f32 %v1138, %v1139
  %v1141 = vrot.slane %v1140, 2
  %v1142 = vadd.f32 %v1140, %v1141
  %v1143 = vrot.slane %v1142, 1
  %v1144 = vadd.f32 %v1142, %v1143
  %v1145 = vlaneseq
  %v1146 = vshrl.u32 %v1145, 7
  %vm1147 = vcmp.eq.s32.totalorder %v1146, 0
  %vm1148 = vcmp.eq.s32.totalorder %v1146, 1
  %v1149 = vsel %vm1148, %v1144, 0.0
  %v1150 = vsel %vm1147, %v1011, %v1149
  %1151 = vst [vmem:[%s3] sm:$0xff] %v1150
  // Predicated region
  $region10: #{residual_module_forward.5} parent=0 // pred_check
    _
  $region11: #{residual_module_forward.5} parent=0 // pred_check_branch
    %1153 = sbr.rel (0) target = $region13
  $region12: #{residual_module_forward.5} parent=0 // pred_region
    _
  $region13: #{residual_module_forward.5} parent=0 // pred_fallthru
    _
  // Predicated region
  $region14: #{residual_module_forward.5} parent=0 // pred_check
    _
  $region15: #{residual_module_forward.5} parent=0 // pred_check_branch
    %1155 = sbr.rel (0) target = $region17
  $region16: #{residual_module_forward.5} parent=0 // pred_region
    _
  $region17: #{residual_module_forward.5} parent=0 // pred_fallthru
    _
  // Predicated region
  $region18: #{residual_module_forward.5} parent=0 // pred_check
    _
  $region19: #{residual_module_forward.5} parent=0 // pred_check_branch
    %1157 = sbr.rel (0) target = $region21
  $region20: #{residual_module_forward.5} parent=0 // pred_region
    _
  $region21: #{residual_module_forward.5} parent=0 // pred_fallthru
    _
  // Predicated region
  $region22: #{residual_module_forward.5} parent=0 // pred_check
    _
  $region23: #{residual_module_forward.5} parent=0 // pred_check_branch
    %1159 = sbr.rel (0) target = $region25
  $region24: #{residual_module_forward.5} parent=0 // pred_region
    _
  $region25: #{residual_module_forward.5} parent=0 // pred_fallthru
    _

// kernel: residual_module_forward.9
$region0: #{residual_module_forward.9}
  #allocation0 [shape = 'u32[]', space=smem, size = 0x4, offset = 0x4, fixed_abs, tag = 'smem constant byte address 0x4 - core index']
  #allocation1 [shape = 'u32[144,128]{1,0:T(1,128)}', space=vmem, size = 0x12000, scoped, tag = 'internal scratch']
  %s0 = inlined_call_operand.vmem [shape: bf16[512,128], index: 0, kind: input, shape index: {}]
  %s1 = inlined_call_operand.vmem [shape: f32[1,128], index: 1, kind: input, shape index: {}]
  %s2 = inlined_call_operand.vmem [shape: f32[1,128], index: 2, kind: input, shape index: {}]
  %s3 = inlined_call_operand.vmem [shape: bf16[512,128], index: 3, kind: input, shape index: {}]
  %s4 = inlined_call_operand.vmem [shape: f32[1,128], index: 4, kind: input, shape index: {}]
  %s5 = inlined_call_operand.vmem [shape: f32[1,128], index: 5, kind: input, shape index: {}]
  %s6 = inlined_call_operand.vmem [shape: f32[512,128], index: 6, kind: output, shape index: {}]
  %s7 = sld [smem:[#allocation0]]
  $region34: #{residual_module_forward.9} parent=0
    _
  %s9 = ssub.s32 1, %s7
  %s10 = scalar_select 0, %s9, %s7
  // Predicated region
  $region2: #{residual_module_forward.9} parent=0 // pred_check
    _
  $region3: #{residual_module_forward.9} parent=0 // pred_check_branch
    %12 = sbr.rel (0) target = $region5
  $region4: #{residual_module_forward.9} parent=0 // pred_region
    _
  $region5: #{residual_module_forward.9} parent=0 // pred_fallthru
    _
  // Predicated region
  $region6: #{residual_module_forward.9} parent=0 // pred_check
    _
  $region7: #{residual_module_forward.9} parent=0 // pred_check_branch
    %14 = sbr.rel (0) target = $region9
  $region8: #{residual_module_forward.9} parent=0 // pred_region
    _
  $region9: #{residual_module_forward.9} parent=0 // pred_fallthru
    _
  // Predicated region
  $region10: #{residual_module_forward.9} parent=0 // pred_check
    _
  $region11: #{residual_module_forward.9} parent=0 // pred_check_branch
    %16 = sbr.rel (0) target = $region13
  $region12: #{residual_module_forward.9} parent=0 // pred_region
    _
  $region13: #{residual_module_forward.9} parent=0 // pred_fallthru
    _
  // Predicated region
  $region14: #{residual_module_forward.9} parent=0 // pred_check
    _
  $region15: #{residual_module_forward.9} parent=0 // pred_check_branch
    %18 = sbr.rel (0) target = $region17
  $region16: #{residual_module_forward.9} parent=0 // pred_region
    _
  $region17: #{residual_module_forward.9} parent=0 // pred_fallthru
    _
  // Predicated region
  $region18: #{residual_module_forward.9} parent=0 // pred_check
    _
  $region19: #{residual_module_forward.9} parent=0 // pred_check_branch
    %20 = sbr.rel (0) target = $region21
  $region20: #{residual_module_forward.9} parent=0 // pred_region
    _
  $region21: #{residual_module_forward.9} parent=0 // pred_fallthru
    _
  // Predicated region
  $region22: #{residual_module_forward.9} parent=0 // pred_check
    _
  $region23: #{residual_module_forward.9} parent=0 // pred_check_branch
    %22 = sbr.rel (0) target = $region25
  $region24: #{residual_module_forward.9} parent=0 // pred_region
    _
  $region25: #{residual_module_forward.9} parent=0 // pred_fallthru
    _
  %v23 = vld [vmem:[%s0] sm:$0xf]
  %v24 = vld [vmem:[%s0 + $0x4] sm:$0xf]
  %v25 = vld [vmem:[%s0 + $0x8] sm:$0xf]
  %v26 = vld [vmem:[%s0 + $0xc] sm:$0xf]
  %v27 = vld [vmem:[%s0 + $0x10] sm:$0xf]
  %v28 = vld [vmem:[%s0 + $0x14] sm:$0xf]
  %v29 = vld [vmem:[%s0 + $0x18] sm:$0xf]
  %v30 = vld [vmem:[%s0 + $0x1c] sm:$0xf]
  %v31 = vld [vmem:[%s0 + $0x20] sm:$0xf]
  %v32 = vld [vmem:[%s0 + $0x24] sm:$0xf]
  %v33 = vld [vmem:[%s0 + $0x28] sm:$0xf]
  %v34 = vld [vmem:[%s0 + $0x2c] sm:$0xf]
  %v35 = vld [vmem:[%s0 + $0x30] sm:$0xf]
  %v36 = vld [vmem:[%s0 + $0x34] sm:$0xf]
  %v37 = vld [vmem:[%s0 + $0x38] sm:$0xf]
  %v38 = vld [vmem:[%s0 + $0x3c] sm:$0xf]
  %v39 = vld [vmem:[%s0 + $0x40] sm:$0xf]
  %v40 = vld [vmem:[%s0 + $0x44] sm:$0xf]
  %v41 = vld [vmem:[%s0 + $0x48] sm:$0xf]
  %v42 = vld [vmem:[%s0 + $0x4c] sm:$0xf]
  %v43 = vld [vmem:[%s0 + $0x50] sm:$0xf]
  %v44 = vld [vmem:[%s0 + $0x54] sm:$0xf]
  %v45 = vld [vmem:[%s0 + $0x58] sm:$0xf]
  %v46 = vld [vmem:[%s0 + $0x5c] sm:$0xf]
  %v47 = vld [vmem:[%s0 + $0x60] sm:$0xf]
  %v48 = vld [vmem:[%s0 + $0x64] sm:$0xf]
  %v49 = vld [vmem:[%s0 + $0x68] sm:$0xf]
  %v50 = vld [vmem:[%s0 + $0x6c] sm:$0xf]
  %v51 = vld [vmem:[%s0 + $0x70] sm:$0xf]
  %v52 = vld [vmem:[%s0 + $0x74] sm:$0xf]
  %v53 = vld [vmem:[%s0 + $0x78] sm:$0xf]
  %v54 = vld [vmem:[%s0 + $0x7c] sm:$0xf]
  %v55 = vld [vmem:[%s0 + $0x80] sm:$0xf]
  %v56 = vld [vmem:[%s0 + $0x84] sm:$0xf]
  %v57 = vld [vmem:[%s0 + $0x88] sm:$0xf]
  %v58 = vld [vmem:[%s0 + $0x8c] sm:$0xf]
  %v59 = vld [vmem:[%s0 + $0x90] sm:$0xf]
  %v60 = vld [vmem:[%s0 + $0x94] sm:$0xf]
  %v61 = vld [vmem:[%s0 + $0x98] sm:$0xf]
  %v62 = vld [vmem:[%s0 + $0x9c] sm:$0xf]
  %v63 = vld [vmem:[%s0 + $0xa0] sm:$0xf]
  %v64 = vld [vmem:[%s0 + $0xa4] sm:$0xf]
  %v65 = vld [vmem:[%s0 + $0xa8] sm:$0xf]
  %v66 = vld [vmem:[%s0 + $0xac] sm:$0xf]
  %v67 = vld [vmem:[%s0 + $0xb0] sm:$0xf]
  %v68 = vld [vmem:[%s0 + $0xb4] sm:$0xf]
  %v69 = vld [vmem:[%s0 + $0xb8] sm:$0xf]
  %v70 = vld [vmem:[%s0 + $0xbc] sm:$0xf]
  %v71 = vld [vmem:[%s0 + $0xc0] sm:$0xf]
  %v72 = vld [vmem:[%s0 + $0xc4] sm:$0xf]
  %v73 = vld [vmem:[%s0 + $0xc8] sm:$0xf]
  %v74 = vld [vmem:[%s0 + $0xcc] sm:$0xf]
  %v75 = vld [vmem:[%s0 + $0xd0] sm:$0xf]
  %v76 = vld [vmem:[%s0 + $0xd4] sm:$0xf]
  %v77 = vld [vmem:[%s0 + $0xd8] sm:$0xf]
  %v78 = vld [vmem:[%s0 + $0xdc] sm:$0xf]
  %v79 = vld [vmem:[%s0 + $0xe0] sm:$0xf]
  %v80 = vld [vmem:[%s0 + $0xe4] sm:$0xf]
  %v81 = vld [vmem:[%s0 + $0xe8] sm:$0xf]
  %v82 = vld [vmem:[%s0 + $0xec] sm:$0xf]
  %v83 = vld [vmem:[%s0 + $0xf0] sm:$0xf]
  %v84 = vld [vmem:[%s0 + $0xf4] sm:$0xf]
  %v85 = vld [vmem:[%s0 + $0xf8] sm:$0xf]
  %v86 = vld [vmem:[%s0 + $0xfc] sm:$0xf]
  %v87 = vunpack.c.l.bf16 %v23
  %v88 = vunpack.c.l.bf16 %v24
  %v89 = vunpack.c.l.bf16 %v25
  %v90 = vunpack.c.l.bf16 %v26
  %v91 = vunpack.c.l.bf16 %v27
  %v92 = vunpack.c.l.bf16 %v28
  %v93 = vunpack.c.l.bf16 %v29
  %v94 = vunpack.c.l.bf16 %v30
  %v95 = vunpack.c.l.bf16 %v31
  %v96 = vunpack.c.l.bf16 %v32
  %v97 = vunpack.c.l.bf16 %v33
  %v98 = vunpack.c.l.bf16 %v34
  %v99 = vunpack.c.l.bf16 %v35
  %v100 = vunpack.c.l.bf16 %v36
  %v101 = vunpack.c.l.bf16 %v37
  %v102 = vunpack.c.l.bf16 %v38
  %v103 = vunpack.c.l.bf16 %v39
  %v104 = vunpack.c.l.bf16 %v40
  %v105 = vunpack.c.l.bf16 %v41
  %v106 = vunpack.c.l.bf16 %v42
  %v107 = vunpack.c.l.bf16 %v43
  %v108 = vunpack.c.l.bf16 %v44
  %v109 = vunpack.c.l.bf16 %v45
  %v110 = vunpack.c.l.bf16 %v46
  %v111 = vunpack.c.l.bf16 %v47
  %v112 = vunpack.c.l.bf16 %v48
  %v113 = vunpack.c.l.bf16 %v49
  %v114 = vunpack.c.l.bf16 %v50
  %v115 = vunpack.c.l.bf16 %v51
  %v116 = vunpack.c.l.bf16 %v52
  %v117 = vunpack.c.l.bf16 %v53
  %v118 = vunpack.c.l.bf16 %v54
  %v119 = vunpack.c.l.bf16 %v55
  %v120 = vunpack.c.l.bf16 %v56
  %v121 = vunpack.c.l.bf16 %v57
  %v122 = vunpack.c.l.bf16 %v58
  %v123 = vunpack.c.l.bf16 %v59
  %v124 = vunpack.c.l.bf16 %v60
  %v125 = vunpack.c.l.bf16 %v61
  %v126 = vunpack.c.l.bf16 %v62
  %v127 = vunpack.c.l.bf16 %v63
  %v128 = vunpack.c.l.bf16 %v64
  %v129 = vunpack.c.l.bf16 %v65
  %v130 = vunpack.c.l.bf16 %v66
  %v131 = vunpack.c.l.bf16 %v67
  %v132 = vunpack.c.l.bf16 %v68
  %v133 = vunpack.c.l.bf16 %v69
  %v134 = vunpack.c.l.bf16 %v70
  %v135 = vunpack.c.l.bf16 %v71
  %v136 = vunpack.c.l.bf16 %v72
  %v137 = vunpack.c.l.bf16 %v73
  %v138 = vunpack.c.l.bf16 %v74
  %v139 = vunpack.c.l.bf16 %v75
  %v140 = vunpack.c.l.bf16 %v76
  %v141 = vunpack.c.l.bf16 %v77
  %v142 = vunpack.c.l.bf16 %v78
  %v143 = vunpack.c.l.bf16 %v79
  %v144 = vunpack.c.l.bf16 %v80
  %v145 = vunpack.c.l.bf16 %v81
  %v146 = vunpack.c.l.bf16 %v82
  %v147 = vunpack.c.l.bf16 %v83
  %v148 = vunpack.c.l.bf16 %v84
  %v149 = vunpack.c.l.bf16 %v85
  %v150 = vunpack.c.l.bf16 %v86
  %v151 = vld [vmem:[%s1] sm:$0x1]
  %v153 = vlaneseq
  %v154 = vshrl.u32 %v153, 7
  %v155 = vsub.s32 0, %v154
  %v156 = vrot.slane %v151, %v155
  %v158 = vmul.f32 %v87, %v156
  %v159 = vmul.f32 %v88, %v156
  %v160 = vmul.f32 %v89, %v156
  %v161 = vmul.f32 %v90, %v156
  %v162 = vmul.f32 %v91, %v156
  %v163 = vmul.f32 %v92, %v156
  %v164 = vmul.f32 %v93, %v156
  %v165 = vmul.f32 %v94, %v156
  %v166 = vmul.f32 %v95, %v156
  %v167 = vmul.f32 %v96, %v156
  %v168 = vmul.f32 %v97, %v156
  %v169 = vmul.f32 %v98, %v156
  %v170 = vmul.f32 %v99, %v156
  %v171 = vmul.f32 %v100, %v156
  %v172 = vmul.f32 %v101, %v156
  %v173 = vmul.f32 %v102, %v156
  %v174 = vmul.f32 %v103, %v156
  %v175 = vmul.f32 %v104, %v156
  %v176 = vmul.f32 %v105, %v156
  %v177 = vmul.f32 %v106, %v156
  %v178 = vmul.f32 %v107, %v156
  %v179 = vmul.f32 %v108, %v156
  %v180 = vmul.f32 %v109, %v156
  %v181 = vmul.f32 %v110, %v156
  %v182 = vmul.f32 %v111, %v156
  %v183 = vmul.f32 %v112, %v156
  %v184 = vmul.f32 %v113, %v156
  %v185 = vmul.f32 %v114, %v156
  %v186 = vmul.f32 %v115, %v156
  %v187 = vmul.f32 %v116, %v156
  %v188 = vmul.f32 %v117, %v156
  %v189 = vmul.f32 %v118, %v156
  %v190 = vmul.f32 %v119, %v156
  %v191 = vmul.f32 %v120, %v156
  %v192 = vmul.f32 %v121, %v156
  %v193 = vmul.f32 %v122, %v156
  %v194 = vmul.f32 %v123, %v156
  %v195 = vmul.f32 %v124, %v156
  %v196 = vmul.f32 %v125, %v156
  %v197 = vmul.f32 %v126, %v156
  %v198 = vmul.f32 %v127, %v156
  %v199 = vmul.f32 %v128, %v156
  %v200 = vmul.f32 %v129, %v156
  %v201 = vmul.f32 %v130, %v156
  %v202 = vmul.f32 %v131, %v156
  %v203 = vmul.f32 %v132, %v156
  %v204 = vmul.f32 %v133, %v156
  %v205 = vmul.f32 %v134, %v156
  %v206 = vmul.f32 %v135, %v156
  %v207 = vmul.f32 %v136, %v156
  %v208 = vmul.f32 %v137, %v156
  %v209 = vmul.f32 %v138, %v156
  %v210 = vmul.f32 %v139, %v156
  %v211 = vmul.f32 %v140, %v156
  %v212 = vmul.f32 %v141, %v156
  %v213 = vmul.f32 %v142, %v156
  %v214 = vmul.f32 %v143, %v156
  %v215 = vmul.f32 %v144, %v156
  %v216 = vmul.f32 %v145, %v156
  %v217 = vmul.f32 %v146, %v156
  %v218 = vmul.f32 %v147, %v156
  %v219 = vmul.f32 %v148, %v156
  %v220 = vmul.f32 %v149, %v156
  %v221 = vmul.f32 %v150, %v156
  %v222 = vld [vmem:[%s2] sm:$0x1]
  %v224 = vlaneseq
  %v225 = vshrl.u32 %v224, 7
  %v226 = vsub.s32 0, %v225
  %v227 = vrot.slane %v222, %v226
  %v229 = vadd.f32 %v158, %v227
  %v230 = vadd.f32 %v159, %v227
  %v231 = vadd.f32 %v160, %v227
  %v232 = vadd.f32 %v161, %v227
  %v233 = vadd.f32 %v162, %v227
  %v234 = vadd.f32 %v163, %v227
  %v235 = vadd.f32 %v164, %v227
  %v236 = vadd.f32 %v165, %v227
  %v237 = vadd.f32 %v166, %v227
  %v238 = vadd.f32 %v167, %v227
  %v239 = vadd.f32 %v168, %v227
  %v240 = vadd.f32 %v169, %v227
  %v241 = vadd.f32 %v170, %v227
  %v242 = vadd.f32 %v171, %v227
  %v243 = vadd.f32 %v172, %v227
  %v244 = vadd.f32 %v173, %v227
  %v245 = vadd.f32 %v174, %v227
  %v246 = vadd.f32 %v175, %v227
  %v247 = vadd.f32 %v176, %v227
  %v248 = vadd.f32 %v177, %v227
  %v249 = vadd.f32 %v178, %v227
  %v250 = vadd.f32 %v179, %v227
  %v251 = vadd.f32 %v180, %v227
  %v252 = vadd.f32 %v181, %v227
  %v253 = vadd.f32 %v182, %v227
  %v254 = vadd.f32 %v183, %v227
  %v255 = vadd.f32 %v184, %v227
  %v256 = vadd.f32 %v185, %v227
  %v257 = vadd.f32 %v186, %v227
  %v258 = vadd.f32 %v187, %v227
  %v259 = vadd.f32 %v188, %v227
  %v260 = vadd.f32 %v189, %v227
  %v261 = vadd.f32 %v190, %v227
  %v262 = vadd.f32 %v191, %v227
  %v263 = vadd.f32 %v192, %v227
  %v264 = vadd.f32 %v193, %v227
  %v265 = vadd.f32 %v194, %v227
  %v266 = vadd.f32 %v195, %v227
  %v267 = vadd.f32 %v196, %v227
  %v268 = vadd.f32 %v197, %v227
  %v269 = vadd.f32 %v198, %v227
  %v270 = vadd.f32 %v199, %v227
  %v271 = vadd.f32 %v200, %v227
  %v272 = vadd.f32 %v201, %v227
  %v273 = vadd.f32 %v202, %v227
  %v274 = vadd.f32 %v203, %v227
  %v275 = vadd.f32 %v204, %v227
  %v276 = vadd.f32 %v205, %v227
  %v277 = vadd.f32 %v206, %v227
  %v278 = vadd.f32 %v207, %v227
  %v279 = vadd.f32 %v208, %v227
  %v280 = vadd.f32 %v209, %v227
  %v281 = vadd.f32 %v210, %v227
  %v282 = vadd.f32 %v211, %v227
  %v283 = vadd.f32 %v212, %v227
  %v284 = vadd.f32 %v213, %v227
  %v285 = vadd.f32 %v214, %v227
  %v286 = vadd.f32 %v215, %v227
  %v287 = vadd.f32 %v216, %v227
  %v288 = vadd.f32 %v217, %v227
  %v289 = vadd.f32 %v218, %v227
  %v290 = vadd.f32 %v219, %v227
  %v291 = vadd.f32 %v220, %v227
  %v292 = vadd.f32 %v221, %v227
  %v293 = vld [vmem:[%s3] sm:$0xf]
  %v294 = vld [vmem:[%s3 + $0x4] sm:$0xf]
  %v295 = vld [vmem:[%s3 + $0x8] sm:$0xf]
  %v296 = vld [vmem:[%s3 + $0xc] sm:$0xf]
  %v297 = vld [vmem:[%s3 + $0x10] sm:$0xf]
  %v298 = vld [vmem:[%s3 + $0x14] sm:$0xf]
  %v299 = vld [vmem:[%s3 + $0x18] sm:$0xf]
  %v300 = vld [vmem:[%s3 + $0x1c] sm:$0xf]
  %v301 = vld [vmem:[%s3 + $0x20] sm:$0xf]
  %v302 = vld [vmem:[%s3 + $0x24] sm:$0xf]
  %v303 = vld [vmem:[%s3 + $0x28] sm:$0xf]
  %v304 = vld [vmem:[%s3 + $0x2c] sm:$0xf]
  %v305 = vld [vmem:[%s3 + $0x30] sm:$0xf]
  %v306 = vld [vmem:[%s3 + $0x34] sm:$0xf]
  %v307 = vld [vmem:[%s3 + $0x38] sm:$0xf]
  %v308 = vld [vmem:[%s3 + $0x3c] sm:$0xf]
  %v309 = vld [vmem:[%s3 + $0x40] sm:$0xf]
  %v310 = vld [vmem:[%s3 + $0x44] sm:$0xf]
  %v311 = vld [vmem:[%s3 + $0x48] sm:$0xf]
  %v312 = vld [vmem:[%s3 + $0x4c] sm:$0xf]
  %v313 = vld [vmem:[%s3 + $0x50] sm:$0xf]
  %v314 = vld [vmem:[%s3 + $0x54] sm:$0xf]
  %v315 = vld [vmem:[%s3 + $0x58] sm:$0xf]
  %v316 = vld [vmem:[%s3 + $0x5c] sm:$0xf]
  %v317 = vld [vmem:[%s3 + $0x60] sm:$0xf]
  %v318 = vld [vmem:[%s3 + $0x64] sm:$0xf]
  %v319 = vld [vmem:[%s3 + $0x68] sm:$0xf]
  %v320 = vld [vmem:[%s3 + $0x6c] sm:$0xf]
  %v321 = vld [vmem:[%s3 + $0x70] sm:$0xf]
  %v322 = vld [vmem:[%s3 + $0x74] sm:$0xf]
  %v323 = vld [vmem:[%s3 + $0x78] sm:$0xf]
  %v324 = vld [vmem:[%s3 + $0x7c] sm:$0xf]
  %v325 = vld [vmem:[%s3 + $0x80] sm:$0xf]
  %v326 = vld [vmem:[%s3 + $0x84] sm:$0xf]
  %v327 = vld [vmem:[%s3 + $0x88] sm:$0xf]
  %v328 = vld [vmem:[%s3 + $0x8c] sm:$0xf]
  %v329 = vld [vmem:[%s3 + $0x90] sm:$0xf]
  %v330 = vld [vmem:[%s3 + $0x94] sm:$0xf]
  %v331 = vld [vmem:[%s3 + $0x98] sm:$0xf]
  %v332 = vld [vmem:[%s3 + $0x9c] sm:$0xf]
  %v333 = vld [vmem:[%s3 + $0xa0] sm:$0xf]
  %v334 = vld [vmem:[%s3 + $0xa4] sm:$0xf]
  %v335 = vld [vmem:[%s3 + $0xa8] sm:$0xf]
  %v336 = vld [vmem:[%s3 + $0xac] sm:$0xf]
  %v337 = vld [vmem:[%s3 + $0xb0] sm:$0xf]
  %v338 = vld [vmem:[%s3 + $0xb4] sm:$0xf]
  %v339 = vld [vmem:[%s3 + $0xb8] sm:$0xf]
  %v340 = vld [vmem:[%s3 + $0xbc] sm:$0xf]
  %v341 = vld [vmem:[%s3 + $0xc0] sm:$0xf]
  %v342 = vld [vmem:[%s3 + $0xc4] sm:$0xf]
  %v343 = vld [vmem:[%s3 + $0xc8] sm:$0xf]
  %v344 = vld [vmem:[%s3 + $0xcc] sm:$0xf]
  %v345 = vld [vmem:[%s3 + $0xd0] sm:$0xf]
  %v346 = vld [vmem:[%s3 + $0xd4] sm:$0xf]
  %v347 = vld [vmem:[%s3 + $0xd8] sm:$0xf]
  %v348 = vld [vmem:[%s3 + $0xdc] sm:$0xf]
  %v349 = vld [vmem:[%s3 + $0xe0] sm:$0xf]
  %v350 = vld [vmem:[%s3 + $0xe4] sm:$0xf]
  %v351 = vld [vmem:[%s3 + $0xe8] sm:$0xf]
  %v352 = vld [vmem:[%s3 + $0xec] sm:$0xf]
  %v353 = vld [vmem:[%s3 + $0xf0] sm:$0xf]
  %v354 = vld [vmem:[%s3 + $0xf4] sm:$0xf]
  %v355 = vld [vmem:[%s3 + $0xf8] sm:$0xf]
  %v356 = vld [vmem:[%s3 + $0xfc] sm:$0xf]
  %v357 = vunpack.c.l.bf16 %v293
  %v358 = vunpack.c.l.bf16 %v294
  %v359 = vunpack.c.l.bf16 %v295
  %v360 = vunpack.c.l.bf16 %v296
  %v361 = vunpack.c.l.bf16 %v297
  %v362 = vunpack.c.l.bf16 %v298
  %v363 = vunpack.c.l.bf16 %v299
  %v364 = vunpack.c.l.bf16 %v300
  %v365 = vunpack.c.l.bf16 %v301
  %v366 = vunpack.c.l.bf16 %v302
  %v367 = vunpack.c.l.bf16 %v303
  %v368 = vunpack.c.l.bf16 %v304
  %v369 = vunpack.c.l.bf16 %v305
  %v370 = vunpack.c.l.bf16 %v306
  %v371 = vunpack.c.l.bf16 %v307
  %v372 = vunpack.c.l.bf16 %v308
  %v373 = vunpack.c.l.bf16 %v309
  %v374 = vunpack.c.l.bf16 %v310
  %v375 = vunpack.c.l.bf16 %v311
  %v376 = vunpack.c.l.bf16 %v312
  %v377 = vunpack.c.l.bf16 %v313
  %v378 = vunpack.c.l.bf16 %v314
  %v379 = vunpack.c.l.bf16 %v315
  %v380 = vunpack.c.l.bf16 %v316
  %v381 = vunpack.c.l.bf16 %v317
  %v382 = vunpack.c.l.bf16 %v318
  %v383 = vunpack.c.l.bf16 %v319
  %v384 = vunpack.c.l.bf16 %v320
  %v385 = vunpack.c.l.bf16 %v321
  %v386 = vunpack.c.l.bf16 %v322
  %v387 = vunpack.c.l.bf16 %v323
  %v388 = vunpack.c.l.bf16 %v324
  %v389 = vunpack.c.l.bf16 %v325
  %v390 = vunpack.c.l.bf16 %v326
  %v391 = vunpack.c.l.bf16 %v327
  %v392 = vunpack.c.l.bf16 %v328
  %v393 = vunpack.c.l.bf16 %v329
  %v394 = vunpack.c.l.bf16 %v330
  %v395 = vunpack.c.l.bf16 %v331
  %v396 = vunpack.c.l.bf16 %v332
  %v397 = vunpack.c.l.bf16 %v333
  %v398 = vunpack.c.l.bf16 %v334
  %v399 = vunpack.c.l.bf16 %v335
  %v400 = vunpack.c.l.bf16 %v336
  %v401 = vunpack.c.l.bf16 %v337
  %v402 = vunpack.c.l.bf16 %v338
  %v403 = vunpack.c.l.bf16 %v339
  %v404 = vunpack.c.l.bf16 %v340
  %v405 = vunpack.c.l.bf16 %v341
  %v406 = vunpack.c.l.bf16 %v342
  %v407 = vunpack.c.l.bf16 %v343
  %v408 = vunpack.c.l.bf16 %v344
  %v409 = vunpack.c.l.bf16 %v345
  %v410 = vunpack.c.l.bf16 %v346
  %v411 = vunpack.c.l.bf16 %v347
  %v412 = vunpack.c.l.bf16 %v348
  %v413 = vunpack.c.l.bf16 %v349
  %v414 = vunpack.c.l.bf16 %v350
  %v415 = vunpack.c.l.bf16 %v351
  %v416 = vunpack.c.l.bf16 %v352
  %v417 = vunpack.c.l.bf16 %v353
  %v418 = vunpack.c.l.bf16 %v354
  %v419 = vunpack.c.l.bf16 %v355
  %v420 = vunpack.c.l.bf16 %v356
  %v421 = vld [vmem:[%s4] sm:$0x1]
  %v423 = vlaneseq
  %v424 = vshrl.u32 %v423, 7
  %v425 = vsub.s32 0, %v424
  %v426 = vrot.slane %v421, %v425
  %v428 = vmul.f32 %v357, %v426
  %v429 = vmul.f32 %v358, %v426
  %v430 = vmul.f32 %v359, %v426
  %v431 = vmul.f32 %v360, %v426
  %v432 = vmul.f32 %v361, %v426
  %v433 = vmul.f32 %v362, %v426
  %v434 = vmul.f32 %v363, %v426
  %v435 = vmul.f32 %v364, %v426
  %v436 = vmul.f32 %v365, %v426
  %v437 = vmul.f32 %v366, %v426
  %v438 = vmul.f32 %v367, %v426
  %v439 = vmul.f32 %v368, %v426
  %v440 = vmul.f32 %v369, %v426
  %v441 = vmul.f32 %v370, %v426
  %v442 = vmul.f32 %v371, %v426
  %v443 = vmul.f32 %v372, %v426
  %v444 = vmul.f32 %v373, %v426
  %v445 = vmul.f32 %v374, %v426
  %v446 = vmul.f32 %v375, %v426
  %v447 = vmul.f32 %v376, %v426
  %v448 = vmul.f32 %v377, %v426
  %v449 = vmul.f32 %v378, %v426
  %v450 = vmul.f32 %v379, %v426
  %v451 = vmul.f32 %v380, %v426
  %v452 = vmul.f32 %v381, %v426
  %v453 = vmul.f32 %v382, %v426
  %v454 = vmul.f32 %v383, %v426
  %v455 = vmul.f32 %v384, %v426
  %v456 = vmul.f32 %v385, %v426
  %v457 = vmul.f32 %v386, %v426
  %v458 = vmul.f32 %v387, %v426
  %v459 = vmul.f32 %v388, %v426
  %v460 = vmul.f32 %v389, %v426
  %v461 = vmul.f32 %v390, %v426
  %v462 = vmul.f32 %v391, %v426
  %v463 = vmul.f32 %v392, %v426
  %v464 = vmul.f32 %v393, %v426
  %v465 = vmul.f32 %v394, %v426
  %v466 = vmul.f32 %v395, %v426
  %v467 = vmul.f32 %v396, %v426
  %v468 = vmul.f32 %v397, %v426
  %v469 = vmul.f32 %v398, %v426
  %v470 = vmul.f32 %v399, %v426
  %v471 = vmul.f32 %v400, %v426
  %v472 = vmul.f32 %v401, %v426
  %v473 = vmul.f32 %v402, %v426
  %v474 = vmul.f32 %v403, %v426
  %v475 = vmul.f32 %v404, %v426
  %v476 = vmul.f32 %v405, %v426
  %v477 = vmul.f32 %v406, %v426
  %v478 = vmul.f32 %v407, %v426
  %v479 = vmul.f32 %v408, %v426
  %v480 = vmul.f32 %v409, %v426
  %v481 = vmul.f32 %v410, %v426
  %v482 = vmul.f32 %v411, %v426
  %v483 = vmul.f32 %v412, %v426
  %v484 = vmul.f32 %v413, %v426
  %v485 = vmul.f32 %v414, %v426
  %v486 = vmul.f32 %v415, %v426
  %v487 = vmul.f32 %v416, %v426
  %v488 = vmul.f32 %v417, %v426
  %v489 = vmul.f32 %v418, %v426
  %v490 = vmul.f32 %v419, %v426
  %v491 = vmul.f32 %v420, %v426
  %v492 = vld [vmem:[%s5] sm:$0x1]
  %v494 = vlaneseq
  %v495 = vshrl.u32 %v494, 7
  %v496 = vsub.s32 0, %v495
  %v497 = vrot.slane %v492, %v496
  %v499 = vadd.f32 %v428, %v497
  %v500 = vadd.f32 %v429, %v497
  %v501 = vadd.f32 %v430, %v497
  %v502 = vadd.f32 %v431, %v497
  %v503 = vadd.f32 %v432, %v497
  %v504 = vadd.f32 %v433, %v497
  %v505 = vadd.f32 %v434, %v497
  %v506 = vadd.f32 %v435, %v497
  %v507 = vadd.f32 %v436, %v497
  %v508 = vadd.f32 %v437, %v497
  %v509 = vadd.f32 %v438, %v497
  %v510 = vadd.f32 %v439, %v497
  %v511 = vadd.f32 %v440, %v497
  %v512 = vadd.f32 %v441, %v497
  %v513 = vadd.f32 %v442, %v497
  %v514 = vadd.f32 %v443, %v497
  %v515 = vadd.f32 %v444, %v497
  %v516 = vadd.f32 %v445, %v497
  %v517 = vadd.f32 %v446, %v497
  %v518 = vadd.f32 %v447, %v497
  %v519 = vadd.f32 %v448, %v497
  %v520 = vadd.f32 %v449, %v497
  %v521 = vadd.f32 %v450, %v497
  %v522 = vadd.f32 %v451, %v497
  %v523 = vadd.f32 %v452, %v497
  %v524 = vadd.f32 %v453, %v497
  %v525 = vadd.f32 %v454, %v497
  %v526 = vadd.f32 %v455, %v497
  %v527 = vadd.f32 %v456, %v497
  %v528 = vadd.f32 %v457, %v497
  %v529 = vadd.f32 %v458, %v497
  %v530 = vadd.f32 %v459, %v497
  %v531 = vadd.f32 %v460, %v497
  %v532 = vadd.f32 %v461, %v497
  %v533 = vadd.f32 %v462, %v497
  %v534 = vadd.f32 %v463, %v497
  %v535 = vadd.f32 %v464, %v497
  %v536 = vadd.f32 %v465, %v497
  %v537 = vadd.f32 %v466, %v497
  %v538 = vadd.f32 %v467, %v497
  %v539 = vadd.f32 %v468, %v497
  %v540 = vadd.f32 %v469, %v497
  %v541 = vadd.f32 %v470, %v497
  %v542 = vadd.f32 %v471, %v497
  %v543 = vadd.f32 %v472, %v497
  %v544 = vadd.f32 %v473, %v497
  %v545 = vadd.f32 %v474, %v497
  %v546 = vadd.f32 %v475, %v497
  %v547 = vadd.f32 %v476, %v497
  %v548 = vadd.f32 %v477, %v497
  %v549 = vadd.f32 %v478, %v497
  %v550 = vadd.f32 %v479, %v497
  %v551 = vadd.f32 %v480, %v497
  %v552 = vadd.f32 %v481, %v497
  %v553 = vadd.f32 %v482, %v497
  %v554 = vadd.f32 %v483, %v497
  %v555 = vadd.f32 %v484, %v497
  %v556 = vadd.f32 %v485, %v497
  %v557 = vadd.f32 %v486, %v497
  %v558 = vadd.f32 %v487, %v497
  %v559 = vadd.f32 %v488, %v497
  %v560 = vadd.f32 %v489, %v497
  %v561 = vadd.f32 %v490, %v497
  %v562 = vadd.f32 %v491, %v497
  %v563 = vadd.f32 %v229, %v499
  %v564 = vadd.f32 %v230, %v500
  %v565 = vadd.f32 %v231, %v501
  %v566 = vadd.f32 %v232, %v502
  %v567 = vadd.f32 %v233, %v503
  %v568 = vadd.f32 %v234, %v504
  %v569 = vadd.f32 %v235, %v505
  %v570 = vadd.f32 %v236, %v506
  %v571 = vadd.f32 %v237, %v507
  %v572 = vadd.f32 %v238, %v508
  %v573 = vadd.f32 %v239, %v509
  %v574 = vadd.f32 %v240, %v510
  %v575 = vadd.f32 %v241, %v511
  %v576 = vadd.f32 %v242, %v512
  %v577 = vadd.f32 %v243, %v513
  %v578 = vadd.f32 %v244, %v514
  %v579 = vadd.f32 %v245, %v515
  %v580 = vadd.f32 %v246, %v516
  %v581 = vadd.f32 %v247, %v517
  %v582 = vadd.f32 %v248, %v518
  %v583 = vadd.f32 %v249, %v519
  %v584 = vadd.f32 %v250, %v520
  %v585 = vadd.f32 %v251, %v521
  %v586 = vadd.f32 %v252, %v522
  %v587 = vadd.f32 %v253, %v523
  %v588 = vadd.f32 %v254, %v524
  %v589 = vadd.f32 %v255, %v525
  %v590 = vadd.f32 %v256, %v526
  %v591 = vadd.f32 %v257, %v527
  %v592 = vadd.f32 %v258, %v528
  %v593 = vadd.f32 %v259, %v529
  %v594 = vadd.f32 %v260, %v530
  %v595 = vadd.f32 %v261, %v531
  %v596 = vadd.f32 %v262, %v532
  %v597 = vadd.f32 %v263, %v533
  %v598 = vadd.f32 %v264, %v534
  %v599 = vadd.f32 %v265, %v535
  %v600 = vadd.f32 %v266, %v536
  %v601 = vadd.f32 %v267, %v537
  %v602 = vadd.f32 %v268, %v538
  %v603 = vadd.f32 %v269, %v539
  %v604 = vadd.f32 %v270, %v540
  %v605 = vadd.f32 %v271, %v541
  %v606 = vadd.f32 %v272, %v542
  %v607 = vadd.f32 %v273, %v543
  %v608 = vadd.f32 %v274, %v544
  %v609 = vadd.f32 %v275, %v545
  %v610 = vadd.f32 %v276, %v546
  %v611 = vadd.f32 %v277, %v547
  %v612 = vadd.f32 %v278, %v548
  %v613 = vadd.f32 %v279, %v549
  %v614 = vadd.f32 %v280, %v550
  %v615 = vadd.f32 %v281, %v551
  %v616 = vadd.f32 %v282, %v552
  %v617 = vadd.f32 %v283, %v553
  %v618 = vadd.f32 %v284, %v554
  %v619 = vadd.f32 %v285, %v555
  %v620 = vadd.f32 %v286, %v556
  %v621 = vadd.f32 %v287, %v557
  %v622 = vadd.f32 %v288, %v558
  %v623 = vadd.f32 %v289, %v559
  %v624 = vadd.f32 %v290, %v560
  %v625 = vadd.f32 %v291, %v561
  %v626 = vadd.f32 %v292, %v562
  %v627 = vmax.f32 %v563, 0.0
  %v628 = vmax.f32 %v564, 0.0
  %v629 = vmax.f32 %v565, 0.0
  %v630 = vmax.f32 %v566, 0.0
  %v631 = vmax.f32 %v567, 0.0
  %v632 = vmax.f32 %v568, 0.0
  %v633 = vmax.f32 %v569, 0.0
  %v634 = vmax.f32 %v570, 0.0
  %v635 = vmax.f32 %v571, 0.0
  %v636 = vmax.f32 %v572, 0.0
  %v637 = vmax.f32 %v573, 0.0
  %v638 = vmax.f32 %v574, 0.0
  %v639 = vmax.f32 %v575, 0.0
  %v640 = vmax.f32 %v576, 0.0
  %v641 = vmax.f32 %v577, 0.0
  %v642 = vmax.f32 %v578, 0.0
  %v643 = vmax.f32 %v579, 0.0
  %v644 = vmax.f32 %v580, 0.0
  %v645 = vmax.f32 %v581, 0.0
  %v646 = vmax.f32 %v582, 0.0
  %v647 = vmax.f32 %v583, 0.0
  %v648 = vmax.f32 %v584, 0.0
  %v649 = vmax.f32 %v585, 0.0
  %v650 = vmax.f32 %v586, 0.0
  %v651 = vmax.f32 %v587, 0.0
  %v652 = vmax.f32 %v588, 0.0
  %v653 = vmax.f32 %v589, 0.0
  %v654 = vmax.f32 %v590, 0.0
  %v655 = vmax.f32 %v591, 0.0
  %v656 = vmax.f32 %v592, 0.0
  %v657 = vmax.f32 %v593, 0.0
  %v658 = vmax.f32 %v594, 0.0
  %v659 = vmax.f32 %v595, 0.0
  %v660 = vmax.f32 %v596, 0.0
  %v661 = vmax.f32 %v597, 0.0
  %v662 = vmax.f32 %v598, 0.0
  %v663 = vmax.f32 %v599, 0.0
  %v664 = vmax.f32 %v600, 0.0
  %v665 = vmax.f32 %v601, 0.0
  %v666 = vmax.f32 %v602, 0.0
  %v667 = vmax.f32 %v603, 0.0
  %v668 = vmax.f32 %v604, 0.0
  %v669 = vmax.f32 %v605, 0.0
  %v670 = vmax.f32 %v606, 0.0
  %v671 = vmax.f32 %v607, 0.0
  %v672 = vmax.f32 %v608, 0.0
  %v673 = vmax.f32 %v609, 0.0
  %v674 = vmax.f32 %v610, 0.0
  %v675 = vmax.f32 %v611, 0.0
  %v676 = vmax.f32 %v612, 0.0
  %v677 = vmax.f32 %v613, 0.0
  %v678 = vmax.f32 %v614, 0.0
  %v679 = vmax.f32 %v615, 0.0
  %v680 = vmax.f32 %v616, 0.0
  %v681 = vmax.f32 %v617, 0.0
  %v682 = vmax.f32 %v618, 0.0
  %v683 = vmax.f32 %v619, 0.0
  %v684 = vmax.f32 %v620, 0.0
  %v685 = vmax.f32 %v621, 0.0
  %v686 = vmax.f32 %v622, 0.0
  %v687 = vmax.f32 %v623, 0.0
  %v688 = vmax.f32 %v624, 0.0
  %v689 = vmax.f32 %v625, 0.0
  %v690 = vmax.f32 %v626, 0.0
  %691 = vst [vmem:[%s6] sm:$0xff] %v627
  %692 = vst [vmem:[%s6 + $0x8] sm:$0xff] %v628
  %693 = vst [vmem:[%s6 + $0x10] sm:$0xff] %v629
  %694 = vst [vmem:[%s6 + $0x18] sm:$0xff] %v630
  %695 = vst [vmem:[%s6 + $0x20] sm:$0xff] %v631
  %696 = vst [vmem:[%s6 + $0x28] sm:$0xff] %v632
  %697 = vst [vmem:[%s6 + $0x30] sm:$0xff] %v633
  %698 = vst [vmem:[%s6 + $0x38] sm:$0xff] %v634
  %699 = vst [vmem:[%s6 + $0x40] sm:$0xff] %v635
  %700 = vst [vmem:[%s6 + $0x48] sm:$0xff] %v636
  %701 = vst [vmem:[%s6 + $0x50] sm:$0xff] %v637
  %702 = vst [vmem:[%s6 + $0x58] sm:$0xff] %v638
  %703 = vst [vmem:[%s6 + $0x60] sm:$0xff] %v639
  %704 = vst [vmem:[%s6 + $0x68] sm:$0xff] %v640
  %705 = vst [vmem:[%s6 + $0x70] sm:$0xff] %v641
  %706 = vst [vmem:[%s6 + $0x78] sm:$0xff] %v642
  %707 = vst [vmem:[%s6 + $0x80] sm:$0xff] %v643
  %708 = vst [vmem:[%s6 + $0x88] sm:$0xff] %v644
  %709 = vst [vmem:[%s6 + $0x90] sm:$0xff] %v645
  %710 = vst [vmem:[%s6 + $0x98] sm:$0xff] %v646
  %711 = vst [vmem:[%s6 + $0xa0] sm:$0xff] %v647
  %712 = vst [vmem:[%s6 + $0xa8] sm:$0xff] %v648
  %713 = vst [vmem:[%s6 + $0xb0] sm:$0xff] %v649
  %714 = vst [vmem:[%s6 + $0xb8] sm:$0xff] %v650
  %715 = vst [vmem:[%s6 + $0xc0] sm:$0xff] %v651
  %716 = vst [vmem:[%s6 + $0xc8] sm:$0xff] %v652
  %717 = vst [vmem:[%s6 + $0xd0] sm:$0xff] %v653
  %718 = vst [vmem:[%s6 + $0xd8] sm:$0xff] %v654
  %719 = vst [vmem:[%s6 + $0xe0] sm:$0xff] %v655
  %720 = vst [vmem:[%s6 + $0xe8] sm:$0xff] %v656
  %721 = vst [vmem:[%s6 + $0xf0] sm:$0xff] %v657
  %722 = vst [vmem:[%s6 + $0xf8] sm:$0xff] %v658
  %723 = vst [vmem:[%s6 + $0x100] sm:$0xff] %v659
  %724 = vst [vmem:[%s6 + $0x108] sm:$0xff] %v660
  %725 = vst [vmem:[%s6 + $0x110] sm:$0xff] %v661
  %726 = vst [vmem:[%s6 + $0x118] sm:$0xff] %v662
  %727 = vst [vmem:[%s6 + $0x120] sm:$0xff] %v663
  %728 = vst [vmem:[%s6 + $0x128] sm:$0xff] %v664
  %729 = vst [vmem:[%s6 + $0x130] sm:$0xff] %v665
  %730 = vst [vmem:[%s6 + $0x138] sm:$0xff] %v666
  %731 = vst [vmem:[%s6 + $0x140] sm:$0xff] %v667
  %732 = vst [vmem:[%s6 + $0x148] sm:$0xff] %v668
  %733 = vst [vmem:[%s6 + $0x150] sm:$0xff] %v669
  %734 = vst [vmem:[%s6 + $0x158] sm:$0xff] %v670
  %735 = vst [vmem:[%s6 + $0x160] sm:$0xff] %v671
  %736 = vst [vmem:[%s6 + $0x168] sm:$0xff] %v672
  %737 = vst [vmem:[%s6 + $0x170] sm:$0xff] %v673
  %738 = vst [vmem:[%s6 + $0x178] sm:$0xff] %v674
  %739 = vst [vmem:[%s6 + $0x180] sm:$0xff] %v675
  %740 = vst [vmem:[%s6 + $0x188] sm:$0xff] %v676
  %741 = vst [vmem:[%s6 + $0x190] sm:$0xff] %v677
  %742 = vst [vmem:[%s6 + $0x198] sm:$0xff] %v678
  %743 = vst [vmem:[%s6 + $0x1a0] sm:$0xff] %v679
  %744 = vst [vmem:[%s6 + $0x1a8] sm:$0xff] %v680
  %745 = vst [vmem:[%s6 + $0x1b0] sm:$0xff] %v681
  %746 = vst [vmem:[%s6 + $0x1b8] sm:$0xff] %v682
  %747 = vst [vmem:[%s6 + $0x1c0] sm:$0xff] %v683
  %748 = vst [vmem:[%s6 + $0x1c8] sm:$0xff] %v684
  %749 = vst [vmem:[%s6 + $0x1d0] sm:$0xff] %v685
  %750 = vst [vmem:[%s6 + $0x1d8] sm:$0xff] %v686
  %751 = vst [vmem:[%s6 + $0x1e0] sm:$0xff] %v687
  %752 = vst [vmem:[%s6 + $0x1e8] sm:$0xff] %v688
  %753 = vst [vmem:[%s6 + $0x1f0] sm:$0xff] %v689
  %754 = vst [vmem:[%s6 + $0x1f8] sm:$0xff] %v690
  // Predicated region
  $region26: #{residual_module_forward.9} parent=0 // pred_check
    _
  $region27: #{residual_module_forward.9} parent=0 // pred_check_branch
    %756 = sbr.rel (0) target = $region29
  $region28: #{residual_module_forward.9} parent=0 // pred_region
    _
  $region29: #{residual_module_forward.9} parent=0 // pred_fallthru
    _
  // Predicated region
  $region30: #{residual_module_forward.9} parent=0 // pred_check
    _
  $region31: #{residual_module_forward.9} parent=0 // pred_check_branch
    %758 = sbr.rel (0) target = $region33
  $region32: #{residual_module_forward.9} parent=0 // pred_region
    _
  $region33: #{residual_module_forward.9} parent=0 // pred_fallthru
    _

// kernel: residual_module_forward.7
$region0: #{residual_module_forward.7}
  #allocation0 [shape = 'u32[]', space=smem, size = 0x4, offset = 0x4, fixed_abs, tag = 'smem constant byte address 0x4 - core index']
  #allocation1 [shape = 'u32[144,128]{1,0:T(1,128)}', space=vmem, size = 0x12000, scoped, tag = 'internal scratch']
  %s0 = inlined_call_operand.vmem [shape: bf16[512,128], index: 0, kind: input, shape index: {}]
  %s1 = inlined_call_operand.vmem [shape: bf16[128,128], index: 1, kind: input, shape index: {}]
  %s2 = inlined_call_operand.vmem [shape: f32[1,128], index: 2, kind: input, shape index: {}]
  %s3 = inlined_call_operand.vmem [shape: f32[1,128], index: 3, kind: input, shape index: {}]
  %s4 = inlined_call_operand.vmem [shape: bf16[512,128], index: 4, kind: output, shape index: {0}]
  %s5 = inlined_call_operand.vmem [shape: f32[1,8,128], index: 5, kind: output, shape index: {1}]
  %6 = xla_tuple %s4, %s5
  %s7 = sld [smem:[#allocation0]]
  $region34: #{residual_module_forward.7} parent=0
    _
  %s9 = ssub.s32 1, %s7
  %s10 = scalar_select 0, %s9, %s7
  // Predicated region
  $region2: #{residual_module_forward.7} parent=0 // pred_check
    _
  $region3: #{residual_module_forward.7} parent=0 // pred_check_branch
    %12 = sbr.rel (0) target = $region5
  $region4: #{residual_module_forward.7} parent=0 // pred_region
    _
  $region5: #{residual_module_forward.7} parent=0 // pred_fallthru
    _
  // Predicated region
  $region6: #{residual_module_forward.7} parent=0 // pred_check
    _
  $region7: #{residual_module_forward.7} parent=0 // pred_check_branch
    %14 = sbr.rel (0) target = $region9
  $region8: #{residual_module_forward.7} parent=0 // pred_region
    _
  $region9: #{residual_module_forward.7} parent=0 // pred_fallthru
    _
  // Predicated region
  $region10: #{residual_module_forward.7} parent=0 // pred_check
    _
  $region11: #{residual_module_forward.7} parent=0 // pred_check_branch
    %16 = sbr.rel (0) target = $region13
  $region12: #{residual_module_forward.7} parent=0 // pred_region
    _
  $region13: #{residual_module_forward.7} parent=0 // pred_fallthru
    _
  // Predicated region
  $region14: #{residual_module_forward.7} parent=0 // pred_check
    _
  $region15: #{residual_module_forward.7} parent=0 // pred_check_branch
    %18 = sbr.rel (0) target = $region17
  $region16: #{residual_module_forward.7} parent=0 // pred_region
    _
  $region17: #{residual_module_forward.7} parent=0 // pred_fallthru
    _
  %v20 = vld [vmem:[%s0] sm:$0xf]
  %v21 = vld [vmem:[%s0 + $0x4] sm:$0xf]
  %v22 = vld [vmem:[%s0 + $0x8] sm:$0xf]
  %v23 = vld [vmem:[%s0 + $0xc] sm:$0xf]
  %v24 = vld [vmem:[%s0 + $0x10] sm:$0xf]
  %v25 = vld [vmem:[%s0 + $0x14] sm:$0xf]
  %v26 = vld [vmem:[%s0 + $0x18] sm:$0xf]
  %v27 = vld [vmem:[%s0 + $0x1c] sm:$0xf]
  %v28 = vld [vmem:[%s0 + $0x20] sm:$0xf]
  %v29 = vld [vmem:[%s0 + $0x24] sm:$0xf]
  %v30 = vld [vmem:[%s0 + $0x28] sm:$0xf]
  %v31 = vld [vmem:[%s0 + $0x2c] sm:$0xf]
  %v32 = vld [vmem:[%s0 + $0x30] sm:$0xf]
  %v33 = vld [vmem:[%s0 + $0x34] sm:$0xf]
  %v34 = vld [vmem:[%s0 + $0x38] sm:$0xf]
  %v35 = vld [vmem:[%s0 + $0x3c] sm:$0xf]
  %v36 = vld [vmem:[%s0 + $0x40] sm:$0xf]
  %v37 = vld [vmem:[%s0 + $0x44] sm:$0xf]
  %v38 = vld [vmem:[%s0 + $0x48] sm:$0xf]
  %v39 = vld [vmem:[%s0 + $0x4c] sm:$0xf]
  %v40 = vld [vmem:[%s0 + $0x50] sm:$0xf]
  %v41 = vld [vmem:[%s0 + $0x54] sm:$0xf]
  %v42 = vld [vmem:[%s0 + $0x58] sm:$0xf]
  %v43 = vld [vmem:[%s0 + $0x5c] sm:$0xf]
  %v44 = vld [vmem:[%s0 + $0x60] sm:$0xf]
  %v45 = vld [vmem:[%s0 + $0x64] sm:$0xf]
  %v46 = vld [vmem:[%s0 + $0x68] sm:$0xf]
  %v47 = vld [vmem:[%s0 + $0x6c] sm:$0xf]
  %v48 = vld [vmem:[%s0 + $0x70] sm:$0xf]
  %v49 = vld [vmem:[%s0 + $0x74] sm:$0xf]
  %v50 = vld [vmem:[%s0 + $0x78] sm:$0xf]
  %v51 = vld [vmem:[%s0 + $0x7c] sm:$0xf]
  %v52 = vld [vmem:[%s0 + $0x80] sm:$0xf]
  %v53 = vld [vmem:[%s0 + $0x84] sm:$0xf]
  %v54 = vld [vmem:[%s0 + $0x88] sm:$0xf]
  %v55 = vld [vmem:[%s0 + $0x8c] sm:$0xf]
  %v56 = vld [vmem:[%s0 + $0x90] sm:$0xf]
  %v57 = vld [vmem:[%s0 + $0x94] sm:$0xf]
  %v58 = vld [vmem:[%s0 + $0x98] sm:$0xf]
  %v59 = vld [vmem:[%s0 + $0x9c] sm:$0xf]
  %v60 = vld [vmem:[%s0 + $0xa0] sm:$0xf]
  %v61 = vld [vmem:[%s0 + $0xa4] sm:$0xf]
  %v62 = vld [vmem:[%s0 + $0xa8] sm:$0xf]
  %v63 = vld [vmem:[%s0 + $0xac] sm:$0xf]
  %v64 = vld [vmem:[%s0 + $0xb0] sm:$0xf]
  %v65 = vld [vmem:[%s0 + $0xb4] sm:$0xf]
  %v66 = vld [vmem:[%s0 + $0xb8] sm:$0xf]
  %v67 = vld [vmem:[%s0 + $0xbc] sm:$0xf]
  %v68 = vld [vmem:[%s0 + $0xc0] sm:$0xf]
  %v69 = vld [vmem:[%s0 + $0xc4] sm:$0xf]
  %v70 = vld [vmem:[%s0 + $0xc8] sm:$0xf]
  %v71 = vld [vmem:[%s0 + $0xcc] sm:$0xf]
  %v72 = vld [vmem:[%s0 + $0xd0] sm:$0xf]
  %v73 = vld [vmem:[%s0 + $0xd4] sm:$0xf]
  %v74 = vld [vmem:[%s0 + $0xd8] sm:$0xf]
  %v75 = vld [vmem:[%s0 + $0xdc] sm:$0xf]
  %v76 = vld [vmem:[%s0 + $0xe0] sm:$0xf]
  %v77 = vld [vmem:[%s0 + $0xe4] sm:$0xf]
  %v78 = vld [vmem:[%s0 + $0xe8] sm:$0xf]
  %v79 = vld [vmem:[%s0 + $0xec] sm:$0xf]
  %v80 = vld [vmem:[%s0 + $0xf0] sm:$0xf]
  %v81 = vld [vmem:[%s0 + $0xf4] sm:$0xf]
  %v82 = vld [vmem:[%s0 + $0xf8] sm:$0xf]
  %v83 = vld [vmem:[%s0 + $0xfc] sm:$0xf]
  %v84 = vunpack.c.l.bf16 %v20
  %v85 = vunpack.c.l.bf16 %v21
  %v86 = vunpack.c.l.bf16 %v22
  %v87 = vunpack.c.l.bf16 %v23
  %v88 = vunpack.c.l.bf16 %v24
  %v89 = vunpack.c.l.bf16 %v25
  %v90 = vunpack.c.l.bf16 %v26
  %v91 = vunpack.c.l.bf16 %v27
  %v92 = vunpack.c.l.bf16 %v28
  %v93 = vunpack.c.l.bf16 %v29
  %v94 = vunpack.c.l.bf16 %v30
  %v95 = vunpack.c.l.bf16 %v31
  %v96 = vunpack.c.l.bf16 %v32
  %v97 = vunpack.c.l.bf16 %v33
  %v98 = vunpack.c.l.bf16 %v34
  %v99 = vunpack.c.l.bf16 %v35
  %v100 = vunpack.c.l.bf16 %v36
  %v101 = vunpack.c.l.bf16 %v37
  %v102 = vunpack.c.l.bf16 %v38
  %v103 = vunpack.c.l.bf16 %v39
  %v104 = vunpack.c.l.bf16 %v40
  %v105 = vunpack.c.l.bf16 %v41
  %v106 = vunpack.c.l.bf16 %v42
  %v107 = vunpack.c.l.bf16 %v43
  %v108 = vunpack.c.l.bf16 %v44
  %v109 = vunpack.c.l.bf16 %v45
  %v110 = vunpack.c.l.bf16 %v46
  %v111 = vunpack.c.l.bf16 %v47
  %v112 = vunpack.c.l.bf16 %v48
  %v113 = vunpack.c.l.bf16 %v49
  %v114 = vunpack.c.l.bf16 %v50
  %v115 = vunpack.c.l.bf16 %v51
  %v116 = vunpack.c.l.bf16 %v52
  %v117 = vunpack.c.l.bf16 %v53
  %v118 = vunpack.c.l.bf16 %v54
  %v119 = vunpack.c.l.bf16 %v55
  %v120 = vunpack.c.l.bf16 %v56
  %v121 = vunpack.c.l.bf16 %v57
  %v122 = vunpack.c.l.bf16 %v58
  %v123 = vunpack.c.l.bf16 %v59
  %v124 = vunpack.c.l.bf16 %v60
  %v125 = vunpack.c.l.bf16 %v61
  %v126 = vunpack.c.l.bf16 %v62
  %v127 = vunpack.c.l.bf16 %v63
  %v128 = vunpack.c.l.bf16 %v64
  %v129 = vunpack.c.l.bf16 %v65
  %v130 = vunpack.c.l.bf16 %v66
  %v131 = vunpack.c.l.bf16 %v67
  %v132 = vunpack.c.l.bf16 %v68
  %v133 = vunpack.c.l.bf16 %v69
  %v134 = vunpack.c.l.bf16 %v70
  %v135 = vunpack.c.l.bf16 %v71
  %v136 = vunpack.c.l.bf16 %v72
  %v137 = vunpack.c.l.bf16 %v73
  %v138 = vunpack.c.l.bf16 %v74
  %v139 = vunpack.c.l.bf16 %v75
  %v140 = vunpack.c.l.bf16 %v76
  %v141 = vunpack.c.l.bf16 %v77
  %v142 = vunpack.c.l.bf16 %v78
  %v143 = vunpack.c.l.bf16 %v79
  %v144 = vunpack.c.l.bf16 %v80
  %v145 = vunpack.c.l.bf16 %v81
  %v146 = vunpack.c.l.bf16 %v82
  %v147 = vunpack.c.l.bf16 %v83
  %v148 = vld [vmem:[%s2] sm:$0x1]
  %v150 = vlaneseq
  %v151 = vshrl.u32 %v150, 7
  %v152 = vsub.s32 0, %v151
  %v153 = vrot.slane %v148, %v152
  %v155 = vmul.f32 %v84, %v153
  %v156 = vmul.f32 %v85, %v153
  %v157 = vmul.f32 %v86, %v153
  %v158 = vmul.f32 %v87, %v153
  %v159 = vmul.f32 %v88, %v153
  %v160 = vmul.f32 %v89, %v153
  %v161 = vmul.f32 %v90, %v153
  %v162 = vmul.f32 %v91, %v153
  %v163 = vmul.f32 %v92, %v153
  %v164 = vmul.f32 %v93, %v153
  %v165 = vmul.f32 %v94, %v153
  %v166 = vmul.f32 %v95, %v153
  %v167 = vmul.f32 %v96, %v153
  %v168 = vmul.f32 %v97, %v153
  %v169 = vmul.f32 %v98, %v153
  %v170 = vmul.f32 %v99, %v153
  %v171 = vmul.f32 %v100, %v153
  %v172 = vmul.f32 %v101, %v153
  %v173 = vmul.f32 %v102, %v153
  %v174 = vmul.f32 %v103, %v153
  %v175 = vmul.f32 %v104, %v153
  %v176 = vmul.f32 %v105, %v153
  %v177 = vmul.f32 %v106, %v153
  %v178 = vmul.f32 %v107, %v153
  %v179 = vmul.f32 %v108, %v153
  %v180 = vmul.f32 %v109, %v153
  %v181 = vmul.f32 %v110, %v153
  %v182 = vmul.f32 %v111, %v153
  %v183 = vmul.f32 %v112, %v153
  %v184 = vmul.f32 %v113, %v153
  %v185 = vmul.f32 %v114, %v153
  %v186 = vmul.f32 %v115, %v153
  %v187 = vmul.f32 %v116, %v153
  %v188 = vmul.f32 %v117, %v153
  %v189 = vmul.f32 %v118, %v153
  %v190 = vmul.f32 %v119, %v153
  %v191 = vmul.f32 %v120, %v153
  %v192 = vmul.f32 %v121, %v153
  %v193 = vmul.f32 %v122, %v153
  %v194 = vmul.f32 %v123, %v153
  %v195 = vmul.f32 %v124, %v153
  %v196 = vmul.f32 %v125, %v153
  %v197 = vmul.f32 %v126, %v153
  %v198 = vmul.f32 %v127, %v153
  %v199 = vmul.f32 %v128, %v153
  %v200 = vmul.f32 %v129, %v153
  %v201 = vmul.f32 %v130, %v153
  %v202 = vmul.f32 %v131, %v153
  %v203 = vmul.f32 %v132, %v153
  %v204 = vmul.f32 %v133, %v153
  %v205 = vmul.f32 %v134, %v153
  %v206 = vmul.f32 %v135, %v153
  %v207 = vmul.f32 %v136, %v153
  %v208 = vmul.f32 %v137, %v153
  %v209 = vmul.f32 %v138, %v153
  %v210 = vmul.f32 %v139, %v153
  %v211 = vmul.f32 %v140, %v153
  %v212 = vmul.f32 %v141, %v153
  %v213 = vmul.f32 %v142, %v153
  %v214 = vmul.f32 %v143, %v153
  %v215 = vmul.f32 %v144, %v153
  %v216 = vmul.f32 %v145, %v153
  %v217 = vmul.f32 %v146, %v153
  %v218 = vmul.f32 %v147, %v153
  %v219 = vld [vmem:[%s3] sm:$0x1]
  %v221 = vlaneseq
  %v222 = vshrl.u32 %v221, 7
  %v223 = vsub.s32 0, %v222
  %v224 = vrot.slane %v219, %v223
  %v226 = vadd.f32 %v155, %v224
  %v227 = vadd.f32 %v156, %v224
  %v228 = vadd.f32 %v157, %v224
  %v229 = vadd.f32 %v158, %v224
  %v230 = vadd.f32 %v159, %v224
  %v231 = vadd.f32 %v160, %v224
  %v232 = vadd.f32 %v161, %v224
  %v233 = vadd.f32 %v162, %v224
  %v234 = vadd.f32 %v163, %v224
  %v235 = vadd.f32 %v164, %v224
  %v236 = vadd.f32 %v165, %v224
  %v237 = vadd.f32 %v166, %v224
  %v238 = vadd.f32 %v167, %v224
  %v239 = vadd.f32 %v168, %v224
  %v240 = vadd.f32 %v169, %v224
  %v241 = vadd.f32 %v170, %v224
  %v242 = vadd.f32 %v171, %v224
  %v243 = vadd.f32 %v172, %v224
  %v244 = vadd.f32 %v173, %v224
  %v245 = vadd.f32 %v174, %v224
  %v246 = vadd.f32 %v175, %v224
  %v247 = vadd.f32 %v176, %v224
  %v248 = vadd.f32 %v177, %v224
  %v249 = vadd.f32 %v178, %v224
  %v250 = vadd.f32 %v179, %v224
  %v251 = vadd.f32 %v180, %v224
  %v252 = vadd.f32 %v181, %v224
  %v253 = vadd.f32 %v182, %v224
  %v254 = vadd.f32 %v183, %v224
  %v255 = vadd.f32 %v184, %v224
  %v256 = vadd.f32 %v185, %v224
  %v257 = vadd.f32 %v186, %v224
  %v258 = vadd.f32 %v187, %v224
  %v259 = vadd.f32 %v188, %v224
  %v260 = vadd.f32 %v189, %v224
  %v261 = vadd.f32 %v190, %v224
  %v262 = vadd.f32 %v191, %v224
  %v263 = vadd.f32 %v192, %v224
  %v264 = vadd.f32 %v193, %v224
  %v265 = vadd.f32 %v194, %v224
  %v266 = vadd.f32 %v195, %v224
  %v267 = vadd.f32 %v196, %v224
  %v268 = vadd.f32 %v197, %v224
  %v269 = vadd.f32 %v198, %v224
  %v270 = vadd.f32 %v199, %v224
  %v271 = vadd.f32 %v200, %v224
  %v272 = vadd.f32 %v201, %v224
  %v273 = vadd.f32 %v202, %v224
  %v274 = vadd.f32 %v203, %v224
  %v275 = vadd.f32 %v204, %v224
  %v276 = vadd.f32 %v205, %v224
  %v277 = vadd.f32 %v206, %v224
  %v278 = vadd.f32 %v207, %v224
  %v279 = vadd.f32 %v208, %v224
  %v280 = vadd.f32 %v209, %v224
  %v281 = vadd.f32 %v210, %v224
  %v282 = vadd.f32 %v211, %v224
  %v283 = vadd.f32 %v212, %v224
  %v284 = vadd.f32 %v213, %v224
  %v285 = vadd.f32 %v214, %v224
  %v286 = vadd.f32 %v215, %v224
  %v287 = vadd.f32 %v216, %v224
  %v288 = vadd.f32 %v217, %v224
  %v289 = vadd.f32 %v218, %v224
  %v290 = vmax.f32 %v226, 0.0
  %v291 = vmax.f32 %v227, 0.0
  %v292 = vmax.f32 %v228, 0.0
  %v293 = vmax.f32 %v229, 0.0
  %v294 = vmax.f32 %v230, 0.0
  %v295 = vmax.f32 %v231, 0.0
  %v296 = vmax.f32 %v232, 0.0
  %v297 = vmax.f32 %v233, 0.0
  %v298 = vmax.f32 %v234, 0.0
  %v299 = vmax.f32 %v235, 0.0
  %v300 = vmax.f32 %v236, 0.0
  %v301 = vmax.f32 %v237, 0.0
  %v302 = vmax.f32 %v238, 0.0
  %v303 = vmax.f32 %v239, 0.0
  %v304 = vmax.f32 %v240, 0.0
  %v305 = vmax.f32 %v241, 0.0
  %v306 = vmax.f32 %v242, 0.0
  %v307 = vmax.f32 %v243, 0.0
  %v308 = vmax.f32 %v244, 0.0
  %v309 = vmax.f32 %v245, 0.0
  %v310 = vmax.f32 %v246, 0.0
  %v311 = vmax.f32 %v247, 0.0
  %v312 = vmax.f32 %v248, 0.0
  %v313 = vmax.f32 %v249, 0.0
  %v314 = vmax.f32 %v250, 0.0
  %v315 = vmax.f32 %v251, 0.0
  %v316 = vmax.f32 %v252, 0.0
  %v317 = vmax.f32 %v253, 0.0
  %v318 = vmax.f32 %v254, 0.0
  %v319 = vmax.f32 %v255, 0.0
  %v320 = vmax.f32 %v256, 0.0
  %v321 = vmax.f32 %v257, 0.0
  %v322 = vmax.f32 %v258, 0.0
  %v323 = vmax.f32 %v259, 0.0
  %v324 = vmax.f32 %v260, 0.0
  %v325 = vmax.f32 %v261, 0.0
  %v326 = vmax.f32 %v262, 0.0
  %v327 = vmax.f32 %v263, 0.0
  %v328 = vmax.f32 %v264, 0.0
  %v329 = vmax.f32 %v265, 0.0
  %v330 = vmax.f32 %v266, 0.0
  %v331 = vmax.f32 %v267, 0.0
  %v332 = vmax.f32 %v268, 0.0
  %v333 = vmax.f32 %v269, 0.0
  %v334 = vmax.f32 %v270, 0.0
  %v335 = vmax.f32 %v271, 0.0
  %v336 = vmax.f32 %v272, 0.0
  %v337 = vmax.f32 %v273, 0.0
  %v338 = vmax.f32 %v274, 0.0
  %v339 = vmax.f32 %v275, 0.0
  %v340 = vmax.f32 %v276, 0.0
  %v341 = vmax.f32 %v277, 0.0
  %v342 = vmax.f32 %v278, 0.0
  %v343 = vmax.f32 %v279, 0.0
  %v344 = vmax.f32 %v280, 0.0
  %v345 = vmax.f32 %v281, 0.0
  %v346 = vmax.f32 %v282, 0.0
  %v347 = vmax.f32 %v283, 0.0
  %v348 = vmax.f32 %v284, 0.0
  %v349 = vmax.f32 %v285, 0.0
  %v350 = vmax.f32 %v286, 0.0
  %v351 = vmax.f32 %v287, 0.0
  %v352 = vmax.f32 %v288, 0.0
  %v353 = vmax.f32 %v289, 0.0
  %v354 = vpack.c.bf16 %v291, %v290
  %v355 = vpack.c.bf16 %v293, %v292
  %v356 = vpack.c.bf16 %v295, %v294
  %v357 = vpack.c.bf16 %v297, %v296
  %v358 = vpack.c.bf16 %v299, %v298
  %v359 = vpack.c.bf16 %v301, %v300
  %v360 = vpack.c.bf16 %v303, %v302
  %v361 = vpack.c.bf16 %v305, %v304
  %v362 = vpack.c.bf16 %v307, %v306
  %v363 = vpack.c.bf16 %v309, %v308
  %v364 = vpack.c.bf16 %v311, %v310
  %v365 = vpack.c.bf16 %v313, %v312
  %v366 = vpack.c.bf16 %v315, %v314
  %v367 = vpack.c.bf16 %v317, %v316
  %v368 = vpack.c.bf16 %v319, %v318
  %v369 = vpack.c.bf16 %v321, %v320
  %v370 = vpack.c.bf16 %v323, %v322
  %v371 = vpack.c.bf16 %v325, %v324
  %v372 = vpack.c.bf16 %v327, %v326
  %v373 = vpack.c.bf16 %v329, %v328
  %v374 = vpack.c.bf16 %v331, %v330
  %v375 = vpack.c.bf16 %v333, %v332
  %v376 = vpack.c.bf16 %v335, %v334
  %v377 = vpack.c.bf16 %v337, %v336
  %v378 = vpack.c.bf16 %v339, %v338
  %v379 = vpack.c.bf16 %v341, %v340
  %v380 = vpack.c.bf16 %v343, %v342
  %v381 = vpack.c.bf16 %v345, %v344
  %v382 = vpack.c.bf16 %v347, %v346
  %v383 = vpack.c.bf16 %v349, %v348
  %v384 = vpack.c.bf16 %v351, %v350
  %v385 = vpack.c.bf16 %v353, %v352
  %v386 = vld [vmem:[%s1] sm:$0xf]
  %v387 = vld [vmem:[%s1 + $0x4] sm:$0xf]
  %v388 = vld [vmem:[%s1 + $0x8] sm:$0xf]
  %v389 = vld [vmem:[%s1 + $0xc] sm:$0xf]
  %v390 = vld [vmem:[%s1 + $0x10] sm:$0xf]
  %v391 = vld [vmem:[%s1 + $0x14] sm:$0xf]
  %v392 = vld [vmem:[%s1 + $0x18] sm:$0xf]
  %v393 = vld [vmem:[%s1 + $0x1c] sm:$0xf]
  %v394 = vld [vmem:[%s1 + $0x20] sm:$0xf]
  %v395 = vld [vmem:[%s1 + $0x24] sm:$0xf]
  %v396 = vld [vmem:[%s1 + $0x28] sm:$0xf]
  %v397 = vld [vmem:[%s1 + $0x2c] sm:$0xf]
  %v398 = vld [vmem:[%s1 + $0x30] sm:$0xf]
  %v399 = vld [vmem:[%s1 + $0x34] sm:$0xf]
  %v400 = vld [vmem:[%s1 + $0x38] sm:$0xf]
  %v401 = vld [vmem:[%s1 + $0x3c] sm:$0xf]
  %v418 = vunpack.c.l.b16 %v386
  %v419 = vunpack.c.l.b16 %v387
  %v420 = vunpack.c.l.b16 %v388
  %v421 = vunpack.c.l.b16 %v389
  %v422 = vunpack.c.l.b16 %v390
  %v423 = vunpack.c.l.b16 %v391
  %v424 = vunpack.c.l.b16 %v392
  %v425 = vunpack.c.l.b16 %v393
  %v426 = vunpack.c.l.b16 %v394
  %v427 = vunpack.c.l.b16 %v395
  %v428 = vunpack.c.l.b16 %v396
  %v429 = vunpack.c.l.b16 %v397
  %v430 = vunpack.c.l.b16 %v398
  %v431 = vunpack.c.l.b16 %v399
  %v432 = vunpack.c.l.b16 %v400
  %v433 = vunpack.c.l.b16 %v401
  %v434 = vpack.c.b16 %v419, %v418
  %v435 = vpack.c.b16 %v421, %v420
  %v436 = vpack.c.b16 %v423, %v422
  %v437 = vpack.c.b16 %v425, %v424
  %v438 = vpack.c.b16 %v427, %v426
  %v439 = vpack.c.b16 %v429, %v428
  %v440 = vpack.c.b16 %v431, %v430
  %v441 = vpack.c.b16 %v433, %v432
  %450 = vmatprep.subr.bf16.mxu0 0
  %451 = vmatpush1.bf16.msra.mxu0 %v441
  %452 = vmatprep.subr.bf16.mxu0 0
  %453 = vmatpush1.bf16.msra.mxu0 %v440
  %454 = vmatprep.subr.bf16.mxu0 0
  %455 = vmatpush1.bf16.msra.mxu0 %v439
  %456 = vmatprep.subr.bf16.mxu0 0
  %457 = vmatpush1.bf16.msra.mxu0 %v438
  %458 = vmatprep.subr.bf16.mxu0 0
  %459 = vmatpush1.bf16.msra.mxu0 %v437
  %460 = vmatprep.subr.bf16.mxu0 0
  %461 = vmatpush1.bf16.msra.mxu0 %v436
  %462 = vmatprep.subr.bf16.mxu0 0
  %463 = vmatpush1.bf16.msra.mxu0 %v435
  %464 = vmatprep.subr.bf16.mxu0 0
  %465 = vmatpush1.bf16.msra.mxu0 %v434
  %466 = vmatprep.subr.bf16.mxu0 0
  %467 = vmatpush2.bf16.msra.mxu0 0
  %468 = vmatprep.subr.bf16.mxu0 0
  %469 = vmatpush2.bf16.msra.mxu0 0
  %470 = vmatprep.subr.bf16.mxu0 0
  %471 = vmatpush2.bf16.msra.mxu0 0
  %472 = vmatprep.subr.bf16.mxu0 0
  %473 = vmatpush2.bf16.msra.mxu0 0
  %474 = vmatprep.subr.bf16.mxu0 0
  %475 = vmatpush2.bf16.msra.mxu0 0
  %476 = vmatprep.subr.bf16.mxu0 0
  %477 = vmatpush2.bf16.msra.mxu0 0
  %478 = vmatprep.subr.bf16.mxu0 0
  %479 = vmatpush2.bf16.msra.mxu0 0
  %480 = vmatprep.subr.bf16.mxu0 0
  %481 = vmatpush2.bf16.msra.mxu0 0
  %482 = vmatprep.mubr.bf16.mxu0 0
  %483 = vmatmul.mubr.bf16.gmra.mxu0 %v354
  %v484 = vpop.f32.mrf.mxu0
  %v485 = vadd.f32 0.0, %v484
  %v486 = vpop.f32.mrf.mxu0
  %v487 = vpop.f32.mrf.mxu0
  %v488 = vadd.f32 0.0, %v487
  %v489 = vpop.f32.mrf.mxu0
  %490 = vmatprep.mubr.bf16.mxu0 0
  %491 = vmatmul.mubr.bf16.gmra.mxu0 %v355
  %v492 = vpop.f32.mrf.mxu0
  %v493 = vadd.f32 0.0, %v492
  %v494 = vpop.f32.mrf.mxu0
  %v495 = vpop.f32.mrf.mxu0
  %v496 = vadd.f32 0.0, %v495
  %v497 = vpop.f32.mrf.mxu0
  %498 = vmatprep.mubr.bf16.mxu0 0
  %499 = vmatmul.mubr.bf16.gmra.mxu0 %v356
  %v500 = vpop.f32.mrf.mxu0
  %v501 = vadd.f32 0.0, %v500
  %v502 = vpop.f32.mrf.mxu0
  %v503 = vpop.f32.mrf.mxu0
  %v504 = vadd.f32 0.0, %v503
  %v505 = vpop.f32.mrf.mxu0
  %506 = vmatprep.mubr.bf16.mxu0 0
  %507 = vmatmul.mubr.bf16.gmra.mxu0 %v357
  %v508 = vpop.f32.mrf.mxu0
  %v509 = vadd.f32 0.0, %v508
  %v510 = vpop.f32.mrf.mxu0
  %v511 = vpop.f32.mrf.mxu0
  %v512 = vadd.f32 0.0, %v511
  %v513 = vpop.f32.mrf.mxu0
  %514 = vmatprep.mubr.bf16.mxu0 0
  %515 = vmatmul.mubr.bf16.gmra.mxu0 %v358
  %v516 = vpop.f32.mrf.mxu0
  %v517 = vadd.f32 0.0, %v516
  %v518 = vpop.f32.mrf.mxu0
  %v519 = vpop.f32.mrf.mxu0
  %v520 = vadd.f32 0.0, %v519
  %v521 = vpop.f32.mrf.mxu0
  %522 = vmatprep.mubr.bf16.mxu0 0
  %523 = vmatmul.mubr.bf16.gmra.mxu0 %v359
  %v524 = vpop.f32.mrf.mxu0
  %v525 = vadd.f32 0.0, %v524
  %v526 = vpop.f32.mrf.mxu0
  %v527 = vpop.f32.mrf.mxu0
  %v528 = vadd.f32 0.0, %v527
  %v529 = vpop.f32.mrf.mxu0
  %530 = vmatprep.mubr.bf16.mxu0 0
  %531 = vmatmul.mubr.bf16.gmra.mxu0 %v360
  %v532 = vpop.f32.mrf.mxu0
  %v533 = vadd.f32 0.0, %v532
  %v534 = vpop.f32.mrf.mxu0
  %v535 = vpop.f32.mrf.mxu0
  %v536 = vadd.f32 0.0, %v535
  %v537 = vpop.f32.mrf.mxu0
  %538 = vmatprep.mubr.bf16.mxu0 0
  %539 = vmatmul.mubr.bf16.gmra.mxu0 %v361
  %v540 = vpop.f32.mrf.mxu0
  %v541 = vadd.f32 0.0, %v540
  %v542 = vpop.f32.mrf.mxu0
  %v543 = vpop.f32.mrf.mxu0
  %v544 = vadd.f32 0.0, %v543
  %v545 = vpop.f32.mrf.mxu0
  %546 = vmatprep.mubr.bf16.mxu0 0
  %547 = vmatmul.mubr.bf16.gmra.mxu0 %v362
  %v548 = vpop.f32.mrf.mxu0
  %v549 = vadd.f32 0.0, %v548
  %v550 = vpop.f32.mrf.mxu0
  %v551 = vpop.f32.mrf.mxu0
  %v552 = vadd.f32 0.0, %v551
  %v553 = vpop.f32.mrf.mxu0
  %554 = vmatprep.mubr.bf16.mxu0 0
  %555 = vmatmul.mubr.bf16.gmra.mxu0 %v363
  %v556 = vpop.f32.mrf.mxu0
  %v557 = vadd.f32 0.0, %v556
  %v558 = vpop.f32.mrf.mxu0
  %v559 = vpop.f32.mrf.mxu0
  %v560 = vadd.f32 0.0, %v559
  %v561 = vpop.f32.mrf.mxu0
  %562 = vmatprep.mubr.bf16.mxu0 0
  %563 = vmatmul.mubr.bf16.gmra.mxu0 %v364
  %v564 = vpop.f32.mrf.mxu0
  %v565 = vadd.f32 0.0, %v564
  %v566 = vpop.f32.mrf.mxu0
  %v567 = vpop.f32.mrf.mxu0
  %v568 = vadd.f32 0.0, %v567
  %v569 = vpop.f32.mrf.mxu0
  %570 = vmatprep.mubr.bf16.mxu0 0
  %571 = vmatmul.mubr.bf16.gmra.mxu0 %v365
  %v572 = vpop.f32.mrf.mxu0
  %v573 = vadd.f32 0.0, %v572
  %v574 = vpop.f32.mrf.mxu0
  %v575 = vpop.f32.mrf.mxu0
  %v576 = vadd.f32 0.0, %v575
  %v577 = vpop.f32.mrf.mxu0
  %578 = vmatprep.mubr.bf16.mxu0 0
  %579 = vmatmul.mubr.bf16.gmra.mxu0 %v366
  %v580 = vpop.f32.mrf.mxu0
  %v581 = vadd.f32 0.0, %v580
  %v582 = vpop.f32.mrf.mxu0
  %v583 = vpop.f32.mrf.mxu0
  %v584 = vadd.f32 0.0, %v583
  %v585 = vpop.f32.mrf.mxu0
  %586 = vmatprep.mubr.bf16.mxu0 0
  %587 = vmatmul.mubr.bf16.gmra.mxu0 %v367
  %v588 = vpop.f32.mrf.mxu0
  %v589 = vadd.f32 0.0, %v588
  %v590 = vpop.f32.mrf.mxu0
  %v591 = vpop.f32.mrf.mxu0
  %v592 = vadd.f32 0.0, %v591
  %v593 = vpop.f32.mrf.mxu0
  %594 = vmatprep.mubr.bf16.mxu0 0
  %595 = vmatmul.mubr.bf16.gmra.mxu0 %v368
  %v596 = vpop.f32.mrf.mxu0
  %v597 = vadd.f32 0.0, %v596
  %v598 = vpop.f32.mrf.mxu0
  %v599 = vpop.f32.mrf.mxu0
  %v600 = vadd.f32 0.0, %v599
  %v601 = vpop.f32.mrf.mxu0
  %602 = vmatprep.mubr.bf16.mxu0 0
  %603 = vmatmul.mubr.bf16.gmra.mxu0 %v369
  %v604 = vpop.f32.mrf.mxu0
  %v605 = vadd.f32 0.0, %v604
  %v606 = vpop.f32.mrf.mxu0
  %v607 = vpop.f32.mrf.mxu0
  %v608 = vadd.f32 0.0, %v607
  %v609 = vpop.f32.mrf.mxu0
  %610 = vmatprep.mubr.bf16.mxu0 0
  %611 = vmatmul.mubr.bf16.gmra.mxu0 %v370
  %v612 = vpop.f32.mrf.mxu0
  %v613 = vadd.f32 0.0, %v612
  %v614 = vpop.f32.mrf.mxu0
  %v615 = vpop.f32.mrf.mxu0
  %v616 = vadd.f32 0.0, %v615
  %v617 = vpop.f32.mrf.mxu0
  %618 = vmatprep.mubr.bf16.mxu0 0
  %619 = vmatmul.mubr.bf16.gmra.mxu0 %v371
  %v620 = vpop.f32.mrf.mxu0
  %v621 = vadd.f32 0.0, %v620
  %v622 = vpop.f32.mrf.mxu0
  %v623 = vpop.f32.mrf.mxu0
  %v624 = vadd.f32 0.0, %v623
  %v625 = vpop.f32.mrf.mxu0
  %626 = vmatprep.mubr.bf16.mxu0 0
  %627 = vmatmul.mubr.bf16.gmra.mxu0 %v372
  %v628 = vpop.f32.mrf.mxu0
  %v629 = vadd.f32 0.0, %v628
  %v630 = vpop.f32.mrf.mxu0
  %v631 = vpop.f32.mrf.mxu0
  %v632 = vadd.f32 0.0, %v631
  %v633 = vpop.f32.mrf.mxu0
  %634 = vmatprep.mubr.bf16.mxu0 0
  %635 = vmatmul.mubr.bf16.gmra.mxu0 %v373
  %v636 = vpop.f32.mrf.mxu0
  %v637 = vadd.f32 0.0, %v636
  %v638 = vpop.f32.mrf.mxu0
  %v639 = vpop.f32.mrf.mxu0
  %v640 = vadd.f32 0.0, %v639
  %v641 = vpop.f32.mrf.mxu0
  %642 = vmatprep.mubr.bf16.mxu0 0
  %643 = vmatmul.mubr.bf16.gmra.mxu0 %v374
  %v644 = vpop.f32.mrf.mxu0
  %v645 = vadd.f32 0.0, %v644
  %v646 = vpop.f32.mrf.mxu0
  %v647 = vpop.f32.mrf.mxu0
  %v648 = vadd.f32 0.0, %v647
  %v649 = vpop.f32.mrf.mxu0
  %650 = vmatprep.mubr.bf16.mxu0 0
  %651 = vmatmul.mubr.bf16.gmra.mxu0 %v375
  %v652 = vpop.f32.mrf.mxu0
  %v653 = vadd.f32 0.0, %v652
  %v654 = vpop.f32.mrf.mxu0
  %v655 = vpop.f32.mrf.mxu0
  %v656 = vadd.f32 0.0, %v655
  %v657 = vpop.f32.mrf.mxu0
  %658 = vmatprep.mubr.bf16.mxu0 0
  %659 = vmatmul.mubr.bf16.gmra.mxu0 %v376
  %v660 = vpop.f32.mrf.mxu0
  %v661 = vadd.f32 0.0, %v660
  %v662 = vpop.f32.mrf.mxu0
  %v663 = vpop.f32.mrf.mxu0
  %v664 = vadd.f32 0.0, %v663
  %v665 = vpop.f32.mrf.mxu0
  %666 = vmatprep.mubr.bf16.mxu0 0
  %667 = vmatmul.mubr.bf16.gmra.mxu0 %v377
  %v668 = vpop.f32.mrf.mxu0
  %v669 = vadd.f32 0.0, %v668
  %v670 = vpop.f32.mrf.mxu0
  %v671 = vpop.f32.mrf.mxu0
  %v672 = vadd.f32 0.0, %v671
  %v673 = vpop.f32.mrf.mxu0
  %674 = vmatprep.mubr.bf16.mxu0 0
  %675 = vmatmul.mubr.bf16.gmra.mxu0 %v378
  %v676 = vpop.f32.mrf.mxu0
  %v677 = vadd.f32 0.0, %v676
  %v678 = vpop.f32.mrf.mxu0
  %v679 = vpop.f32.mrf.mxu0
  %v680 = vadd.f32 0.0, %v679
  %v681 = vpop.f32.mrf.mxu0
  %682 = vmatprep.mubr.bf16.mxu0 0
  %683 = vmatmul.mubr.bf16.gmra.mxu0 %v379
  %v684 = vpop.f32.mrf.mxu0
  %v685 = vadd.f32 0.0, %v684
  %v686 = vpop.f32.mrf.mxu0
  %v687 = vpop.f32.mrf.mxu0
  %v688 = vadd.f32 0.0, %v687
  %v689 = vpop.f32.mrf.mxu0
  %690 = vmatprep.mubr.bf16.mxu0 0
  %691 = vmatmul.mubr.bf16.gmra.mxu0 %v380
  %v692 = vpop.f32.mrf.mxu0
  %v693 = vadd.f32 0.0, %v692
  %v694 = vpop.f32.mrf.mxu0
  %v695 = vpop.f32.mrf.mxu0
  %v696 = vadd.f32 0.0, %v695
  %v697 = vpop.f32.mrf.mxu0
  %698 = vmatprep.mubr.bf16.mxu0 0
  %699 = vmatmul.mubr.bf16.gmra.mxu0 %v381
  %v700 = vpop.f32.mrf.mxu0
  %v701 = vadd.f32 0.0, %v700
  %v702 = vpop.f32.mrf.mxu0
  %v703 = vpop.f32.mrf.mxu0
  %v704 = vadd.f32 0.0, %v703
  %v705 = vpop.f32.mrf.mxu0
  %706 = vmatprep.mubr.bf16.mxu0 0
  %707 = vmatmul.mubr.bf16.gmra.mxu0 %v382
  %v708 = vpop.f32.mrf.mxu0
  %v709 = vadd.f32 0.0, %v708
  %v710 = vpop.f32.mrf.mxu0
  %v711 = vpop.f32.mrf.mxu0
  %v712 = vadd.f32 0.0, %v711
  %v713 = vpop.f32.mrf.mxu0
  %714 = vmatprep.mubr.bf16.mxu0 0
  %715 = vmatmul.mubr.bf16.gmra.mxu0 %v383
  %v716 = vpop.f32.mrf.mxu0
  %v717 = vadd.f32 0.0, %v716
  %v718 = vpop.f32.mrf.mxu0
  %v719 = vpop.f32.mrf.mxu0
  %v720 = vadd.f32 0.0, %v719
  %v721 = vpop.f32.mrf.mxu0
  %722 = vmatprep.mubr.bf16.mxu0 0
  %723 = vmatmul.mubr.bf16.gmra.mxu0 %v384
  %v724 = vpop.f32.mrf.mxu0
  %v725 = vadd.f32 0.0, %v724
  %v726 = vpop.f32.mrf.mxu0
  %v727 = vpop.f32.mrf.mxu0
  %v728 = vadd.f32 0.0, %v727
  %v729 = vpop.f32.mrf.mxu0
  %730 = vmatprep.mubr.bf16.mxu0 0
  %731 = vmatmul.mubr.bf16.gmra.mxu0 %v385
  %v732 = vpop.f32.mrf.mxu0
  %v733 = vadd.f32 0.0, %v732
  %v734 = vpop.f32.mrf.mxu0
  %v735 = vpop.f32.mrf.mxu0
  %v736 = vadd.f32 0.0, %v735
  %v737 = vpop.f32.mrf.mxu0
  %738 = vdwg.mxu0
  %v739 = vpack.c.bf16 %v488, %v485
  %v740 = vpack.c.bf16 %v496, %v493
  %v741 = vpack.c.bf16 %v504, %v501
  %v742 = vpack.c.bf16 %v512, %v509
  %v743 = vpack.c.bf16 %v520, %v517
  %v744 = vpack.c.bf16 %v528, %v525
  %v745 = vpack.c.bf16 %v536, %v533
  %v746 = vpack.c.bf16 %v544, %v541
  %v747 = vpack.c.bf16 %v552, %v549
  %v748 = vpack.c.bf16 %v560, %v557
  %v749 = vpack.c.bf16 %v568, %v565
  %v750 = vpack.c.bf16 %v576, %v573
  %v751 = vpack.c.bf16 %v584, %v581
  %v752 = vpack.c.bf16 %v592, %v589
  %v753 = vpack.c.bf16 %v600, %v597
  %v754 = vpack.c.bf16 %v608, %v605
  %v755 = vpack.c.bf16 %v616, %v613
  %v756 = vpack.c.bf16 %v624, %v621
  %v757 = vpack.c.bf16 %v632, %v629
  %v758 = vpack.c.bf16 %v640, %v637
  %v759 = vpack.c.bf16 %v648, %v645
  %v760 = vpack.c.bf16 %v656, %v653
  %v761 = vpack.c.bf16 %v664, %v661
  %v762 = vpack.c.bf16 %v672, %v669
  %v763 = vpack.c.bf16 %v680, %v677
  %v764 = vpack.c.bf16 %v688, %v685
  %v765 = vpack.c.bf16 %v696, %v693
  %v766 = vpack.c.bf16 %v704, %v701
  %v767 = vpack.c.bf16 %v712, %v709
  %v768 = vpack.c.bf16 %v720, %v717
  %v769 = vpack.c.bf16 %v728, %v725
  %v770 = vpack.c.bf16 %v736, %v733
  %v803 = vunpack.c.l.b16 %v739
  %v804 = vunpack.c.h.b16 %v739
  %v805 = vunpack.c.l.b16 %v740
  %v806 = vunpack.c.h.b16 %v740
  %v807 = vunpack.c.l.b16 %v741
  %v808 = vunpack.c.h.b16 %v741
  %v809 = vunpack.c.l.b16 %v742
  %v810 = vunpack.c.h.b16 %v742
  %v811 = vunpack.c.l.b16 %v743
  %v812 = vunpack.c.h.b16 %v743
  %v813 = vunpack.c.l.b16 %v744
  %v814 = vunpack.c.h.b16 %v744
  %v815 = vunpack.c.l.b16 %v745
  %v816 = vunpack.c.h.b16 %v745
  %v817 = vunpack.c.l.b16 %v746
  %v818 = vunpack.c.h.b16 %v746
  %v819 = vunpack.c.l.b16 %v747
  %v820 = vunpack.c.h.b16 %v747
  %v821 = vunpack.c.l.b16 %v748
  %v822 = vunpack.c.h.b16 %v748
  %v823 = vunpack.c.l.b16 %v749
  %v824 = vunpack.c.h.b16 %v749
  %v825 = vunpack.c.l.b16 %v750
  %v826 = vunpack.c.h.b16 %v750
  %v827 = vunpack.c.l.b16 %v751
  %v828 = vunpack.c.h.b16 %v751
  %v829 = vunpack.c.l.b16 %v752
  %v830 = vunpack.c.h.b16 %v752
  %v831 = vunpack.c.l.b16 %v753
  %v832 = vunpack.c.h.b16 %v753
  %v833 = vunpack.c.l.b16 %v754
  %v834 = vunpack.c.h.b16 %v754
  %v835 = vunpack.c.l.b16 %v755
  %v836 = vunpack.c.h.b16 %v755
  %v837 = vunpack.c.l.b16 %v756
  %v838 = vunpack.c.h.b16 %v756
  %v839 = vunpack.c.l.b16 %v757
  %v840 = vunpack.c.h.b16 %v757
  %v841 = vunpack.c.l.b16 %v758
  %v842 = vunpack.c.h.b16 %v758
  %v843 = vunpack.c.l.b16 %v759
  %v844 = vunpack.c.h.b16 %v759
  %v845 = vunpack.c.l.b16 %v760
  %v846 = vunpack.c.h.b16 %v760
  %v847 = vunpack.c.l.b16 %v761
  %v848 = vunpack.c.h.b16 %v761
  %v849 = vunpack.c.l.b16 %v762
  %v850 = vunpack.c.h.b16 %v762
  %v851 = vunpack.c.l.b16 %v763
  %v852 = vunpack.c.h.b16 %v763
  %v853 = vunpack.c.l.b16 %v764
  %v854 = vunpack.c.h.b16 %v764
  %v855 = vunpack.c.l.b16 %v765
  %v856 = vunpack.c.h.b16 %v765
  %v857 = vunpack.c.l.b16 %v766
  %v858 = vunpack.c.h.b16 %v766
  %v859 = vunpack.c.l.b16 %v767
  %v860 = vunpack.c.h.b16 %v767
  %v861 = vunpack.c.l.b16 %v768
  %v862 = vunpack.c.h.b16 %v768
  %v863 = vunpack.c.l.b16 %v769
  %v864 = vunpack.c.h.b16 %v769
  %v865 = vunpack.c.l.b16 %v770
  %v866 = vunpack.c.h.b16 %v770
  %v867 = vpack.c.b16 %v803, %v803
  %v868 = vpack.c.b16 %v804, %v804
  %v869 = vpack.c.b16 %v805, %v805
  %v870 = vpack.c.b16 %v806, %v806
  %v871 = vpack.c.b16 %v807, %v807
  %v872 = vpack.c.b16 %v808, %v808
  %v873 = vpack.c.b16 %v809, %v809
  %v874 = vpack.c.b16 %v810, %v810
  %v875 = vpack.c.b16 %v811, %v811
  %v876 = vpack.c.b16 %v812, %v812
  %v877 = vpack.c.b16 %v813, %v813
  %v878 = vpack.c.b16 %v814, %v814
  %v879 = vpack.c.b16 %v815, %v815
  %v880 = vpack.c.b16 %v816, %v816
  %v881 = vpack.c.b16 %v817, %v817
  %v882 = vpack.c.b16 %v818, %v818
  %v883 = vpack.c.b16 %v819, %v819
  %v884 = vpack.c.b16 %v820, %v820
  %v885 = vpack.c.b16 %v821, %v821
  %v886 = vpack.c.b16 %v822, %v822
  %v887 = vpack.c.b16 %v823, %v823
  %v888 = vpack.c.b16 %v824, %v824
  %v889 = vpack.c.b16 %v825, %v825
  %v890 = vpack.c.b16 %v826, %v826
  %v891 = vpack.c.b16 %v827, %v827
  %v892 = vpack.c.b16 %v828, %v828
  %v893 = vpack.c.b16 %v829, %v829
  %v894 = vpack.c.b16 %v830, %v830
  %v895 = vpack.c.b16 %v831, %v831
  %v896 = vpack.c.b16 %v832, %v832
  %v897 = vpack.c.b16 %v833, %v833
  %v898 = vpack.c.b16 %v834, %v834
  %v899 = vpack.c.b16 %v835, %v835
  %v900 = vpack.c.b16 %v836, %v836
  %v901 = vpack.c.b16 %v837, %v837
  %v902 = vpack.c.b16 %v838, %v838
  %v903 = vpack.c.b16 %v839, %v839
  %v904 = vpack.c.b16 %v840, %v840
  %v905 = vpack.c.b16 %v841, %v841
  %v906 = vpack.c.b16 %v842, %v842
  %v907 = vpack.c.b16 %v843, %v843
  %v908 = vpack.c.b16 %v844, %v844
  %v909 = vpack.c.b16 %v845, %v845
  %v910 = vpack.c.b16 %v846, %v846
  %v911 = vpack.c.b16 %v847, %v847
  %v912 = vpack.c.b16 %v848, %v848
  %v913 = vpack.c.b16 %v849, %v849
  %v914 = vpack.c.b16 %v850, %v850
  %v915 = vpack.c.b16 %v851, %v851
  %v916 = vpack.c.b16 %v852, %v852
  %v917 = vpack.c.b16 %v853, %v853
  %v918 = vpack.c.b16 %v854, %v854
  %v919 = vpack.c.b16 %v855, %v855
  %v920 = vpack.c.b16 %v856, %v856
  %v921 = vpack.c.b16 %v857, %v857
  %v922 = vpack.c.b16 %v858, %v858
  %v923 = vpack.c.b16 %v859, %v859
  %v924 = vpack.c.b16 %v860, %v860
  %v925 = vpack.c.b16 %v861, %v861
  %v926 = vpack.c.b16 %v862, %v862
  %v927 = vpack.c.b16 %v863, %v863
  %v928 = vpack.c.b16 %v864, %v864
  %v929 = vpack.c.b16 %v865, %v865
  %v930 = vpack.c.b16 %v866, %v866
  %995 = vst [vmem:[%s4] sm:$0xf] %v867
  %996 = vst [vmem:[%s4 + $0x4] sm:$0xf] %v868
  %997 = vst [vmem:[%s4 + $0x8] sm:$0xf] %v869
  %998 = vst [vmem:[%s4 + $0xc] sm:$0xf] %v870
  %999 = vst [vmem:[%s4 + $0x10] sm:$0xf] %v871
  %1000 = vst [vmem:[%s4 + $0x14] sm:$0xf] %v872
  %1001 = vst [vmem:[%s4 + $0x18] sm:$0xf] %v873
  %1002 = vst [vmem:[%s4 + $0x1c] sm:$0xf] %v874
  %1003 = vst [vmem:[%s4 + $0x20] sm:$0xf] %v875
  %1004 = vst [vmem:[%s4 + $0x24] sm:$0xf] %v876
  %1005 = vst [vmem:[%s4 + $0x28] sm:$0xf] %v877
  %1006 = vst [vmem:[%s4 + $0x2c] sm:$0xf] %v878
  %1007 = vst [vmem:[%s4 + $0x30] sm:$0xf] %v879
  %1008 = vst [vmem:[%s4 + $0x34] sm:$0xf] %v880
  %1009 = vst [vmem:[%s4 + $0x38] sm:$0xf] %v881
  %1010 = vst [vmem:[%s4 + $0x3c] sm:$0xf] %v882
  %1011 = vst [vmem:[%s4 + $0x40] sm:$0xf] %v883
  %1012 = vst [vmem:[%s4 + $0x44] sm:$0xf] %v884
  %1013 = vst [vmem:[%s4 + $0x48] sm:$0xf] %v885
  %1014 = vst [vmem:[%s4 + $0x4c] sm:$0xf] %v886
  %1015 = vst [vmem:[%s4 + $0x50] sm:$0xf] %v887
  %1016 = vst [vmem:[%s4 + $0x54] sm:$0xf] %v888
  %1017 = vst [vmem:[%s4 + $0x58] sm:$0xf] %v889
  %1018 = vst [vmem:[%s4 + $0x5c] sm:$0xf] %v890
  %1019 = vst [vmem:[%s4 + $0x60] sm:$0xf] %v891
  %1020 = vst [vmem:[%s4 + $0x64] sm:$0xf] %v892
  %1021 = vst [vmem:[%s4 + $0x68] sm:$0xf] %v893
  %1022 = vst [vmem:[%s4 + $0x6c] sm:$0xf] %v894
  %1023 = vst [vmem:[%s4 + $0x70] sm:$0xf] %v895
  %1024 = vst [vmem:[%s4 + $0x74] sm:$0xf] %v896
  %1025 = vst [vmem:[%s4 + $0x78] sm:$0xf] %v897
  %1026 = vst [vmem:[%s4 + $0x7c] sm:$0xf] %v898
  %1027 = vst [vmem:[%s4 + $0x80] sm:$0xf] %v899
  %1028 = vst [vmem:[%s4 + $0x84] sm:$0xf] %v900
  %1029 = vst [vmem:[%s4 + $0x88] sm:$0xf] %v901
  %1030 = vst [vmem:[%s4 + $0x8c] sm:$0xf] %v902
  %1031 = vst [vmem:[%s4 + $0x90] sm:$0xf] %v903
  %1032 = vst [vmem:[%s4 + $0x94] sm:$0xf] %v904
  %1033 = vst [vmem:[%s4 + $0x98] sm:$0xf] %v905
  %1034 = vst [vmem:[%s4 + $0x9c] sm:$0xf] %v906
  %1035 = vst [vmem:[%s4 + $0xa0] sm:$0xf] %v907
  %1036 = vst [vmem:[%s4 + $0xa4] sm:$0xf] %v908
  %1037 = vst [vmem:[%s4 + $0xa8] sm:$0xf] %v909
  %1038 = vst [vmem:[%s4 + $0xac] sm:$0xf] %v910
  %1039 = vst [vmem:[%s4 + $0xb0] sm:$0xf] %v911
  %1040 = vst [vmem:[%s4 + $0xb4] sm:$0xf] %v912
  %1041 = vst [vmem:[%s4 + $0xb8] sm:$0xf] %v913
  %1042 = vst [vmem:[%s4 + $0xbc] sm:$0xf] %v914
  %1043 = vst [vmem:[%s4 + $0xc0] sm:$0xf] %v915
  %1044 = vst [vmem:[%s4 + $0xc4] sm:$0xf] %v916
  %1045 = vst [vmem:[%s4 + $0xc8] sm:$0xf] %v917
  %1046 = vst [vmem:[%s4 + $0xcc] sm:$0xf] %v918
  %1047 = vst [vmem:[%s4 + $0xd0] sm:$0xf] %v919
  %1048 = vst [vmem:[%s4 + $0xd4] sm:$0xf] %v920
  %1049 = vst [vmem:[%s4 + $0xd8] sm:$0xf] %v921
  %1050 = vst [vmem:[%s4 + $0xdc] sm:$0xf] %v922
  %1051 = vst [vmem:[%s4 + $0xe0] sm:$0xf] %v923
  %1052 = vst [vmem:[%s4 + $0xe4] sm:$0xf] %v924
  %1053 = vst [vmem:[%s4 + $0xe8] sm:$0xf] %v925
  %1054 = vst [vmem:[%s4 + $0xec] sm:$0xf] %v926
  %1055 = vst [vmem:[%s4 + $0xf0] sm:$0xf] %v927
  %1056 = vst [vmem:[%s4 + $0xf4] sm:$0xf] %v928
  %1057 = vst [vmem:[%s4 + $0xf8] sm:$0xf] %v929
  %1058 = vst [vmem:[%s4 + $0xfc] sm:$0xf] %v930
  %v1059 = vadd.f32 %v485, %v488
  %v1060 = vadd.f32 %v1059, %v493
  %v1061 = vadd.f32 %v1060, %v496
  %v1062 = vadd.f32 %v1061, %v501
  %v1063 = vadd.f32 %v1062, %v504
  %v1064 = vadd.f32 %v1063, %v509
  %v1065 = vadd.f32 %v1064, %v512
  %v1066 = vadd.f32 %v1065, %v517
  %v1067 = vadd.f32 %v1066, %v520
  %v1068 = vadd.f32 %v1067, %v525
  %v1069 = vadd.f32 %v1068, %v528
  %v1070 = vadd.f32 %v1069, %v533
  %v1071 = vadd.f32 %v1070, %v536
  %v1072 = vadd.f32 %v1071, %v541
  %v1073 = vadd.f32 %v1072, %v544
  %v1074 = vadd.f32 %v1073, %v549
  %v1075 = vadd.f32 %v1074, %v552
  %v1076 = vadd.f32 %v1075, %v557
  %v1077 = vadd.f32 %v1076, %v560
  %v1078 = vadd.f32 %v1077, %v565
  %v1079 = vadd.f32 %v1078, %v568
  %v1080 = vadd.f32 %v1079, %v573
  %v1081 = vadd.f32 %v1080, %v576
  %v1082 = vadd.f32 %v1081, %v581
  %v1083 = vadd.f32 %v1082, %v584
  %v1084 = vadd.f32 %v1083, %v589
  %v1085 = vadd.f32 %v1084, %v592
  %v1086 = vadd.f32 %v1085, %v597
  %v1087 = vadd.f32 %v1086, %v600
  %v1088 = vadd.f32 %v1087, %v605
  %v1089 = vadd.f32 %v1088, %v608
  %v1090 = vadd.f32 %v1089, %v613
  %v1091 = vadd.f32 %v1090, %v616
  %v1092 = vadd.f32 %v1091, %v621
  %v1093 = vadd.f32 %v1092, %v624
  %v1094 = vadd.f32 %v1093, %v629
  %v1095 = vadd.f32 %v1094, %v632
  %v1096 = vadd.f32 %v1095, %v637
  %v1097 = vadd.f32 %v1096, %v640
  %v1098 = vadd.f32 %v1097, %v645
  %v1099 = vadd.f32 %v1098, %v648
  %v1100 = vadd.f32 %v1099, %v653
  %v1101 = vadd.f32 %v1100, %v656
  %v1102 = vadd.f32 %v1101, %v661
  %v1103 = vadd.f32 %v1102, %v664
  %v1104 = vadd.f32 %v1103, %v669
  %v1105 = vadd.f32 %v1104, %v672
  %v1106 = vadd.f32 %v1105, %v677
  %v1107 = vadd.f32 %v1106, %v680
  %v1108 = vadd.f32 %v1107, %v685
  %v1109 = vadd.f32 %v1108, %v688
  %v1110 = vadd.f32 %v1109, %v693
  %v1111 = vadd.f32 %v1110, %v696
  %v1112 = vadd.f32 %v1111, %v701
  %v1113 = vadd.f32 %v1112, %v704
  %v1114 = vadd.f32 %v1113, %v709
  %v1115 = vadd.f32 %v1114, %v712
  %v1116 = vadd.f32 %v1115, %v717
  %v1117 = vadd.f32 %v1116, %v720
  %v1118 = vadd.f32 %v1117, %v725
  %v1119 = vadd.f32 %v1118, %v728
  %v1120 = vadd.f32 %v1119, %v733
  %v1121 = vadd.f32 %v1120, %v736
  %v1122 = vrot.slane %v1121, 4
  %v1123 = vadd.f32 %v1121, %v1122
  %v1124 = vrot.slane %v1123, 2
  %v1125 = vadd.f32 %v1123, %v1124
  %v1126 = vrot.slane %v1125, 1
  %v1127 = vadd.f32 %v1125, %v1126
  %v1128 = vmul.f32 %v485, %v485
  %v1129 = vmul.f32 %v488, %v488
  %v1130 = vmul.f32 %v493, %v493
  %v1131 = vmul.f32 %v496, %v496
  %v1132 = vmul.f32 %v501, %v501
  %v1133 = vmul.f32 %v504, %v504
  %v1134 = vmul.f32 %v509, %v509
  %v1135 = vmul.f32 %v512, %v512
  %v1136 = vmul.f32 %v517, %v517
  %v1137 = vmul.f32 %v520, %v520
  %v1138 = vmul.f32 %v525, %v525
  %v1139 = vmul.f32 %v528, %v528
  %v1140 = vmul.f32 %v533, %v533
  %v1141 = vmul.f32 %v536, %v536
  %v1142 = vmul.f32 %v541, %v541
  %v1143 = vmul.f32 %v544, %v544
  %v1144 = vmul.f32 %v549, %v549
  %v1145 = vmul.f32 %v552, %v552
  %v1146 = vmul.f32 %v557, %v557
  %v1147 = vmul.f32 %v560, %v560
  %v1148 = vmul.f32 %v565, %v565
  %v1149 = vmul.f32 %v568, %v568
  %v1150 = vmul.f32 %v573, %v573
  %v1151 = vmul.f32 %v576, %v576
  %v1152 = vmul.f32 %v581, %v581
  %v1153 = vmul.f32 %v584, %v584
  %v1154 = vmul.f32 %v589, %v589
  %v1155 = vmul.f32 %v592, %v592
  %v1156 = vmul.f32 %v597, %v597
  %v1157 = vmul.f32 %v600, %v600
  %v1158 = vmul.f32 %v605, %v605
  %v1159 = vmul.f32 %v608, %v608
  %v1160 = vmul.f32 %v613, %v613
  %v1161 = vmul.f32 %v616, %v616
  %v1162 = vmul.f32 %v621, %v621
  %v1163 = vmul.f32 %v624, %v624
  %v1164 = vmul.f32 %v629, %v629
  %v1165 = vmul.f32 %v632, %v632
  %v1166 = vmul.f32 %v637, %v637
  %v1167 = vmul.f32 %v640, %v640
  %v1168 = vmul.f32 %v645, %v645
  %v1169 = vmul.f32 %v648, %v648
  %v1170 = vmul.f32 %v653, %v653
  %v1171 = vmul.f32 %v656, %v656
  %v1172 = vmul.f32 %v661, %v661
  %v1173 = vmul.f32 %v664, %v664
  %v1174 = vmul.f32 %v669, %v669
  %v1175 = vmul.f32 %v672, %v672
  %v1176 = vmul.f32 %v677, %v677
  %v1177 = vmul.f32 %v680, %v680
  %v1178 = vmul.f32 %v685, %v685
  %v1179 = vmul.f32 %v688, %v688
  %v1180 = vmul.f32 %v693, %v693
  %v1181 = vmul.f32 %v696, %v696
  %v1182 = vmul.f32 %v701, %v701
  %v1183 = vmul.f32 %v704, %v704
  %v1184 = vmul.f32 %v709, %v709
  %v1185 = vmul.f32 %v712, %v712
  %v1186 = vmul.f32 %v717, %v717
  %v1187 = vmul.f32 %v720, %v720
  %v1188 = vmul.f32 %v725, %v725
  %v1189 = vmul.f32 %v728, %v728
  %v1190 = vmul.f32 %v733, %v733
  %v1191 = vmul.f32 %v736, %v736
  %v1192 = vadd.f32 %v1128, %v1129
  %v1193 = vadd.f32 %v1192, %v1130
  %v1194 = vadd.f32 %v1193, %v1131
  %v1195 = vadd.f32 %v1194, %v1132
  %v1196 = vadd.f32 %v1195, %v1133
  %v1197 = vadd.f32 %v1196, %v1134
  %v1198 = vadd.f32 %v1197, %v1135
  %v1199 = vadd.f32 %v1198, %v1136
  %v1200 = vadd.f32 %v1199, %v1137
  %v1201 = vadd.f32 %v1200, %v1138
  %v1202 = vadd.f32 %v1201, %v1139
  %v1203 = vadd.f32 %v1202, %v1140
  %v1204 = vadd.f32 %v1203, %v1141
  %v1205 = vadd.f32 %v1204, %v1142
  %v1206 = vadd.f32 %v1205, %v1143
  %v1207 = vadd.f32 %v1206, %v1144
  %v1208 = vadd.f32 %v1207, %v1145
  %v1209 = vadd.f32 %v1208, %v1146
  %v1210 = vadd.f32 %v1209, %v1147
  %v1211 = vadd.f32 %v1210, %v1148
  %v1212 = vadd.f32 %v1211, %v1149
  %v1213 = vadd.f32 %v1212, %v1150
  %v1214 = vadd.f32 %v1213, %v1151
  %v1215 = vadd.f32 %v1214, %v1152
  %v1216 = vadd.f32 %v1215, %v1153
  %v1217 = vadd.f32 %v1216, %v1154
  %v1218 = vadd.f32 %v1217, %v1155
  %v1219 = vadd.f32 %v1218, %v1156
  %v1220 = vadd.f32 %v1219, %v1157
  %v1221 = vadd.f32 %v1220, %v1158
  %v1222 = vadd.f32 %v1221, %v1159
  %v1223 = vadd.f32 %v1222, %v1160
  %v1224 = vadd.f32 %v1223, %v1161
  %v1225 = vadd.f32 %v1224, %v1162
  %v1226 = vadd.f32 %v1225, %v1163
  %v1227 = vadd.f32 %v1226, %v1164
  %v1228 = vadd.f32 %v1227, %v1165
  %v1229 = vadd.f32 %v1228, %v1166
  %v1230 = vadd.f32 %v1229, %v1167
  %v1231 = vadd.f32 %v1230, %v1168
  %v1232 = vadd.f32 %v1231, %v1169
  %v1233 = vadd.f32 %v1232, %v1170
  %v1234 = vadd.f32 %v1233, %v1171
  %v1235 = vadd.f32 %v1234, %v1172
  %v1236 = vadd.f32 %v1235, %v1173
  %v1237 = vadd.f32 %v1236, %v1174
  %v1238 = vadd.f32 %v1237, %v1175
  %v1239 = vadd.f32 %v1238, %v1176
  %v1240 = vadd.f32 %v1239, %v1177
  %v1241 = vadd.f32 %v1240, %v1178
  %v1242 = vadd.f32 %v1241, %v1179
  %v1243 = vadd.f32 %v1242, %v1180
  %v1244 = vadd.f32 %v1243, %v1181
  %v1245 = vadd.f32 %v1244, %v1182
  %v1246 = vadd.f32 %v1245, %v1183
  %v1247 = vadd.f32 %v1246, %v1184
  %v1248 = vadd.f32 %v1247, %v1185
  %v1249 = vadd.f32 %v1248, %v1186
  %v1250 = vadd.f32 %v1249, %v1187
  %v1251 = vadd.f32 %v1250, %v1188
  %v1252 = vadd.f32 %v1251, %v1189
  %v1253 = vadd.f32 %v1252, %v1190
  %v1254 = vadd.f32 %v1253, %v1191
  %v1255 = vrot.slane %v1254, 4
  %v1256 = vadd.f32 %v1254, %v1255
  %v1257 = vrot.slane %v1256, 2
  %v1258 = vadd.f32 %v1256, %v1257
  %v1259 = vrot.slane %v1258, 1
  %v1260 = vadd.f32 %v1258, %v1259
  %v1261 = vlaneseq
  %v1262 = vshrl.u32 %v1261, 7
  %vm1263 = vcmp.eq.s32.totalorder %v1262, 0
  %vm1264 = vcmp.eq.s32.totalorder %v1262, 1
  %v1265 = vsel %vm1264, %v1260, 0.0
  %v1266 = vsel %vm1263, %v1127, %v1265
  %1267 = vst [vmem:[%s5] sm:$0xff] %v1266
  // Predicated region
  $region18: #{residual_module_forward.7} parent=0 // pred_check
    _
  $region19: #{residual_module_forward.7} parent=0 // pred_check_branch
    %1269 = sbr.rel (0) target = $region21
  $region20: #{residual_module_forward.7} parent=0 // pred_region
    _
  $region21: #{residual_module_forward.7} parent=0 // pred_fallthru
    _
  // Predicated region
  $region22: #{residual_module_forward.7} parent=0 // pred_check
    _
  $region23: #{residual_module_forward.7} parent=0 // pred_check_branch
    %1271 = sbr.rel (0) target = $region25
  $region24: #{residual_module_forward.7} parent=0 // pred_region
    _
  $region25: #{residual_module_forward.7} parent=0 // pred_fallthru
    _
  // Predicated region
  $region26: #{residual_module_forward.7} parent=0 // pred_check
    _
  $region27: #{residual_module_forward.7} parent=0 // pred_check_branch
    %1273 = sbr.rel (0) target = $region29
  $region28: #{residual_module_forward.7} parent=0 // pred_region
    _
  $region29: #{residual_module_forward.7} parent=0 // pred_fallthru
    _
  // Predicated region
  $region30: #{residual_module_forward.7} parent=0 // pred_check
    _
  $region31: #{residual_module_forward.7} parent=0 // pred_check_branch
    %1275 = sbr.rel (0) target = $region33
  $region32: #{residual_module_forward.7} parent=0 // pred_region
    _
  $region33: #{residual_module_forward.7} parent=0 // pred_fallthru
    _

// kernel: residual_module_forward.6
$region0: #{residual_module_forward.6}
  #allocation0 [shape = 'u32[]', space=smem, size = 0x4, offset = 0x4, fixed_abs, tag = 'smem constant byte address 0x4 - core index']
  #allocation1 [shape = 'u32[144,128]{1,0:T(1,128)}', space=vmem, size = 0x12000, scoped, tag = 'internal scratch']
  %s0 = inlined_call_operand.vmem [shape: bf16[2,18,16,384], index: 0, kind: input, shape index: {}]
  %s1 = inlined_call_operand.vmem [shape: bf16[3,384,128], index: 1, kind: input, shape index: {}]
  %s2 = inlined_call_operand.vmem [shape: f32[1,1,384], index: 2, kind: input, shape index: {}]
  %s3 = inlined_call_operand.vmem [shape: f32[1,1,384], index: 3, kind: input, shape index: {}]
  %s4 = inlined_call_operand.vmem [shape: bf16[2,256,128], index: 4, kind: output, shape index: {0}]
  %s5 = inlined_call_operand.vmem [shape: f32[2,8,128], index: 5, kind: output, shape index: {1}]
  %6 = xla_tuple %s4, %s5
  %s7 = sld [smem:[#allocation0]]
  $region57: #{residual_module_forward.6} parent=0
    _
  %s9 = ssub.s32 1, %s7
  %s10 = scalar_select 0, %s9, %s7
  loop: start=0, step=1, limit=4
  $region2: #{residual_module_forward.6} parent=0 // loop_pre_header
    _
  $region3: #{residual_module_forward.6} parent=0 // loop_header
    %s12 = sphi 0, %s16
    %p13 = scmp.ge.s32.totalorder %s12, 4
    %s19 = sphi 0, %s31
    %s20 = sphi 0, %s27
    %s21 = sphi 0, %s19
    %s22 = sphi 0, %s20
    %s23 = sphi 0, %s21
    %s24 = sphi 0, %s22
    %s34 = sphi 0, %s36
    %s37 = sphi 0, %s34
    %s38 = sphi 0, %s37
    %s54 = sphi 0, %s38
    %s60 = sphi 0, %s62
    %s63 = sphi 0, %s60
    %s64 = sphi 0, %s63
    %s80 = sphi 0, %s64
    %s84 = sphi 0, %s84
    %s86 = sphi 0, %s84
    %s87 = sphi 0, %s86
    %s101 = sphi 0, %s87
    %s105 = sphi 0, %s105
    %s107 = sphi 0, %s105
    %s108 = sphi 0, %s107
    %s122 = sphi 0, %s108
    %s130 = sphi 0, %s132
    %s133 = sphi 0, %s130
    %s134 = sphi 0, %s133
    %s150 = sphi 0, %s134
    %s158 = sphi 0, %s160
    %s161 = sphi 0, %s158
    %s162 = sphi 0, %s161
    %s178 = sphi 0, %s162
  $region4: #{residual_module_forward.6} parent=0 // loop_header_branch
    %15 = sbr.rel (%p13) target = $region8
  $region5: #{residual_module_forward.6} parent=0 // loop_body
    %s17 = ssub.s32 %s12, 1
    %s18 = ssub.s32 %s12, 2
    %s25 = sadd.s32 1, %s20
    %p26 = scmp.ge.s32.totalorder %s25, 1
    %s27 = scalar_select %p26, 0, %s25
    %s28 = sadd.s32 1, %s19
    %s29 = scalar_select %p26, %s28, %s19
    %p30 = scmp.ge.s32.totalorder %s29, 2
    %s31 = scalar_select %p30, 0, %s29
    %s32 = ssub.s32 %s19, %s31
    %p33 = scmp.eq.s32.totalorder %s32, 0
    %s35 = sadd.s32 %s34, 1
    %s36 = scalar_select %p33, %s34, %s35
    %p39 = pneg %p33
    %p40 = scmp.eq.s32.totalorder %s12, 1
    %p41 = por %p39, %p40
    %p42 = scmp.ne.s32.totalorder %s34, %s37
    %p43 = scmp.eq.s32.totalorder %s12, 0
    %p44 = por %p42, %p43
    %p45 = scmp.ne.s32.totalorder %s34, %s37
    %p46 = scmp.eq.s32.totalorder %s17, 1
    %p47 = por %p45, %p46
    %p48 = scmp.ne.s32.totalorder %s37, %s38
    %p49 = scmp.eq.s32.totalorder %s17, 0
    %p50 = por %p48, %p49
    %p51 = scmp.ne.s32.totalorder %s37, %s38
    %p52 = scmp.eq.s32.totalorder %s18, 1
    %p53 = por %p51, %p52
    %p55 = scmp.ne.s32.totalorder %s38, %s54
    %p56 = scmp.eq.s32.totalorder %s18, 0
    %p57 = por %p55, %p56
    %s58 = ssub.s32 %s20, %s27
    %p59 = scmp.eq.s32.totalorder %s58, 0
    %s61 = sadd.s32 %s60, 1
    %s62 = scalar_select %p59, %s60, %s61
    %p65 = pneg %p59
    %p66 = scmp.eq.s32.totalorder %s12, 1
    %p67 = por %p65, %p66
    %p68 = scmp.ne.s32.totalorder %s60, %s63
    %p69 = scmp.eq.s32.totalorder %s12, 0
    %p70 = por %p68, %p69
    %p71 = scmp.ne.s32.totalorder %s60, %s63
    %p72 = scmp.eq.s32.totalorder %s17, 1
    %p73 = por %p71, %p72
    %p74 = scmp.ne.s32.totalorder %s63, %s64
    %p75 = scmp.eq.s32.totalorder %s17, 0
    %p76 = por %p74, %p75
    %p77 = scmp.ne.s32.totalorder %s63, %s64
    %p78 = scmp.eq.s32.totalorder %s18, 1
    %p79 = por %p77, %p78
    %p81 = scmp.ne.s32.totalorder %s64, %s80
    %p82 = scmp.eq.s32.totalorder %s18, 0
    %p83 = por %p81, %p82
    %s85 = sadd.s32 %s84, 1
    %p88 = scmp.eq.s32.totalorder %s12, 1
    %p89 = scmp.ne.s32.totalorder %s84, %s86
    %p90 = scmp.eq.s32.totalorder %s12, 0
    %p91 = por %p89, %p90
    %p92 = scmp.ne.s32.totalorder %s84, %s86
    %p93 = scmp.eq.s32.totalorder %s17, 1
    %p94 = por %p92, %p93
    %p95 = scmp.ne.s32.totalorder %s86, %s87
    %p96 = scmp.eq.s32.totalorder %s17, 0
    %p97 = por %p95, %p96
    %p98 = scmp.ne.s32.totalorder %s86, %s87
    %p99 = scmp.eq.s32.totalorder %s18, 1
    %p100 = por %p98, %p99
    %p102 = scmp.ne.s32.totalorder %s87, %s101
    %p103 = scmp.eq.s32.totalorder %s18, 0
    %p104 = por %p102, %p103
    %s106 = sadd.s32 %s105, 1
    %p109 = scmp.eq.s32.totalorder %s12, 1
    %p110 = scmp.ne.s32.totalorder %s105, %s107
    %p111 = scmp.eq.s32.totalorder %s12, 0
    %p112 = por %p110, %p111
    %p113 = scmp.ne.s32.totalorder %s105, %s107
    %p114 = scmp.eq.s32.totalorder %s17, 1
    %p115 = por %p113, %p114
    %p116 = scmp.ne.s32.totalorder %s107, %s108
    %p117 = scmp.eq.s32.totalorder %s17, 0
    %p118 = por %p116, %p117
    %p119 = scmp.ne.s32.totalorder %s107, %s108
    %p120 = scmp.eq.s32.totalorder %s18, 1
    %p121 = por %p119, %p120
    %p123 = scmp.ne.s32.totalorder %s108, %s122
    %p124 = scmp.eq.s32.totalorder %s18, 0
    %p125 = por %p123, %p124
    %s126 = ssub.s32 %s19, %s31
    %s127 = ssub.s32 %s20, %s27
    %s128 = sor.u32 %s126, %s127
    %p129 = scmp.eq.s32.totalorder %s128, 0
    %s131 = sadd.s32 %s130, 1
    %s132 = scalar_select %p129, %s130, %s131
    %p135 = pneg %p129
    %p136 = scmp.eq.s32.totalorder %s12, 1
    %p137 = por %p135, %p136
    %p138 = scmp.ne.s32.totalorder %s130, %s133
    %p139 = scmp.eq.s32.totalorder %s12, 0
    %p140 = por %p138, %p139
    %p141 = scmp.ne.s32.totalorder %s130, %s133
    %p142 = scmp.eq.s32.totalorder %s17, 1
    %p143 = por %p141, %p142
    %p144 = scmp.ne.s32.totalorder %s133, %s134
    %p145 = scmp.eq.s32.totalorder %s17, 0
    %p146 = por %p144, %p145
    %p147 = scmp.ne.s32.totalorder %s133, %s134
    %p148 = scmp.eq.s32.totalorder %s18, 1
    %p149 = por %p147, %p148
    %p151 = scmp.ne.s32.totalorder %s134, %s150
    %p152 = scmp.eq.s32.totalorder %s18, 0
    %p153 = por %p151, %p152
    %s154 = ssub.s32 %s19, %s31
    %s155 = ssub.s32 %s20, %s27
    %s156 = sor.u32 %s154, %s155
    %p157 = scmp.eq.s32.totalorder %s156, 0
    %s159 = sadd.s32 %s158, 1
    %s160 = scalar_select %p157, %s158, %s159
    %p163 = pneg %p157
    %p164 = scmp.eq.s32.totalorder %s12, 1
    %p165 = por %p163, %p164
    %p166 = scmp.ne.s32.totalorder %s158, %s161
    %p167 = scmp.eq.s32.totalorder %s12, 0
    %p168 = por %p166, %p167
    %p169 = scmp.ne.s32.totalorder %s158, %s161
    %p170 = scmp.eq.s32.totalorder %s17, 1
    %p171 = por %p169, %p170
    %p172 = scmp.ne.s32.totalorder %s161, %s162
    %p173 = scmp.eq.s32.totalorder %s17, 0
    %p174 = por %p172, %p173
    %p175 = scmp.ne.s32.totalorder %s161, %s162
    %p176 = scmp.eq.s32.totalorder %s18, 1
    %p177 = por %p175, %p176
    %p179 = scmp.ne.s32.totalorder %s162, %s178
    %p180 = scmp.eq.s32.totalorder %s18, 0
    %p181 = por %p179, %p180
    %p182 = scmp.le.s32.totalorder 1, %s12
    %p183 = scmp.lt.s32.totalorder %s12, 3
    %p184 = pnand %p182, %p183
    %p185 = pneg %p184
    // Predicated region
    $region9: #{residual_module_forward.6} parent=5 // pred_check
      _
    $region10: #{residual_module_forward.6} parent=5 // pred_check_branch
      %187 = sbr.rel (%p184) target = $region12
    $region11: #{residual_module_forward.6} parent=5 // pred_region
      %s188 = ssub.s32 %s12, 1
      // Predicated region
      $region13: #{residual_module_forward.6} parent=11 // pred_check
        %p189 = pneg %p76
      $region14: #{residual_module_forward.6} parent=11 // pred_check_branch
        %191 = sbr.rel (%p189) target = $region16
      $region15: #{residual_module_forward.6} parent=11 // pred_region
        %p192 = scmp.lt.s32.totalorder %s22, 0
        %s193 = scalar_select %p192, %s22, 0
        %s194 = smul.addr %s193, 4
        %s195 = scalar_lea.vmem %s1, %s194
      $region16: #{residual_module_forward.6} parent=11 // pred_fallthru
        _
      // Predicated region
      $region17: #{residual_module_forward.6} parent=11 // pred_check
        %p196 = pneg %p97
      $region18: #{residual_module_forward.6} parent=11 // pred_check_branch
        %198 = sbr.rel (%p196) target = $region20
      $region19: #{residual_module_forward.6} parent=11 // pred_region
        _
      $region20: #{residual_module_forward.6} parent=11 // pred_fallthru
        _
      // Predicated region
      $region21: #{residual_module_forward.6} parent=11 // pred_check
        %p199 = pneg %p118
      $region22: #{residual_module_forward.6} parent=11 // pred_check_branch
        %201 = sbr.rel (%p199) target = $region24
      $region23: #{residual_module_forward.6} parent=11 // pred_region
        _
      $region24: #{residual_module_forward.6} parent=11 // pred_fallthru
        _
    $region12: #{residual_module_forward.6} parent=5 // pred_fallthru
      _
    %p202 = scmp.lt.s32.totalorder %s12, 2
    // Predicated region
    $region25: #{residual_module_forward.6} parent=5 // pred_check
      %p203 = pneg %p202
    $region26: #{residual_module_forward.6} parent=5 // pred_check_branch
      %205 = sbr.rel (%p203) target = $region28
    $region27: #{residual_module_forward.6} parent=5 // pred_region
      // Predicated region
      $region29: #{residual_module_forward.6} parent=27 // pred_check
        %p206 = pneg %p44
      $region30: #{residual_module_forward.6} parent=27 // pred_check_branch
        %208 = sbr.rel (%p206) target = $region32
      $region31: #{residual_module_forward.6} parent=27 // pred_region
        %p209 = scmp.lt.s32.totalorder %s19, 1
        %s210 = scalar_select %p209, %s19, 1
        %s211 = smul.addr %s210, 108
        %s212 = smul.addr %s211, 4
        %s213 = scalar_lea.vmem %s0, %s212
      $region32: #{residual_module_forward.6} parent=27 // pred_fallthru
        _
    $region28: #{residual_module_forward.6} parent=5 // pred_fallthru
      _
    %p214 = scmp.le.s32.totalorder 1, %s12
    %p215 = scmp.lt.s32.totalorder %s12, 3
    %p216 = pnand %p214, %p215
    %p217 = pneg %p216
    // Predicated region
    $region33: #{residual_module_forward.6} parent=5 // pred_check
      _
    $region34: #{residual_module_forward.6} parent=5 // pred_check_branch
      %219 = sbr.rel (%p216) target = $region36
    $region35: #{residual_module_forward.6} parent=5 // pred_region
      %s220 = ssub.s32 %s12, 1
      %p221 = scmp.lt.s32.totalorder %s21, 1
      %s222 = scalar_select %p221, %s21, 1
      %s223 = smul.addr %s222, 108
      %s224 = smul.addr %s223, 4
      %s225 = scalar_lea.vmem %s0, %s224
      %p226 = pneg %p50
      %p227 = pneg %p47
      %p228 = scmp.lt.s32.totalorder %s22, 0
      %s229 = scalar_select %p228, %s22, 0
      %s230 = smul.addr %s229, 4
      %s231 = scalar_lea.vmem %s1, %s230
      %p232 = pneg %p76
      %p233 = pneg %p73
      %p234 = pneg %p97
      %p235 = pneg %p94
      %p236 = pneg %p118
      %p237 = pneg %p115
      %p238 = pneg %p146
      %p239 = pneg %p143
      %p240 = scmp.lt.s32.totalorder %s21, 1
      %s241 = scalar_select %p240, %s21, 1
      %p242 = scmp.lt.s32.totalorder %s22, 0
      %s243 = scalar_select %p242, %s22, 0
      %s244 = smul.addr %s241, 32
      %s245 = sadd.s32 %s243, %s244
      %s246 = smul.addr %s245, 4
      %s247 = scalar_lea.vmem %s4, %s246
      %p248 = pneg %p174
      %p249 = pneg %p171
      %p250 = scmp.lt.s32.totalorder %s21, 1
      %s251 = scalar_select %p250, %s21, 1
      %p252 = scmp.lt.s32.totalorder %s22, 0
      %s253 = scalar_select %p252, %s22, 0
      %s254 = sadd.s32 %s253, %s251
      %s255 = smul.addr %s254, 8
      %s256 = scalar_lea.vmem %s5, %s255
      %p257 = scmp.lt.s32.totalorder %s21, 1
      %s258 = scalar_select %p257, %s21, 1
      %s259 = smul.addr %s258, 108
      %s260 = smul.addr %s259, 4
      %s261 = scalar_lea.vmem %s0, %s260
      %p262 = scmp.lt.s32.totalorder %s22, 0
      %s263 = scalar_select %p262, %s22, 0
      %s264 = smul.addr %s263, 4
      %s265 = scalar_lea.vmem %s1, %s264
      %p266 = scmp.lt.s32.totalorder %s21, 1
      %s267 = scalar_select %p266, %s21, 1
      %p268 = scmp.lt.s32.totalorder %s22, 0
      %s269 = scalar_select %p268, %s22, 0
      %s270 = smul.addr %s267, 32
      %s271 = sadd.s32 %s269, %s270
      %s272 = smul.addr %s271, 4
      %s273 = scalar_lea.vmem %s4, %s272
      %p274 = scmp.lt.s32.totalorder %s21, 1
      %s275 = scalar_select %p274, %s21, 1
      %p276 = scmp.lt.s32.totalorder %s22, 0
      %s277 = scalar_select %p276, %s22, 0
      %s278 = sadd.s32 %s277, %s275
      %s279 = smul.addr %s278, 8
      %s280 = scalar_lea.vmem %s5, %s279
      %v282 = vld [vmem:[%s261] sm:$0xff]
      %v283 = vld [vmem:[%s261 + $0x8] sm:$0xf]
      %v284 = vld [vmem:[%s261 + $0xc] sm:$0xff]
      %v285 = vld [vmem:[%s261 + $0x14] sm:$0xf]
      %v286 = vld [vmem:[%s261 + $0x18] sm:$0xff]
      %v287 = vld [vmem:[%s261 + $0x20] sm:$0xf]
      %v288 = vld [vmem:[%s261 + $0x24] sm:$0xff]
      %v289 = vld [vmem:[%s261 + $0x2c] sm:$0xf]
      %v290 = vld [vmem:[%s261 + $0x30] sm:$0xff]
      %v291 = vld [vmem:[%s261 + $0x38] sm:$0xf]
      %v292 = vld [vmem:[%s261 + $0x3c] sm:$0xff]
      %v293 = vld [vmem:[%s261 + $0x44] sm:$0xf]
      %v294 = vld [vmem:[%s261 + $0x48] sm:$0xff]
      %v295 = vld [vmem:[%s261 + $0x50] sm:$0xf]
      %v296 = vld [vmem:[%s261 + $0x54] sm:$0xff]
      %v297 = vld [vmem:[%s261 + $0x5c] sm:$0xf]
      %v298 = vld [vmem:[%s261 + $0x60] sm:$0xff]
      %v299 = vld [vmem:[%s261 + $0x68] sm:$0xf]
      %v300 = vld [vmem:[%s261 + $0x6c] sm:$0xff]
      %v301 = vld [vmem:[%s261 + $0x74] sm:$0xf]
      %v302 = vld [vmem:[%s261 + $0x78] sm:$0xff]
      %v303 = vld [vmem:[%s261 + $0x80] sm:$0xf]
      %v304 = vld [vmem:[%s261 + $0x84] sm:$0xff]
      %v305 = vld [vmem:[%s261 + $0x8c] sm:$0xf]
      %v306 = vld [vmem:[%s261 + $0x90] sm:$0xff]
      %v307 = vld [vmem:[%s261 + $0x98] sm:$0xf]
      %v308 = vld [vmem:[%s261 + $0x9c] sm:$0xff]
      %v309 = vld [vmem:[%s261 + $0xa4] sm:$0xf]
      %v310 = vld [vmem:[%s261 + $0xa8] sm:$0xff]
      %v311 = vld [vmem:[%s261 + $0xb0] sm:$0xf]
      %v312 = vld [vmem:[%s261 + $0xb4] sm:$0xff]
      %v313 = vld [vmem:[%s261 + $0xbc] sm:$0xf]
      %v314 = vld [vmem:[%s261 + $0xc0] sm:$0xff]
      %v315 = vld [vmem:[%s261 + $0xc8] sm:$0xf]
      %v316 = vld [vmem:[%s261 + $0xcc] sm:$0xff]
      %v317 = vld [vmem:[%s261 + $0xd4] sm:$0xf]
      %v318 = vld [vmem:[%s261 + $0xd8] sm:$0xff]
      %v319 = vld [vmem:[%s261 + $0xe0] sm:$0xf]
      %v320 = vld [vmem:[%s261 + $0xe4] sm:$0xff]
      %v321 = vld [vmem:[%s261 + $0xec] sm:$0xf]
      %v322 = vld [vmem:[%s261 + $0xf0] sm:$0xff]
      %v323 = vld [vmem:[%s261 + $0xf8] sm:$0xf]
      %v324 = vld [vmem:[%s261 + $0xfc] sm:$0xff]
      %v325 = vld [vmem:[%s261 + $0x104] sm:$0xf]
      %v326 = vld [vmem:[%s261 + $0x108] sm:$0xff]
      %v327 = vld [vmem:[%s261 + $0x110] sm:$0xf]
      %v328 = vld [vmem:[%s261 + $0x114] sm:$0xff]
      %v329 = vld [vmem:[%s261 + $0x11c] sm:$0xf]
      %v330 = vld [vmem:[%s261 + $0x120] sm:$0xff]
      %v331 = vld [vmem:[%s261 + $0x128] sm:$0xf]
      %v332 = vld [vmem:[%s261 + $0x12c] sm:$0xff]
      %v333 = vld [vmem:[%s261 + $0x134] sm:$0xf]
      %v334 = vld [vmem:[%s261 + $0x138] sm:$0xff]
      %v335 = vld [vmem:[%s261 + $0x140] sm:$0xf]
      %v336 = vld [vmem:[%s261 + $0x144] sm:$0xff]
      %v337 = vld [vmem:[%s261 + $0x14c] sm:$0xf]
      %v338 = vld [vmem:[%s261 + $0x150] sm:$0xff]
      %v339 = vld [vmem:[%s261 + $0x158] sm:$0xf]
      %v340 = vld [vmem:[%s261 + $0x15c] sm:$0xff]
      %v341 = vld [vmem:[%s261 + $0x164] sm:$0xf]
      %v342 = vld [vmem:[%s261 + $0x168] sm:$0xff]
      %v343 = vld [vmem:[%s261 + $0x170] sm:$0xf]
      %v344 = vld [vmem:[%s261 + $0x174] sm:$0xff]
      %v345 = vld [vmem:[%s261 + $0x17c] sm:$0xf]
      %v346 = vld [vmem:[%s261 + $0x180] sm:$0xff]
      %v347 = vld [vmem:[%s261 + $0x188] sm:$0xf]
      %v348 = vld [vmem:[%s261 + $0x18c] sm:$0xff]
      %v349 = vld [vmem:[%s261 + $0x194] sm:$0xf]
      %v350 = vld [vmem:[%s261 + $0x198] sm:$0xff]
      %v351 = vld [vmem:[%s261 + $0x1a0] sm:$0xf]
      %v352 = vld [vmem:[%s261 + $0x1a4] sm:$0xff]
      %v353 = vld [vmem:[%s261 + $0x1ac] sm:$0xf]
      %v354 = vunpack.c.l.bf16 %v282
      %v355 = vunpack.c.h.bf16 %v282
      %v356 = vunpack.c.l.bf16 %v283
      %v357 = vunpack.c.l.bf16 %v284
      %v358 = vunpack.c.h.bf16 %v284
      %v359 = vunpack.c.l.bf16 %v285
      %v360 = vunpack.c.l.bf16 %v286
      %v361 = vunpack.c.h.bf16 %v286
      %v362 = vunpack.c.l.bf16 %v287
      %v363 = vunpack.c.l.bf16 %v288
      %v364 = vunpack.c.h.bf16 %v288
      %v365 = vunpack.c.l.bf16 %v289
      %v366 = vunpack.c.l.bf16 %v290
      %v367 = vunpack.c.h.bf16 %v290
      %v368 = vunpack.c.l.bf16 %v291
      %v369 = vunpack.c.l.bf16 %v292
      %v370 = vunpack.c.h.bf16 %v292
      %v371 = vunpack.c.l.bf16 %v293
      %v372 = vunpack.c.l.bf16 %v294
      %v373 = vunpack.c.h.bf16 %v294
      %v374 = vunpack.c.l.bf16 %v295
      %v375 = vunpack.c.l.bf16 %v296
      %v376 = vunpack.c.h.bf16 %v296
      %v377 = vunpack.c.l.bf16 %v297
      %v378 = vunpack.c.l.bf16 %v298
      %v379 = vunpack.c.h.bf16 %v298
      %v380 = vunpack.c.l.bf16 %v299
      %v381 = vunpack.c.l.bf16 %v300
      %v382 = vunpack.c.h.bf16 %v300
      %v383 = vunpack.c.l.bf16 %v301
      %v384 = vunpack.c.l.bf16 %v302
      %v385 = vunpack.c.h.bf16 %v302
      %v386 = vunpack.c.l.bf16 %v303
      %v387 = vunpack.c.l.bf16 %v304
      %v388 = vunpack.c.h.bf16 %v304
      %v389 = vunpack.c.l.bf16 %v305
      %v390 = vunpack.c.l.bf16 %v306
      %v391 = vunpack.c.h.bf16 %v306
      %v392 = vunpack.c.l.bf16 %v307
      %v393 = vunpack.c.l.bf16 %v308
      %v394 = vunpack.c.h.bf16 %v308
      %v395 = vunpack.c.l.bf16 %v309
      %v396 = vunpack.c.l.bf16 %v310
      %v397 = vunpack.c.h.bf16 %v310
      %v398 = vunpack.c.l.bf16 %v311
      %v399 = vunpack.c.l.bf16 %v312
      %v400 = vunpack.c.h.bf16 %v312
      %v401 = vunpack.c.l.bf16 %v313
      %v402 = vunpack.c.l.bf16 %v314
      %v403 = vunpack.c.h.bf16 %v314
      %v404 = vunpack.c.l.bf16 %v315
      %v405 = vunpack.c.l.bf16 %v316
      %v406 = vunpack.c.h.bf16 %v316
      %v407 = vunpack.c.l.bf16 %v317
      %v408 = vunpack.c.l.bf16 %v318
      %v409 = vunpack.c.h.bf16 %v318
      %v410 = vunpack.c.l.bf16 %v319
      %v411 = vunpack.c.l.bf16 %v320
      %v412 = vunpack.c.h.bf16 %v320
      %v413 = vunpack.c.l.bf16 %v321
      %v414 = vunpack.c.l.bf16 %v322
      %v415 = vunpack.c.h.bf16 %v322
      %v416 = vunpack.c.l.bf16 %v323
      %v417 = vunpack.c.l.bf16 %v324
      %v418 = vunpack.c.h.bf16 %v324
      %v419 = vunpack.c.l.bf16 %v325
      %v420 = vunpack.c.l.bf16 %v326
      %v421 = vunpack.c.h.bf16 %v326
      %v422 = vunpack.c.l.bf16 %v327
      %v423 = vunpack.c.l.bf16 %v328
      %v424 = vunpack.c.h.bf16 %v328
      %v425 = vunpack.c.l.bf16 %v329
      %v426 = vunpack.c.l.bf16 %v330
      %v427 = vunpack.c.h.bf16 %v330
      %v428 = vunpack.c.l.bf16 %v331
      %v429 = vunpack.c.l.bf16 %v332
      %v430 = vunpack.c.h.bf16 %v332
      %v431 = vunpack.c.l.bf16 %v333
      %v432 = vunpack.c.l.bf16 %v334
      %v433 = vunpack.c.h.bf16 %v334
      %v434 = vunpack.c.l.bf16 %v335
      %v435 = vunpack.c.l.bf16 %v336
      %v436 = vunpack.c.h.bf16 %v336
      %v437 = vunpack.c.l.bf16 %v337
      %v438 = vunpack.c.l.bf16 %v338
      %v439 = vunpack.c.h.bf16 %v338
      %v440 = vunpack.c.l.bf16 %v339
      %v441 = vunpack.c.l.bf16 %v340
      %v442 = vunpack.c.h.bf16 %v340
      %v443 = vunpack.c.l.bf16 %v341
      %v444 = vunpack.c.l.bf16 %v342
      %v445 = vunpack.c.h.bf16 %v342
      %v446 = vunpack.c.l.bf16 %v343
      %v447 = vunpack.c.l.bf16 %v344
      %v448 = vunpack.c.h.bf16 %v344
      %v449 = vunpack.c.l.bf16 %v345
      %v450 = vunpack.c.l.bf16 %v346
      %v451 = vunpack.c.h.bf16 %v346
      %v452 = vunpack.c.l.bf16 %v347
      %v453 = vunpack.c.l.bf16 %v348
      %v454 = vunpack.c.h.bf16 %v348
      %v455 = vunpack.c.l.bf16 %v349
      %v456 = vunpack.c.l.bf16 %v350
      %v457 = vunpack.c.h.bf16 %v350
      %v458 = vunpack.c.l.bf16 %v351
      %v459 = vunpack.c.l.bf16 %v352
      %v460 = vunpack.c.h.bf16 %v352
      %v461 = vunpack.c.l.bf16 %v353
      %v462 = vld [vmem:[%s2] sm:$0x7]
      %v464 = vlaneseq
      %v465 = vshrl.u32 %v464, 7
      %v466 = vsub.s32 0, %v465
      %v467 = vrot.slane %v462, %v466
      %v468 = vlaneseq
      %v469 = vshrl.u32 %v468, 7
      %v470 = vsub.s32 1, %v469
      %v471 = vrot.slane %v462, %v470
      %v472 = vlaneseq
      %v473 = vshrl.u32 %v472, 7
      %v474 = vsub.s32 2, %v473
      %v475 = vrot.slane %v462, %v474
      %v479 = vmul.f32 %v354, %v467
      %v480 = vmul.f32 %v355, %v471
      %v481 = vmul.f32 %v356, %v475
      %v482 = vmul.f32 %v357, %v467
      %v483 = vmul.f32 %v358, %v471
      %v484 = vmul.f32 %v359, %v475
      %v485 = vmul.f32 %v360, %v467
      %v486 = vmul.f32 %v361, %v471
      %v487 = vmul.f32 %v362, %v475
      %v488 = vmul.f32 %v363, %v467
      %v489 = vmul.f32 %v364, %v471
      %v490 = vmul.f32 %v365, %v475
      %v491 = vmul.f32 %v366, %v467
      %v492 = vmul.f32 %v367, %v471
      %v493 = vmul.f32 %v368, %v475
      %v494 = vmul.f32 %v369, %v467
      %v495 = vmul.f32 %v370, %v471
      %v496 = vmul.f32 %v371, %v475
      %v497 = vmul.f32 %v372, %v467
      %v498 = vmul.f32 %v373, %v471
      %v499 = vmul.f32 %v374, %v475
      %v500 = vmul.f32 %v375, %v467
      %v501 = vmul.f32 %v376, %v471
      %v502 = vmul.f32 %v377, %v475
      %v503 = vmul.f32 %v378, %v467
      %v504 = vmul.f32 %v379, %v471
      %v505 = vmul.f32 %v380, %v475
      %v506 = vmul.f32 %v381, %v467
      %v507 = vmul.f32 %v382, %v471
      %v508 = vmul.f32 %v383, %v475
      %v509 = vmul.f32 %v384, %v467
      %v510 = vmul.f32 %v385, %v471
      %v511 = vmul.f32 %v386, %v475
      %v512 = vmul.f32 %v387, %v467
      %v513 = vmul.f32 %v388, %v471
      %v514 = vmul.f32 %v389, %v475
      %v515 = vmul.f32 %v390, %v467
      %v516 = vmul.f32 %v391, %v471
      %v517 = vmul.f32 %v392, %v475
      %v518 = vmul.f32 %v393, %v467
      %v519 = vmul.f32 %v394, %v471
      %v520 = vmul.f32 %v395, %v475
      %v521 = vmul.f32 %v396, %v467
      %v522 = vmul.f32 %v397, %v471
      %v523 = vmul.f32 %v398, %v475
      %v524 = vmul.f32 %v399, %v467
      %v525 = vmul.f32 %v400, %v471
      %v526 = vmul.f32 %v401, %v475
      %v527 = vmul.f32 %v402, %v467
      %v528 = vmul.f32 %v403, %v471
      %v529 = vmul.f32 %v404, %v475
      %v530 = vmul.f32 %v405, %v467
      %v531 = vmul.f32 %v406, %v471
      %v532 = vmul.f32 %v407, %v475
      %v533 = vmul.f32 %v408, %v467
      %v534 = vmul.f32 %v409, %v471
      %v535 = vmul.f32 %v410, %v475
      %v536 = vmul.f32 %v411, %v467
      %v537 = vmul.f32 %v412, %v471
      %v538 = vmul.f32 %v413, %v475
      %v539 = vmul.f32 %v414, %v467
      %v540 = vmul.f32 %v415, %v471
      %v541 = vmul.f32 %v416, %v475
      %v542 = vmul.f32 %v417, %v467
      %v543 = vmul.f32 %v418, %v471
      %v544 = vmul.f32 %v419, %v475
      %v545 = vmul.f32 %v420, %v467
      %v546 = vmul.f32 %v421, %v471
      %v547 = vmul.f32 %v422, %v475
      %v548 = vmul.f32 %v423, %v467
      %v549 = vmul.f32 %v424, %v471
      %v550 = vmul.f32 %v425, %v475
      %v551 = vmul.f32 %v426, %v467
      %v552 = vmul.f32 %v427, %v471
      %v553 = vmul.f32 %v428, %v475
      %v554 = vmul.f32 %v429, %v467
      %v555 = vmul.f32 %v430, %v471
      %v556 = vmul.f32 %v431, %v475
      %v557 = vmul.f32 %v432, %v467
      %v558 = vmul.f32 %v433, %v471
      %v559 = vmul.f32 %v434, %v475
      %v560 = vmul.f32 %v435, %v467
      %v561 = vmul.f32 %v436, %v471
      %v562 = vmul.f32 %v437, %v475
      %v563 = vmul.f32 %v438, %v467
      %v564 = vmul.f32 %v439, %v471
      %v565 = vmul.f32 %v440, %v475
      %v566 = vmul.f32 %v441, %v467
      %v567 = vmul.f32 %v442, %v471
      %v568 = vmul.f32 %v443, %v475
      %v569 = vmul.f32 %v444, %v467
      %v570 = vmul.f32 %v445, %v471
      %v571 = vmul.f32 %v446, %v475
      %v572 = vmul.f32 %v447, %v467
      %v573 = vmul.f32 %v448, %v471
      %v574 = vmul.f32 %v449, %v475
      %v575 = vmul.f32 %v450, %v467
      %v576 = vmul.f32 %v451, %v471
      %v577 = vmul.f32 %v452, %v475
      %v578 = vmul.f32 %v453, %v467
      %v579 = vmul.f32 %v454, %v471
      %v580 = vmul.f32 %v455, %v475
      %v581 = vmul.f32 %v456, %v467
      %v582 = vmul.f32 %v457, %v471
      %v583 = vmul.f32 %v458, %v475
      %v584 = vmul.f32 %v459, %v467
      %v585 = vmul.f32 %v460, %v471
      %v586 = vmul.f32 %v461, %v475
      %v587 = vld [vmem:[%s3] sm:$0x7]
      %v589 = vlaneseq
      %v590 = vshrl.u32 %v589, 7
      %v591 = vsub.s32 0, %v590
      %v592 = vrot.slane %v587, %v591
      %v593 = vlaneseq
      %v594 = vshrl.u32 %v593, 7
      %v595 = vsub.s32 1, %v594
      %v596 = vrot.slane %v587, %v595
      %v597 = vlaneseq
      %v598 = vshrl.u32 %v597, 7
      %v599 = vsub.s32 2, %v598
      %v600 = vrot.slane %v587, %v599
      %v604 = vadd.f32 %v479, %v592
      %v605 = vadd.f32 %v480, %v596
      %v606 = vadd.f32 %v481, %v600
      %v607 = vadd.f32 %v482, %v592
      %v608 = vadd.f32 %v483, %v596
      %v609 = vadd.f32 %v484, %v600
      %v610 = vadd.f32 %v485, %v592
      %v611 = vadd.f32 %v486, %v596
      %v612 = vadd.f32 %v487, %v600
      %v613 = vadd.f32 %v488, %v592
      %v614 = vadd.f32 %v489, %v596
      %v615 = vadd.f32 %v490, %v600
      %v616 = vadd.f32 %v491, %v592
      %v617 = vadd.f32 %v492, %v596
      %v618 = vadd.f32 %v493, %v600
      %v619 = vadd.f32 %v494, %v592
      %v620 = vadd.f32 %v495, %v596
      %v621 = vadd.f32 %v496, %v600
      %v622 = vadd.f32 %v497, %v592
      %v623 = vadd.f32 %v498, %v596
      %v624 = vadd.f32 %v499, %v600
      %v625 = vadd.f32 %v500, %v592
      %v626 = vadd.f32 %v501, %v596
      %v627 = vadd.f32 %v502, %v600
      %v628 = vadd.f32 %v503, %v592
      %v629 = vadd.f32 %v504, %v596
      %v630 = vadd.f32 %v505, %v600
      %v631 = vadd.f32 %v506, %v592
      %v632 = vadd.f32 %v507, %v596
      %v633 = vadd.f32 %v508, %v600
      %v634 = vadd.f32 %v509, %v592
      %v635 = vadd.f32 %v510, %v596
      %v636 = vadd.f32 %v511, %v600
      %v637 = vadd.f32 %v512, %v592
      %v638 = vadd.f32 %v513, %v596
      %v639 = vadd.f32 %v514, %v600
      %v640 = vadd.f32 %v515, %v592
      %v641 = vadd.f32 %v516, %v596
      %v642 = vadd.f32 %v517, %v600
      %v643 = vadd.f32 %v518, %v592
      %v644 = vadd.f32 %v519, %v596
      %v645 = vadd.f32 %v520, %v600
      %v646 = vadd.f32 %v521, %v592
      %v647 = vadd.f32 %v522, %v596
      %v648 = vadd.f32 %v523, %v600
      %v649 = vadd.f32 %v524, %v592
      %v650 = vadd.f32 %v525, %v596
      %v651 = vadd.f32 %v526, %v600
      %v652 = vadd.f32 %v527, %v592
      %v653 = vadd.f32 %v528, %v596
      %v654 = vadd.f32 %v529, %v600
      %v655 = vadd.f32 %v530, %v592
      %v656 = vadd.f32 %v531, %v596
      %v657 = vadd.f32 %v532, %v600
      %v658 = vadd.f32 %v533, %v592
      %v659 = vadd.f32 %v534, %v596
      %v660 = vadd.f32 %v535, %v600
      %v661 = vadd.f32 %v536, %v592
      %v662 = vadd.f32 %v537, %v596
      %v663 = vadd.f32 %v538, %v600
      %v664 = vadd.f32 %v539, %v592
      %v665 = vadd.f32 %v540, %v596
      %v666 = vadd.f32 %v541, %v600
      %v667 = vadd.f32 %v542, %v592
      %v668 = vadd.f32 %v543, %v596
      %v669 = vadd.f32 %v544, %v600
      %v670 = vadd.f32 %v545, %v592
      %v671 = vadd.f32 %v546, %v596
      %v672 = vadd.f32 %v547, %v600
      %v673 = vadd.f32 %v548, %v592
      %v674 = vadd.f32 %v549, %v596
      %v675 = vadd.f32 %v550, %v600
      %v676 = vadd.f32 %v551, %v592
      %v677 = vadd.f32 %v552, %v596
      %v678 = vadd.f32 %v553, %v600
      %v679 = vadd.f32 %v554, %v592
      %v680 = vadd.f32 %v555, %v596
      %v681 = vadd.f32 %v556, %v600
      %v682 = vadd.f32 %v557, %v592
      %v683 = vadd.f32 %v558, %v596
      %v684 = vadd.f32 %v559, %v600
      %v685 = vadd.f32 %v560, %v592
      %v686 = vadd.f32 %v561, %v596
      %v687 = vadd.f32 %v562, %v600
      %v688 = vadd.f32 %v563, %v592
      %v689 = vadd.f32 %v564, %v596
      %v690 = vadd.f32 %v565, %v600
      %v691 = vadd.f32 %v566, %v592
      %v692 = vadd.f32 %v567, %v596
      %v693 = vadd.f32 %v568, %v600
      %v694 = vadd.f32 %v569, %v592
      %v695 = vadd.f32 %v570, %v596
      %v696 = vadd.f32 %v571, %v600
      %v697 = vadd.f32 %v572, %v592
      %v698 = vadd.f32 %v573, %v596
      %v699 = vadd.f32 %v574, %v600
      %v700 = vadd.f32 %v575, %v592
      %v701 = vadd.f32 %v576, %v596
      %v702 = vadd.f32 %v577, %v600
      %v703 = vadd.f32 %v578, %v592
      %v704 = vadd.f32 %v579, %v596
      %v705 = vadd.f32 %v580, %v600
      %v706 = vadd.f32 %v581, %v592
      %v707 = vadd.f32 %v582, %v596
      %v708 = vadd.f32 %v583, %v600
      %v709 = vadd.f32 %v584, %v592
      %v710 = vadd.f32 %v585, %v596
      %v711 = vadd.f32 %v586, %v600
      %v712 = vmax.f32 %v604, 0.0
      %v713 = vmax.f32 %v605, 0.0
      %v714 = vmax.f32 %v606, 0.0
      %v715 = vmax.f32 %v607, 0.0
      %v716 = vmax.f32 %v608, 0.0
      %v717 = vmax.f32 %v609, 0.0
      %v718 = vmax.f32 %v610, 0.0
      %v719 = vmax.f32 %v611, 0.0
      %v720 = vmax.f32 %v612, 0.0
      %v721 = vmax.f32 %v613, 0.0
      %v722 = vmax.f32 %v614, 0.0
      %v723 = vmax.f32 %v615, 0.0
      %v724 = vmax.f32 %v616, 0.0
      %v725 = vmax.f32 %v617, 0.0
      %v726 = vmax.f32 %v618, 0.0
      %v727 = vmax.f32 %v619, 0.0
      %v728 = vmax.f32 %v620, 0.0
      %v729 = vmax.f32 %v621, 0.0
      %v730 = vmax.f32 %v622, 0.0
      %v731 = vmax.f32 %v623, 0.0
      %v732 = vmax.f32 %v624, 0.0
      %v733 = vmax.f32 %v625, 0.0
      %v734 = vmax.f32 %v626, 0.0
      %v735 = vmax.f32 %v627, 0.0
      %v736 = vmax.f32 %v628, 0.0
      %v737 = vmax.f32 %v629, 0.0
      %v738 = vmax.f32 %v630, 0.0
      %v739 = vmax.f32 %v631, 0.0
      %v740 = vmax.f32 %v632, 0.0
      %v741 = vmax.f32 %v633, 0.0
      %v742 = vmax.f32 %v634, 0.0
      %v743 = vmax.f32 %v635, 0.0
      %v744 = vmax.f32 %v636, 0.0
      %v745 = vmax.f32 %v637, 0.0
      %v746 = vmax.f32 %v638, 0.0
      %v747 = vmax.f32 %v639, 0.0
      %v748 = vmax.f32 %v640, 0.0
      %v749 = vmax.f32 %v641, 0.0
      %v750 = vmax.f32 %v642, 0.0
      %v751 = vmax.f32 %v643, 0.0
      %v752 = vmax.f32 %v644, 0.0
      %v753 = vmax.f32 %v645, 0.0
      %v754 = vmax.f32 %v646, 0.0
      %v755 = vmax.f32 %v647, 0.0
      %v756 = vmax.f32 %v648, 0.0
      %v757 = vmax.f32 %v649, 0.0
      %v758 = vmax.f32 %v650, 0.0
      %v759 = vmax.f32 %v651, 0.0
      %v760 = vmax.f32 %v652, 0.0
      %v761 = vmax.f32 %v653, 0.0
      %v762 = vmax.f32 %v654, 0.0
      %v763 = vmax.f32 %v655, 0.0
      %v764 = vmax.f32 %v656, 0.0
      %v765 = vmax.f32 %v657, 0.0
      %v766 = vmax.f32 %v658, 0.0
      %v767 = vmax.f32 %v659, 0.0
      %v768 = vmax.f32 %v660, 0.0
      %v769 = vmax.f32 %v661, 0.0
      %v770 = vmax.f32 %v662, 0.0
      %v771 = vmax.f32 %v663, 0.0
      %v772 = vmax.f32 %v664, 0.0
      %v773 = vmax.f32 %v665, 0.0
      %v774 = vmax.f32 %v666, 0.0
      %v775 = vmax.f32 %v667, 0.0
      %v776 = vmax.f32 %v668, 0.0
      %v777 = vmax.f32 %v669, 0.0
      %v778 = vmax.f32 %v670, 0.0
      %v779 = vmax.f32 %v671, 0.0
      %v780 = vmax.f32 %v672, 0.0
      %v781 = vmax.f32 %v673, 0.0
      %v782 = vmax.f32 %v674, 0.0
      %v783 = vmax.f32 %v675, 0.0
      %v784 = vmax.f32 %v676, 0.0
      %v785 = vmax.f32 %v677, 0.0
      %v786 = vmax.f32 %v678, 0.0
      %v787 = vmax.f32 %v679, 0.0
      %v788 = vmax.f32 %v680, 0.0
      %v789 = vmax.f32 %v681, 0.0
      %v790 = vmax.f32 %v682, 0.0
      %v791 = vmax.f32 %v683, 0.0
      %v792 = vmax.f32 %v684, 0.0
      %v793 = vmax.f32 %v685, 0.0
      %v794 = vmax.f32 %v686, 0.0
      %v795 = vmax.f32 %v687, 0.0
      %v796 = vmax.f32 %v688, 0.0
      %v797 = vmax.f32 %v689, 0.0
      %v798 = vmax.f32 %v690, 0.0
      %v799 = vmax.f32 %v691, 0.0
      %v800 = vmax.f32 %v692, 0.0
      %v801 = vmax.f32 %v693, 0.0
      %v802 = vmax.f32 %v694, 0.0
      %v803 = vmax.f32 %v695, 0.0
      %v804 = vmax.f32 %v696, 0.0
      %v805 = vmax.f32 %v697, 0.0
      %v806 = vmax.f32 %v698, 0.0
      %v807 = vmax.f32 %v699, 0.0
      %v808 = vmax.f32 %v700, 0.0
      %v809 = vmax.f32 %v701, 0.0
      %v810 = vmax.f32 %v702, 0.0
      %v811 = vmax.f32 %v703, 0.0
      %v812 = vmax.f32 %v704, 0.0
      %v813 = vmax.f32 %v705, 0.0
      %v814 = vmax.f32 %v706, 0.0
      %v815 = vmax.f32 %v707, 0.0
      %v816 = vmax.f32 %v708, 0.0
      %v817 = vmax.f32 %v709, 0.0
      %v818 = vmax.f32 %v710, 0.0
      %v819 = vmax.f32 %v711, 0.0
      %v820 = vlaneseq
      %v821 = vand.u32 %v820, 127
      %v822 = vadd.s32 %v821, 128
      %v823 = vadd.s32 %v821, 256
      %v824 = vlaneseq
      %v825 = vshrl.u32 %v824, 7
      %v826 = vadd.s32 %v825, 8
      %vm827 = vcmp.lt.s32.totalorder %v821, 128
      %vm828 = vcmp.lt.s32.totalorder %v822, 128
      %vm829 = vcmp.lt.s32.totalorder %v823, 128
      %vm830 = vcmp.eq.s32.totalorder %v825, 0
      %vm831 = vcmp.eq.s32.totalorder %v826, 0
      %vm832 = vmand %vm827, %vm830
      %vm833 = vmand %vm828, %vm830
      %vm834 = vmand %vm829, %vm830
      %vm835 = vmand %vm827, %vm831
      %vm836 = vmand %vm828, %vm831
      %vm837 = vmand %vm829, %vm831
      %vm838 = vcmp.ge.s32.totalorder %v821, 256
      %vm839 = vcmp.ge.s32.totalorder %v822, 256
      %vm840 = vcmp.ge.s32.totalorder %v823, 256
      %vm841 = vcmp.eq.s32.totalorder %v825, 15
      %vm842 = vcmp.eq.s32.totalorder %v826, 15
      %vm843 = vmand %vm838, %vm841
      %vm844 = vmand %vm839, %vm841
      %vm845 = vmand %vm840, %vm841
      %vm846 = vmand %vm838, %vm842
      %vm847 = vmand %vm839, %vm842
      %vm848 = vmand %vm840, %vm842
      %vm849 = vmor %vm832, %vm843
      %vm850 = vmor %vm833, %vm844
      %vm851 = vmor %vm834, %vm845
      %vm852 = vmor %vm835, %vm846
      %vm853 = vmor %vm836, %vm847
      %vm854 = vmor %vm837, %vm848
      %vm855 = vmor %vm849, 1
      %vm856 = vmor %vm850, 1
      %vm857 = vmor %vm851, 1
      %vm858 = vmor %vm852, 1
      %vm859 = vmor %vm853, 1
      %vm860 = vmor %vm854, 1
      %vm861 = vmor %vm849, 0
      %vm862 = vmor %vm850, 0
      %vm863 = vmor %vm851, 0
      %vm864 = vmor %vm852, 0
      %vm865 = vmor %vm853, 0
      %vm866 = vmor %vm854, 0
      %v867 = vsel %vm855, 0.0, %v712
      %v868 = vsel %vm856, 0.0, %v713
      %v869 = vsel %vm857, 0.0, %v714
      %v870 = vsel %vm858, 0.0, %v715
      %v871 = vsel %vm859, 0.0, %v716
      %v872 = vsel %vm860, 0.0, %v717
      %v873 = vsel %vm861, 0.0, %v718
      %v874 = vsel %vm862, 0.0, %v719
      %v875 = vsel %vm863, 0.0, %v720
      %v876 = vsel %vm864, 0.0, %v721
      %v877 = vsel %vm865, 0.0, %v722
      %v878 = vsel %vm866, 0.0, %v723
      %v879 = vsel %vm861, 0.0, %v724
      %v880 = vsel %vm862, 0.0, %v725
      %v881 = vsel %vm863, 0.0, %v726
      %v882 = vsel %vm864, 0.0, %v727
      %v883 = vsel %vm865, 0.0, %v728
      %v884 = vsel %vm866, 0.0, %v729
      %v885 = vsel %vm861, 0.0, %v730
      %v886 = vsel %vm862, 0.0, %v731
      %v887 = vsel %vm863, 0.0, %v732
      %v888 = vsel %vm864, 0.0, %v733
      %v889 = vsel %vm865, 0.0, %v734
      %v890 = vsel %vm866, 0.0, %v735
      %v891 = vsel %vm861, 0.0, %v736
      %v892 = vsel %vm862, 0.0, %v737
      %v893 = vsel %vm863, 0.0, %v738
      %v894 = vsel %vm864, 0.0, %v739
      %v895 = vsel %vm865, 0.0, %v740
      %v896 = vsel %vm866, 0.0, %v741
      %v897 = vsel %vm861, 0.0, %v742
      %v898 = vsel %vm862, 0.0, %v743
      %v899 = vsel %vm863, 0.0, %v744
      %v900 = vsel %vm864, 0.0, %v745
      %v901 = vsel %vm865, 0.0, %v746
      %v902 = vsel %vm866, 0.0, %v747
      %v903 = vsel %vm861, 0.0, %v748
      %v904 = vsel %vm862, 0.0, %v749
      %v905 = vsel %vm863, 0.0, %v750
      %v906 = vsel %vm864, 0.0, %v751
      %v907 = vsel %vm865, 0.0, %v752
      %v908 = vsel %vm866, 0.0, %v753
      %v909 = vsel %vm861, 0.0, %v754
      %v910 = vsel %vm862, 0.0, %v755
      %v911 = vsel %vm863, 0.0, %v756
      %v912 = vsel %vm864, 0.0, %v757
      %v913 = vsel %vm865, 0.0, %v758
      %v914 = vsel %vm866, 0.0, %v759
      %v915 = vsel %vm861, 0.0, %v760
      %v916 = vsel %vm862, 0.0, %v761
      %v917 = vsel %vm863, 0.0, %v762
      %v918 = vsel %vm864, 0.0, %v763
      %v919 = vsel %vm865, 0.0, %v764
      %v920 = vsel %vm866, 0.0, %v765
      %v921 = vsel %vm861, 0.0, %v766
      %v922 = vsel %vm862, 0.0, %v767
      %v923 = vsel %vm863, 0.0, %v768
      %v924 = vsel %vm864, 0.0, %v769
      %v925 = vsel %vm865, 0.0, %v770
      %v926 = vsel %vm866, 0.0, %v771
      %v927 = vsel %vm861, 0.0, %v772
      %v928 = vsel %vm862, 0.0, %v773
      %v929 = vsel %vm863, 0.0, %v774
      %v930 = vsel %vm864, 0.0, %v775
      %v931 = vsel %vm865, 0.0, %v776
      %v932 = vsel %vm866, 0.0, %v777
      %v933 = vsel %vm861, 0.0, %v778
      %v934 = vsel %vm862, 0.0, %v779
      %v935 = vsel %vm863, 0.0, %v780
      %v936 = vsel %vm864, 0.0, %v781
      %v937 = vsel %vm865, 0.0, %v782
      %v938 = vsel %vm866, 0.0, %v783
      %v939 = vsel %vm861, 0.0, %v784
      %v940 = vsel %vm862, 0.0, %v785
      %v941 = vsel %vm863, 0.0, %v786
      %v942 = vsel %vm864, 0.0, %v787
      %v943 = vsel %vm865, 0.0, %v788
      %v944 = vsel %vm866, 0.0, %v789
      %v945 = vsel %vm861, 0.0, %v790
      %v946 = vsel %vm862, 0.0, %v791
      %v947 = vsel %vm863, 0.0, %v792
      %v948 = vsel %vm864, 0.0, %v793
      %v949 = vsel %vm865, 0.0, %v794
      %v950 = vsel %vm866, 0.0, %v795
      %v951 = vsel %vm861, 0.0, %v796
      %v952 = vsel %vm862, 0.0, %v797
      %v953 = vsel %vm863, 0.0, %v798
      %v954 = vsel %vm864, 0.0, %v799
      %v955 = vsel %vm865, 0.0, %v800
      %v956 = vsel %vm866, 0.0, %v801
      %v957 = vsel %vm861, 0.0, %v802
      %v958 = vsel %vm862, 0.0, %v803
      %v959 = vsel %vm863, 0.0, %v804
      %v960 = vsel %vm864, 0.0, %v805
      %v961 = vsel %vm865, 0.0, %v806
      %v962 = vsel %vm866, 0.0, %v807
      %v963 = vsel %vm861, 0.0, %v808
      %v964 = vsel %vm862, 0.0, %v809
      %v965 = vsel %vm863, 0.0, %v810
      %v966 = vsel %vm864, 0.0, %v811
      %v967 = vsel %vm865, 0.0, %v812
      %v968 = vsel %vm866, 0.0, %v813
      %v969 = vsel %vm855, 0.0, %v814
      %v970 = vsel %vm856, 0.0, %v815
      %v971 = vsel %vm857, 0.0, %v816
      %v972 = vsel %vm858, 0.0, %v817
      %v973 = vsel %vm859, 0.0, %v818
      %v974 = vsel %vm860, 0.0, %v819
      %v975 = vpack.c.bf16 %v870, %v867
      %v976 = vpack.c.bf16 %v871, %v868
      %v977 = vpack.c.bf16 %v872, %v869
      %v978 = vpack.c.bf16 %v876, %v873
      %v979 = vpack.c.bf16 %v877, %v874
      %v980 = vpack.c.bf16 %v878, %v875
      %v981 = vpack.c.bf16 %v882, %v879
      %v982 = vpack.c.bf16 %v883, %v880
      %v983 = vpack.c.bf16 %v884, %v881
      %v984 = vpack.c.bf16 %v888, %v885
      %v985 = vpack.c.bf16 %v889, %v886
      %v986 = vpack.c.bf16 %v890, %v887
      %v987 = vpack.c.bf16 %v894, %v891
      %v988 = vpack.c.bf16 %v895, %v892
      %v989 = vpack.c.bf16 %v896, %v893
      %v990 = vpack.c.bf16 %v900, %v897
      %v991 = vpack.c.bf16 %v901, %v898
      %v992 = vpack.c.bf16 %v902, %v899
      %v993 = vpack.c.bf16 %v906, %v903
      %v994 = vpack.c.bf16 %v907, %v904
      %v995 = vpack.c.bf16 %v908, %v905
      %v996 = vpack.c.bf16 %v912, %v909
      %v997 = vpack.c.bf16 %v913, %v910
      %v998 = vpack.c.bf16 %v914, %v911
      %v999 = vpack.c.bf16 %v918, %v915
      %v1000 = vpack.c.bf16 %v919, %v916
      %v1001 = vpack.c.bf16 %v920, %v917
      %v1002 = vpack.c.bf16 %v924, %v921
      %v1003 = vpack.c.bf16 %v925, %v922
      %v1004 = vpack.c.bf16 %v926, %v923
      %v1005 = vpack.c.bf16 %v930, %v927
      %v1006 = vpack.c.bf16 %v931, %v928
      %v1007 = vpack.c.bf16 %v932, %v929
      %v1008 = vpack.c.bf16 %v936, %v933
      %v1009 = vpack.c.bf16 %v937, %v934
      %v1010 = vpack.c.bf16 %v938, %v935
      %v1011 = vpack.c.bf16 %v942, %v939
      %v1012 = vpack.c.bf16 %v943, %v940
      %v1013 = vpack.c.bf16 %v944, %v941
      %v1014 = vpack.c.bf16 %v948, %v945
      %v1015 = vpack.c.bf16 %v949, %v946
      %v1016 = vpack.c.bf16 %v950, %v947
      %v1017 = vpack.c.bf16 %v954, %v951
      %v1018 = vpack.c.bf16 %v955, %v952
      %v1019 = vpack.c.bf16 %v956, %v953
      %v1020 = vpack.c.bf16 %v960, %v957
      %v1021 = vpack.c.bf16 %v961, %v958
      %v1022 = vpack.c.bf16 %v962, %v959
      %v1023 = vpack.c.bf16 %v966, %v963
      %v1024 = vpack.c.bf16 %v967, %v964
      %v1025 = vpack.c.bf16 %v968, %v965
      %v1026 = vpack.c.bf16 %v972, %v969
      %v1027 = vpack.c.bf16 %v973, %v970
      %v1028 = vpack.c.bf16 %v974, %v971
      %v1029 = vld [vmem:[%s265] sm:$0xf]
      %v1030 = vld [vmem:[%s265 + $0x4] sm:$0xf]
      %v1031 = vld [vmem:[%s265 + $0x8] sm:$0xf]
      %v1032 = vld [vmem:[%s265 + $0xc] sm:$0xf]
      %v1033 = vld [vmem:[%s265 + $0x10] sm:$0xf]
      %v1034 = vld [vmem:[%s265 + $0x14] sm:$0xf]
      %v1035 = vld [vmem:[%s265 + $0x18] sm:$0xf]
      %v1036 = vld [vmem:[%s265 + $0x1c] sm:$0xf]
      %v1037 = vld [vmem:[%s265 + $0x20] sm:$0xf]
      %v1038 = vld [vmem:[%s265 + $0x24] sm:$0xf]
      %v1039 = vld [vmem:[%s265 + $0x28] sm:$0xf]
      %v1040 = vld [vmem:[%s265 + $0x2c] sm:$0xf]
      %v1041 = vld [vmem:[%s265 + $0x30] sm:$0xf]
      %v1042 = vld [vmem:[%s265 + $0x34] sm:$0xf]
      %v1043 = vld [vmem:[%s265 + $0x38] sm:$0xf]
      %v1044 = vld [vmem:[%s265 + $0x3c] sm:$0xf]
      %v1045 = vld [vmem:[%s265 + $0x40] sm:$0xf]
      %v1046 = vld [vmem:[%s265 + $0x44] sm:$0xf]
      %v1047 = vld [vmem:[%s265 + $0x48] sm:$0xf]
      %v1048 = vld [vmem:[%s265 + $0x4c] sm:$0xf]
      %v1049 = vld [vmem:[%s265 + $0x50] sm:$0xf]
      %v1050 = vld [vmem:[%s265 + $0x54] sm:$0xf]
      %v1051 = vld [vmem:[%s265 + $0x58] sm:$0xf]
      %v1052 = vld [vmem:[%s265 + $0x5c] sm:$0xf]
      %v1053 = vld [vmem:[%s265 + $0x60] sm:$0xf]
      %v1054 = vld [vmem:[%s265 + $0x64] sm:$0xf]
      %v1055 = vld [vmem:[%s265 + $0x68] sm:$0xf]
      %v1056 = vld [vmem:[%s265 + $0x6c] sm:$0xf]
      %v1057 = vld [vmem:[%s265 + $0x70] sm:$0xf]
      %v1058 = vld [vmem:[%s265 + $0x74] sm:$0xf]
      %v1059 = vld [vmem:[%s265 + $0x78] sm:$0xf]
      %v1060 = vld [vmem:[%s265 + $0x7c] sm:$0xf]
      %v1061 = vld [vmem:[%s265 + $0x80] sm:$0xf]
      %v1062 = vld [vmem:[%s265 + $0x84] sm:$0xf]
      %v1063 = vld [vmem:[%s265 + $0x88] sm:$0xf]
      %v1064 = vld [vmem:[%s265 + $0x8c] sm:$0xf]
      %v1065 = vld [vmem:[%s265 + $0x90] sm:$0xf]
      %v1066 = vld [vmem:[%s265 + $0x94] sm:$0xf]
      %v1067 = vld [vmem:[%s265 + $0x98] sm:$0xf]
      %v1068 = vld [vmem:[%s265 + $0x9c] sm:$0xf]
      %v1069 = vld [vmem:[%s265 + $0xa0] sm:$0xf]
      %v1070 = vld [vmem:[%s265 + $0xa4] sm:$0xf]
      %v1071 = vld [vmem:[%s265 + $0xa8] sm:$0xf]
      %v1072 = vld [vmem:[%s265 + $0xac] sm:$0xf]
      %v1073 = vld [vmem:[%s265 + $0xb0] sm:$0xf]
      %v1074 = vld [vmem:[%s265 + $0xb4] sm:$0xf]
      %v1075 = vld [vmem:[%s265 + $0xb8] sm:$0xf]
      %v1076 = vld [vmem:[%s265 + $0xbc] sm:$0xf]
      %s1077 = scalar_lea.vmem %s265, 192
      %v1078 = vld [vmem:[%s1077] sm:$0xf]
      %v1079 = vld [vmem:[%s1077 + $0x4] sm:$0xf]
      %v1080 = vld [vmem:[%s1077 + $0x8] sm:$0xf]
      %v1081 = vld [vmem:[%s1077 + $0xc] sm:$0xf]
      %v1082 = vld [vmem:[%s1077 + $0x10] sm:$0xf]
      %v1083 = vld [vmem:[%s1077 + $0x14] sm:$0xf]
      %v1084 = vld [vmem:[%s1077 + $0x18] sm:$0xf]
      %v1085 = vld [vmem:[%s1077 + $0x1c] sm:$0xf]
      %v1086 = vld [vmem:[%s1077 + $0x20] sm:$0xf]
      %v1087 = vld [vmem:[%s1077 + $0x24] sm:$0xf]
      %v1088 = vld [vmem:[%s1077 + $0x28] sm:$0xf]
      %v1089 = vld [vmem:[%s1077 + $0x2c] sm:$0xf]
      %v1090 = vld [vmem:[%s1077 + $0x30] sm:$0xf]
      %v1091 = vld [vmem:[%s1077 + $0x34] sm:$0xf]
      %v1092 = vld [vmem:[%s1077 + $0x38] sm:$0xf]
      %v1093 = vld [vmem:[%s1077 + $0x3c] sm:$0xf]
      %v1094 = vld [vmem:[%s1077 + $0x40] sm:$0xf]
      %v1095 = vld [vmem:[%s1077 + $0x44] sm:$0xf]
      %v1096 = vld [vmem:[%s1077 + $0x48] sm:$0xf]
      %v1097 = vld [vmem:[%s1077 + $0x4c] sm:$0xf]
      %v1098 = vld [vmem:[%s1077 + $0x50] sm:$0xf]
      %v1099 = vld [vmem:[%s1077 + $0x54] sm:$0xf]
      %v1100 = vld [vmem:[%s1077 + $0x58] sm:$0xf]
      %v1101 = vld [vmem:[%s1077 + $0x5c] sm:$0xf]
      %v1102 = vld [vmem:[%s1077 + $0x60] sm:$0xf]
      %v1103 = vld [vmem:[%s1077 + $0x64] sm:$0xf]
      %v1104 = vld [vmem:[%s1077 + $0x68] sm:$0xf]
      %v1105 = vld [vmem:[%s1077 + $0x6c] sm:$0xf]
      %v1106 = vld [vmem:[%s1077 + $0x70] sm:$0xf]
      %v1107 = vld [vmem:[%s1077 + $0x74] sm:$0xf]
      %v1108 = vld [vmem:[%s1077 + $0x78] sm:$0xf]
      %v1109 = vld [vmem:[%s1077 + $0x7c] sm:$0xf]
      %v1110 = vld [vmem:[%s1077 + $0x80] sm:$0xf]
      %v1111 = vld [vmem:[%s1077 + $0x84] sm:$0xf]
      %v1112 = vld [vmem:[%s1077 + $0x88] sm:$0xf]
      %v1113 = vld [vmem:[%s1077 + $0x8c] sm:$0xf]
      %v1114 = vld [vmem:[%s1077 + $0x90] sm:$0xf]
      %v1115 = vld [vmem:[%s1077 + $0x94] sm:$0xf]
      %v1116 = vld [vmem:[%s1077 + $0x98] sm:$0xf]
      %v1117 = vld [vmem:[%s1077 + $0x9c] sm:$0xf]
      %v1118 = vld [vmem:[%s1077 + $0xa0] sm:$0xf]
      %v1119 = vld [vmem:[%s1077 + $0xa4] sm:$0xf]
      %v1120 = vld [vmem:[%s1077 + $0xa8] sm:$0xf]
      %v1121 = vld [vmem:[%s1077 + $0xac] sm:$0xf]
      %v1122 = vld [vmem:[%s1077 + $0xb0] sm:$0xf]
      %v1123 = vld [vmem:[%s1077 + $0xb4] sm:$0xf]
      %v1124 = vld [vmem:[%s1077 + $0xb8] sm:$0xf]
      %v1125 = vld [vmem:[%s1077 + $0xbc] sm:$0xf]
      %v1174 = vunpack.c.l.b16 %v1078
      %v1175 = vunpack.c.l.b16 %v1079
      %v1176 = vunpack.c.l.b16 %v1080
      %v1177 = vunpack.c.l.b16 %v1081
      %v1178 = vunpack.c.l.b16 %v1082
      %v1179 = vunpack.c.l.b16 %v1083
      %v1180 = vunpack.c.l.b16 %v1084
      %v1181 = vunpack.c.l.b16 %v1085
      %v1182 = vunpack.c.l.b16 %v1086
      %v1183 = vunpack.c.l.b16 %v1087
      %v1184 = vunpack.c.l.b16 %v1088
      %v1185 = vunpack.c.l.b16 %v1089
      %v1186 = vunpack.c.l.b16 %v1090
      %v1187 = vunpack.c.l.b16 %v1091
      %v1188 = vunpack.c.l.b16 %v1092
      %v1189 = vunpack.c.l.b16 %v1093
      %v1190 = vunpack.c.l.b16 %v1094
      %v1191 = vunpack.c.l.b16 %v1095
      %v1192 = vunpack.c.l.b16 %v1096
      %v1193 = vunpack.c.l.b16 %v1097
      %v1194 = vunpack.c.l.b16 %v1098
      %v1195 = vunpack.c.l.b16 %v1099
      %v1196 = vunpack.c.l.b16 %v1100
      %v1197 = vunpack.c.l.b16 %v1101
      %v1198 = vunpack.c.l.b16 %v1102
      %v1199 = vunpack.c.l.b16 %v1103
      %v1200 = vunpack.c.l.b16 %v1104
      %v1201 = vunpack.c.l.b16 %v1105
      %v1202 = vunpack.c.l.b16 %v1106
      %v1203 = vunpack.c.l.b16 %v1107
      %v1204 = vunpack.c.l.b16 %v1108
      %v1205 = vunpack.c.l.b16 %v1109
      %v1206 = vunpack.c.l.b16 %v1110
      %v1207 = vunpack.c.l.b16 %v1111
      %v1208 = vunpack.c.l.b16 %v1112
      %v1209 = vunpack.c.l.b16 %v1113
      %v1210 = vunpack.c.l.b16 %v1114
      %v1211 = vunpack.c.l.b16 %v1115
      %v1212 = vunpack.c.l.b16 %v1116
      %v1213 = vunpack.c.l.b16 %v1117
      %v1214 = vunpack.c.l.b16 %v1118
      %v1215 = vunpack.c.l.b16 %v1119
      %v1216 = vunpack.c.l.b16 %v1120
      %v1217 = vunpack.c.l.b16 %v1121
      %v1218 = vunpack.c.l.b16 %v1122
      %v1219 = vunpack.c.l.b16 %v1123
      %v1220 = vunpack.c.l.b16 %v1124
      %v1221 = vunpack.c.l.b16 %v1125
      %v1222 = vpack.c.b16 %v1175, %v1174
      %v1223 = vpack.c.b16 %v1177, %v1176
      %v1224 = vpack.c.b16 %v1179, %v1178
      %v1225 = vpack.c.b16 %v1181, %v1180
      %v1226 = vpack.c.b16 %v1183, %v1182
      %v1227 = vpack.c.b16 %v1185, %v1184
      %v1228 = vpack.c.b16 %v1187, %v1186
      %v1229 = vpack.c.b16 %v1189, %v1188
      %v1230 = vpack.c.b16 %v1191, %v1190
      %v1231 = vpack.c.b16 %v1193, %v1192
      %v1232 = vpack.c.b16 %v1195, %v1194
      %v1233 = vpack.c.b16 %v1197, %v1196
      %v1234 = vpack.c.b16 %v1199, %v1198
      %v1235 = vpack.c.b16 %v1201, %v1200
      %v1236 = vpack.c.b16 %v1203, %v1202
      %v1237 = vpack.c.b16 %v1205, %v1204
      %v1238 = vpack.c.b16 %v1207, %v1206
      %v1239 = vpack.c.b16 %v1209, %v1208
      %v1240 = vpack.c.b16 %v1211, %v1210
      %v1241 = vpack.c.b16 %v1213, %v1212
      %v1242 = vpack.c.b16 %v1215, %v1214
      %v1243 = vpack.c.b16 %v1217, %v1216
      %v1244 = vpack.c.b16 %v1219, %v1218
      %v1245 = vpack.c.b16 %v1221, %v1220
      %1270 = vmatprep.subr.bf16.mxu0 0
      %1271 = vmatpush1.bf16.msra.mxu0 %v1229
      %1272 = vmatprep.subr.bf16.mxu0 0
      %1273 = vmatpush1.bf16.msra.mxu0 %v1228
      %1274 = vmatprep.subr.bf16.mxu0 0
      %1275 = vmatpush1.bf16.msra.mxu0 %v1227
      %1276 = vmatprep.subr.bf16.mxu0 0
      %1277 = vmatpush1.bf16.msra.mxu0 %v1226
      %1278 = vmatprep.subr.bf16.mxu0 0
      %1279 = vmatpush1.bf16.msra.mxu0 %v1225
      %1280 = vmatprep.subr.bf16.mxu0 0
      %1281 = vmatpush1.bf16.msra.mxu0 %v1224
      %1282 = vmatprep.subr.bf16.mxu0 0
      %1283 = vmatpush1.bf16.msra.mxu0 %v1223
      %1284 = vmatprep.subr.bf16.mxu0 0
      %1285 = vmatpush1.bf16.msra.mxu0 %v1222
      %1286 = vmatprep.subr.bf16.mxu0 0
      %1287 = vmatpush2.bf16.msra.mxu0 %v1237
      %1288 = vmatprep.subr.bf16.mxu0 0
      %1289 = vmatpush2.bf16.msra.mxu0 %v1236
      %1290 = vmatprep.subr.bf16.mxu0 0
      %1291 = vmatpush2.bf16.msra.mxu0 %v1235
      %1292 = vmatprep.subr.bf16.mxu0 0
      %1293 = vmatpush2.bf16.msra.mxu0 %v1234
      %1294 = vmatprep.subr.bf16.mxu0 0
      %1295 = vmatpush2.bf16.msra.mxu0 %v1233
      %1296 = vmatprep.subr.bf16.mxu0 0
      %1297 = vmatpush2.bf16.msra.mxu0 %v1232
      %1298 = vmatprep.subr.bf16.mxu0 0
      %1299 = vmatpush2.bf16.msra.mxu0 %v1231
      %1300 = vmatprep.subr.bf16.mxu0 0
      %1301 = vmatpush2.bf16.msra.mxu0 %v1230
      %1302 = vmatprep.mubr.bf16.mxu0 %v979
      %1303 = vmatmul.mubr.bf16.gmra.mxu0 %v978
      %v1304 = vpop.f32.mrf.mxu0
      %v1305 = vadd.f32 0.0, %v1304
      %v1306 = vpop.f32.mrf.mxu0
      %v1307 = vpop.f32.mrf.mxu0
      %v1308 = vadd.f32 0.0, %v1307
      %v1309 = vpop.f32.mrf.mxu0
      %1310 = vmatprep.mubr.bf16.mxu0 %v982
      %1311 = vmatmul.mubr.bf16.gmra.mxu0 %v981
      %v1312 = vpop.f32.mrf.mxu0
      %v1313 = vadd.f32 0.0, %v1312
      %v1314 = vpop.f32.mrf.mxu0
      %v1315 = vpop.f32.mrf.mxu0
      %v1316 = vadd.f32 0.0, %v1315
      %v1317 = vpop.f32.mrf.mxu0
      %1318 = vmatprep.mubr.bf16.mxu0 %v985
      %1319 = vmatmul.mubr.bf16.gmra.mxu0 %v984
      %v1320 = vpop.f32.mrf.mxu0
      %v1321 = vadd.f32 0.0, %v1320
      %v1322 = vpop.f32.mrf.mxu0
      %v1323 = vpop.f32.mrf.mxu0
      %v1324 = vadd.f32 0.0, %v1323
      %v1325 = vpop.f32.mrf.mxu0
      %1326 = vmatprep.mubr.bf16.mxu0 %v988
      %1327 = vmatmul.mubr.bf16.gmra.mxu0 %v987
      %v1328 = vpop.f32.mrf.mxu0
      %v1329 = vadd.f32 0.0, %v1328
      %v1330 = vpop.f32.mrf.mxu0
      %v1331 = vpop.f32.mrf.mxu0
      %v1332 = vadd.f32 0.0, %v1331
      %v1333 = vpop.f32.mrf.mxu0
      %1334 = vmatprep.mubr.bf16.mxu0 %v991
      %1335 = vmatmul.mubr.bf16.gmra.mxu0 %v990
      %v1336 = vpop.f32.mrf.mxu0
      %v1337 = vadd.f32 0.0, %v1336
      %v1338 = vpop.f32.mrf.mxu0
      %v1339 = vpop.f32.mrf.mxu0
      %v1340 = vadd.f32 0.0, %v1339
      %v1341 = vpop.f32.mrf.mxu0
      %1342 = vmatprep.mubr.bf16.mxu0 %v994
      %1343 = vmatmul.mubr.bf16.gmra.mxu0 %v993
      %v1344 = vpop.f32.mrf.mxu0
      %v1345 = vadd.f32 0.0, %v1344
      %v1346 = vpop.f32.mrf.mxu0
      %v1347 = vpop.f32.mrf.mxu0
      %v1348 = vadd.f32 0.0, %v1347
      %v1349 = vpop.f32.mrf.mxu0
      %1350 = vmatprep.mubr.bf16.mxu0 %v997
      %1351 = vmatmul.mubr.bf16.gmra.mxu0 %v996
      %v1352 = vpop.f32.mrf.mxu0
      %v1353 = vadd.f32 0.0, %v1352
      %v1354 = vpop.f32.mrf.mxu0
      %v1355 = vpop.f32.mrf.mxu0
      %v1356 = vadd.f32 0.0, %v1355
      %v1357 = vpop.f32.mrf.mxu0
      %1358 = vmatprep.mubr.bf16.mxu0 %v1000
      %1359 = vmatmul.mubr.bf16.gmra.mxu0 %v999
      %v1360 = vpop.f32.mrf.mxu0
      %v1361 = vadd.f32 0.0, %v1360
      %v1362 = vpop.f32.mrf.mxu0
      %v1363 = vpop.f32.mrf.mxu0
      %v1364 = vadd.f32 0.0, %v1363
      %v1365 = vpop.f32.mrf.mxu0
      %1366 = vmatprep.mubr.bf16.mxu0 %v1003
      %1367 = vmatmul.mubr.bf16.gmra.mxu0 %v1002
      %v1368 = vpop.f32.mrf.mxu0
      %v1369 = vadd.f32 0.0, %v1368
      %v1370 = vpop.f32.mrf.mxu0
      %v1371 = vpop.f32.mrf.mxu0
      %v1372 = vadd.f32 0.0, %v1371
      %v1373 = vpop.f32.mrf.mxu0
      %1374 = vmatprep.mubr.bf16.mxu0 %v1006
      %1375 = vmatmul.mubr.bf16.gmra.mxu0 %v1005
      %v1376 = vpop.f32.mrf.mxu0
      %v1377 = vadd.f32 0.0, %v1376
      %v1378 = vpop.f32.mrf.mxu0
      %v1379 = vpop.f32.mrf.mxu0
      %v1380 = vadd.f32 0.0, %v1379
      %v1381 = vpop.f32.mrf.mxu0
      %1382 = vmatprep.mubr.bf16.mxu0 %v1009
      %1383 = vmatmul.mubr.bf16.gmra.mxu0 %v1008
      %v1384 = vpop.f32.mrf.mxu0
      %v1385 = vadd.f32 0.0, %v1384
      %v1386 = vpop.f32.mrf.mxu0
      %v1387 = vpop.f32.mrf.mxu0
      %v1388 = vadd.f32 0.0, %v1387
      %v1389 = vpop.f32.mrf.mxu0
      %1390 = vmatprep.mubr.bf16.mxu0 %v1012
      %1391 = vmatmul.mubr.bf16.gmra.mxu0 %v1011
      %v1392 = vpop.f32.mrf.mxu0
      %v1393 = vadd.f32 0.0, %v1392
      %v1394 = vpop.f32.mrf.mxu0
      %v1395 = vpop.f32.mrf.mxu0
      %v1396 = vadd.f32 0.0, %v1395
      %v1397 = vpop.f32.mrf.mxu0
      %1398 = vmatprep.mubr.bf16.mxu0 %v1015
      %1399 = vmatmul.mubr.bf16.gmra.mxu0 %v1014
      %v1400 = vpop.f32.mrf.mxu0
      %v1401 = vadd.f32 0.0, %v1400
      %v1402 = vpop.f32.mrf.mxu0
      %v1403 = vpop.f32.mrf.mxu0
      %v1404 = vadd.f32 0.0, %v1403
      %v1405 = vpop.f32.mrf.mxu0
      %1406 = vmatprep.mubr.bf16.mxu0 %v1018
      %1407 = vmatmul.mubr.bf16.gmra.mxu0 %v1017
      %v1408 = vpop.f32.mrf.mxu0
      %v1409 = vadd.f32 0.0, %v1408
      %v1410 = vpop.f32.mrf.mxu0
      %v1411 = vpop.f32.mrf.mxu0
      %v1412 = vadd.f32 0.0, %v1411
      %v1413 = vpop.f32.mrf.mxu0
      %1414 = vmatprep.mubr.bf16.mxu0 %v1021
      %1415 = vmatmul.mubr.bf16.gmra.mxu0 %v1020
      %v1416 = vpop.f32.mrf.mxu0
      %v1417 = vadd.f32 0.0, %v1416
      %v1418 = vpop.f32.mrf.mxu0
      %v1419 = vpop.f32.mrf.mxu0
      %v1420 = vadd.f32 0.0, %v1419
      %v1421 = vpop.f32.mrf.mxu0
      %1422 = vmatprep.mubr.bf16.mxu0 %v1024
      %1423 = vmatmul.mubr.bf16.gmra.mxu0 %v1023
      %v1424 = vpop.f32.mrf.mxu0
      %v1425 = vadd.f32 0.0, %v1424
      %v1426 = vpop.f32.mrf.mxu0
      %v1427 = vpop.f32.mrf.mxu0
      %v1428 = vadd.f32 0.0, %v1427
      %v1429 = vpop.f32.mrf.mxu0
      %1430 = vdwg.mxu0
      %1431 = vmatprep.subr.bf16.mxu0 0
      %1432 = vmatpush1.bf16.msra.mxu0 %v1245
      %1433 = vmatprep.subr.bf16.mxu0 0
      %1434 = vmatpush1.bf16.msra.mxu0 %v1244
      %1435 = vmatprep.subr.bf16.mxu0 0
      %1436 = vmatpush1.bf16.msra.mxu0 %v1243
      %1437 = vmatprep.subr.bf16.mxu0 0
      %1438 = vmatpush1.bf16.msra.mxu0 %v1242
      %1439 = vmatprep.subr.bf16.mxu0 0
      %1440 = vmatpush1.bf16.msra.mxu0 %v1241
      %1441 = vmatprep.subr.bf16.mxu0 0
      %1442 = vmatpush1.bf16.msra.mxu0 %v1240
      %1443 = vmatprep.subr.bf16.mxu0 0
      %1444 = vmatpush1.bf16.msra.mxu0 %v1239
      %1445 = vmatprep.subr.bf16.mxu0 0
      %1446 = vmatpush1.bf16.msra.mxu0 %v1238
      %1447 = vmatprep.subr.bf16.mxu0 0
      %1448 = vmatpush2.bf16.msra.mxu0 0
      %1449 = vmatprep.subr.bf16.mxu0 0
      %1450 = vmatpush2.bf16.msra.mxu0 0
      %1451 = vmatprep.subr.bf16.mxu0 0
      %1452 = vmatpush2.bf16.msra.mxu0 0
      %1453 = vmatprep.subr.bf16.mxu0 0
      %1454 = vmatpush2.bf16.msra.mxu0 0
      %1455 = vmatprep.subr.bf16.mxu0 0
      %1456 = vmatpush2.bf16.msra.mxu0 0
      %1457 = vmatprep.subr.bf16.mxu0 0
      %1458 = vmatpush2.bf16.msra.mxu0 0
      %1459 = vmatprep.subr.bf16.mxu0 0
      %1460 = vmatpush2.bf16.msra.mxu0 0
      %1461 = vmatprep.subr.bf16.mxu0 0
      %1462 = vmatpush2.bf16.msra.mxu0 0
      %1463 = vmatprep.mubr.bf16.mxu0 0
      %1464 = vmatmul.mubr.bf16.gmra.mxu0 %v980
      %v1465 = vpop.f32.mrf.mxu0
      %v1466 = vadd.f32 %v1305, %v1465
      %v1467 = vpop.f32.mrf.mxu0
      %v1468 = vpop.f32.mrf.mxu0
      %v1469 = vadd.f32 %v1308, %v1468
      %v1470 = vpop.f32.mrf.mxu0
      %1471 = vmatprep.mubr.bf16.mxu0 0
      %1472 = vmatmul.mubr.bf16.gmra.mxu0 %v983
      %v1473 = vpop.f32.mrf.mxu0
      %v1474 = vadd.f32 %v1313, %v1473
      %v1475 = vpop.f32.mrf.mxu0
      %v1476 = vpop.f32.mrf.mxu0
      %v1477 = vadd.f32 %v1316, %v1476
      %v1478 = vpop.f32.mrf.mxu0
      %1479 = vmatprep.mubr.bf16.mxu0 0
      %1480 = vmatmul.mubr.bf16.gmra.mxu0 %v986
      %v1481 = vpop.f32.mrf.mxu0
      %v1482 = vadd.f32 %v1321, %v1481
      %v1483 = vpop.f32.mrf.mxu0
      %v1484 = vpop.f32.mrf.mxu0
      %v1485 = vadd.f32 %v1324, %v1484
      %v1486 = vpop.f32.mrf.mxu0
      %1487 = vmatprep.mubr.bf16.mxu0 0
      %1488 = vmatmul.mubr.bf16.gmra.mxu0 %v989
      %v1489 = vpop.f32.mrf.mxu0
      %v1490 = vadd.f32 %v1329, %v1489
      %v1491 = vpop.f32.mrf.mxu0
      %v1492 = vpop.f32.mrf.mxu0
      %v1493 = vadd.f32 %v1332, %v1492
      %v1494 = vpop.f32.mrf.mxu0
      %1495 = vmatprep.mubr.bf16.mxu0 0
      %1496 = vmatmul.mubr.bf16.gmra.mxu0 %v992
      %v1497 = vpop.f32.mrf.mxu0
      %v1498 = vadd.f32 %v1337, %v1497
      %v1499 = vpop.f32.mrf.mxu0
      %v1500 = vpop.f32.mrf.mxu0
      %v1501 = vadd.f32 %v1340, %v1500
      %v1502 = vpop.f32.mrf.mxu0
      %1503 = vmatprep.mubr.bf16.mxu0 0
      %1504 = vmatmul.mubr.bf16.gmra.mxu0 %v995
      %v1505 = vpop.f32.mrf.mxu0
      %v1506 = vadd.f32 %v1345, %v1505
      %v1507 = vpop.f32.mrf.mxu0
      %v1508 = vpop.f32.mrf.mxu0
      %v1509 = vadd.f32 %v1348, %v1508
      %v1510 = vpop.f32.mrf.mxu0
      %1511 = vmatprep.mubr.bf16.mxu0 0
      %1512 = vmatmul.mubr.bf16.gmra.mxu0 %v998
      %v1513 = vpop.f32.mrf.mxu0
      %v1514 = vadd.f32 %v1353, %v1513
      %v1515 = vpop.f32.mrf.mxu0
      %v1516 = vpop.f32.mrf.mxu0
      %v1517 = vadd.f32 %v1356, %v1516
      %v1518 = vpop.f32.mrf.mxu0
      %1519 = vmatprep.mubr.bf16.mxu0 0
      %1520 = vmatmul.mubr.bf16.gmra.mxu0 %v1001
      %v1521 = vpop.f32.mrf.mxu0
      %v1522 = vadd.f32 %v1361, %v1521
      %v1523 = vpop.f32.mrf.mxu0
      %v1524 = vpop.f32.mrf.mxu0
      %v1525 = vadd.f32 %v1364, %v1524
      %v1526 = vpop.f32.mrf.mxu0
      %1527 = vmatprep.mubr.bf16.mxu0 0
      %1528 = vmatmul.mubr.bf16.gmra.mxu0 %v1004
      %v1529 = vpop.f32.mrf.mxu0
      %v1530 = vadd.f32 %v1369, %v1529
      %v1531 = vpop.f32.mrf.mxu0
      %v1532 = vpop.f32.mrf.mxu0
      %v1533 = vadd.f32 %v1372, %v1532
      %v1534 = vpop.f32.mrf.mxu0
      %1535 = vmatprep.mubr.bf16.mxu0 0
      %1536 = vmatmul.mubr.bf16.gmra.mxu0 %v1007
      %v1537 = vpop.f32.mrf.mxu0
      %v1538 = vadd.f32 %v1377, %v1537
      %v1539 = vpop.f32.mrf.mxu0
      %v1540 = vpop.f32.mrf.mxu0
      %v1541 = vadd.f32 %v1380, %v1540
      %v1542 = vpop.f32.mrf.mxu0
      %1543 = vmatprep.mubr.bf16.mxu0 0
      %1544 = vmatmul.mubr.bf16.gmra.mxu0 %v1010
      %v1545 = vpop.f32.mrf.mxu0
      %v1546 = vadd.f32 %v1385, %v1545
      %v1547 = vpop.f32.mrf.mxu0
      %v1548 = vpop.f32.mrf.mxu0
      %v1549 = vadd.f32 %v1388, %v1548
      %v1550 = vpop.f32.mrf.mxu0
      %1551 = vmatprep.mubr.bf16.mxu0 0
      %1552 = vmatmul.mubr.bf16.gmra.mxu0 %v1013
      %v1553 = vpop.f32.mrf.mxu0
      %v1554 = vadd.f32 %v1393, %v1553
      %v1555 = vpop.f32.mrf.mxu0
      %v1556 = vpop.f32.mrf.mxu0
      %v1557 = vadd.f32 %v1396, %v1556
      %v1558 = vpop.f32.mrf.mxu0
      %1559 = vmatprep.mubr.bf16.mxu0 0
      %1560 = vmatmul.mubr.bf16.gmra.mxu0 %v1016
      %v1561 = vpop.f32.mrf.mxu0
      %v1562 = vadd.f32 %v1401, %v1561
      %v1563 = vpop.f32.mrf.mxu0
      %v1564 = vpop.f32.mrf.mxu0
      %v1565 = vadd.f32 %v1404, %v1564
      %v1566 = vpop.f32.mrf.mxu0
      %1567 = vmatprep.mubr.bf16.mxu0 0
      %1568 = vmatmul.mubr.bf16.gmra.mxu0 %v1019
      %v1569 = vpop.f32.mrf.mxu0
      %v1570 = vadd.f32 %v1409, %v1569
      %v1571 = vpop.f32.mrf.mxu0
      %v1572 = vpop.f32.mrf.mxu0
      %v1573 = vadd.f32 %v1412, %v1572
      %v1574 = vpop.f32.mrf.mxu0
      %1575 = vmatprep.mubr.bf16.mxu0 0
      %1576 = vmatmul.mubr.bf16.gmra.mxu0 %v1022
      %v1577 = vpop.f32.mrf.mxu0
      %v1578 = vadd.f32 %v1417, %v1577
      %v1579 = vpop.f32.mrf.mxu0
      %v1580 = vpop.f32.mrf.mxu0
      %v1581 = vadd.f32 %v1420, %v1580
      %v1582 = vpop.f32.mrf.mxu0
      %1583 = vmatprep.mubr.bf16.mxu0 0
      %1584 = vmatmul.mubr.bf16.gmra.mxu0 %v1025
      %v1585 = vpop.f32.mrf.mxu0
      %v1586 = vadd.f32 %v1425, %v1585
      %v1587 = vpop.f32.mrf.mxu0
      %v1588 = vpop.f32.mrf.mxu0
      %v1589 = vadd.f32 %v1428, %v1588
      %v1590 = vpop.f32.mrf.mxu0
      %1591 = vdwg.mxu0
      %v1640 = vunpack.c.l.b16 %v1029
      %v1641 = vunpack.c.l.b16 %v1030
      %v1642 = vunpack.c.l.b16 %v1031
      %v1643 = vunpack.c.l.b16 %v1032
      %v1644 = vunpack.c.l.b16 %v1033
      %v1645 = vunpack.c.l.b16 %v1034
      %v1646 = vunpack.c.l.b16 %v1035
      %v1647 = vunpack.c.l.b16 %v1036
      %v1648 = vunpack.c.l.b16 %v1037
      %v1649 = vunpack.c.l.b16 %v1038
      %v1650 = vunpack.c.l.b16 %v1039
      %v1651 = vunpack.c.l.b16 %v1040
      %v1652 = vunpack.c.l.b16 %v1041
      %v1653 = vunpack.c.l.b16 %v1042
      %v1654 = vunpack.c.l.b16 %v1043
      %v1655 = vunpack.c.l.b16 %v1044
      %v1656 = vunpack.c.l.b16 %v1045
      %v1657 = vunpack.c.l.b16 %v1046
      %v1658 = vunpack.c.l.b16 %v1047
      %v1659 = vunpack.c.l.b16 %v1048
      %v1660 = vunpack.c.l.b16 %v1049
      %v1661 = vunpack.c.l.b16 %v1050
      %v1662 = vunpack.c.l.b16 %v1051
      %v1663 = vunpack.c.l.b16 %v1052
      %v1664 = vunpack.c.l.b16 %v1053
      %v1665 = vunpack.c.l.b16 %v1054
      %v1666 = vunpack.c.l.b16 %v1055
      %v1667 = vunpack.c.l.b16 %v1056
      %v1668 = vunpack.c.l.b16 %v1057
      %v1669 = vunpack.c.l.b16 %v1058
      %v1670 = vunpack.c.l.b16 %v1059
      %v1671 = vunpack.c.l.b16 %v1060
      %v1672 = vunpack.c.l.b16 %v1061
      %v1673 = vunpack.c.l.b16 %v1062
      %v1674 = vunpack.c.l.b16 %v1063
      %v1675 = vunpack.c.l.b16 %v1064
      %v1676 = vunpack.c.l.b16 %v1065
      %v1677 = vunpack.c.l.b16 %v1066
      %v1678 = vunpack.c.l.b16 %v1067
      %v1679 = vunpack.c.l.b16 %v1068
      %v1680 = vunpack.c.l.b16 %v1069
      %v1681 = vunpack.c.l.b16 %v1070
      %v1682 = vunpack.c.l.b16 %v1071
      %v1683 = vunpack.c.l.b16 %v1072
      %v1684 = vunpack.c.l.b16 %v1073
      %v1685 = vunpack.c.l.b16 %v1074
      %v1686 = vunpack.c.l.b16 %v1075
      %v1687 = vunpack.c.l.b16 %v1076
      %v1688 = vpack.c.b16 %v1641, %v1640
      %v1689 = vpack.c.b16 %v1643, %v1642
      %v1690 = vpack.c.b16 %v1645, %v1644
      %v1691 = vpack.c.b16 %v1647, %v1646
      %v1692 = vpack.c.b16 %v1649, %v1648
      %v1693 = vpack.c.b16 %v1651, %v1650
      %v1694 = vpack.c.b16 %v1653, %v1652
      %v1695 = vpack.c.b16 %v1655, %v1654
      %v1696 = vpack.c.b16 %v1657, %v1656
      %v1697 = vpack.c.b16 %v1659, %v1658
      %v1698 = vpack.c.b16 %v1661, %v1660
      %v1699 = vpack.c.b16 %v1663, %v1662
      %v1700 = vpack.c.b16 %v1665, %v1664
      %v1701 = vpack.c.b16 %v1667, %v1666
      %v1702 = vpack.c.b16 %v1669, %v1668
      %v1703 = vpack.c.b16 %v1671, %v1670
      %v1704 = vpack.c.b16 %v1673, %v1672
      %v1705 = vpack.c.b16 %v1675, %v1674
      %v1706 = vpack.c.b16 %v1677, %v1676
      %v1707 = vpack.c.b16 %v1679, %v1678
      %v1708 = vpack.c.b16 %v1681, %v1680
      %v1709 = vpack.c.b16 %v1683, %v1682
      %v1710 = vpack.c.b16 %v1685, %v1684
      %v1711 = vpack.c.b16 %v1687, %v1686
      %1736 = vmatprep.subr.bf16.mxu0 0
      %1737 = vmatpush1.bf16.msra.mxu0 %v1695
      %1738 = vmatprep.subr.bf16.mxu0 0
      %1739 = vmatpush1.bf16.msra.mxu0 %v1694
      %1740 = vmatprep.subr.bf16.mxu0 0
      %1741 = vmatpush1.bf16.msra.mxu0 %v1693
      %1742 = vmatprep.subr.bf16.mxu0 0
      %1743 = vmatpush1.bf16.msra.mxu0 %v1692
      %1744 = vmatprep.subr.bf16.mxu0 0
      %1745 = vmatpush1.bf16.msra.mxu0 %v1691
      %1746 = vmatprep.subr.bf16.mxu0 0
      %1747 = vmatpush1.bf16.msra.mxu0 %v1690
      %1748 = vmatprep.subr.bf16.mxu0 0
      %1749 = vmatpush1.bf16.msra.mxu0 %v1689
      %1750 = vmatprep.subr.bf16.mxu0 0
      %1751 = vmatpush1.bf16.msra.mxu0 %v1688
      %1752 = vmatprep.subr.bf16.mxu0 0
      %1753 = vmatpush2.bf16.msra.mxu0 %v1703
      %1754 = vmatprep.subr.bf16.mxu0 0
      %1755 = vmatpush2.bf16.msra.mxu0 %v1702
      %1756 = vmatprep.subr.bf16.mxu0 0
      %1757 = vmatpush2.bf16.msra.mxu0 %v1701
      %1758 = vmatprep.subr.bf16.mxu0 0
      %1759 = vmatpush2.bf16.msra.mxu0 %v1700
      %1760 = vmatprep.subr.bf16.mxu0 0
      %1761 = vmatpush2.bf16.msra.mxu0 %v1699
      %1762 = vmatprep.subr.bf16.mxu0 0
      %1763 = vmatpush2.bf16.msra.mxu0 %v1698
      %1764 = vmatprep.subr.bf16.mxu0 0
      %1765 = vmatpush2.bf16.msra.mxu0 %v1697
      %1766 = vmatprep.subr.bf16.mxu0 0
      %1767 = vmatpush2.bf16.msra.mxu0 %v1696
      %1768 = vmatprep.mubr.bf16.mxu0 %v976
      %1769 = vmatmul.mubr.bf16.gmra.mxu0 %v975
      %v1770 = vpop.f32.mrf.mxu0
      %v1771 = vadd.f32 %v1466, %v1770
      %v1772 = vpop.f32.mrf.mxu0
      %v1773 = vpop.f32.mrf.mxu0
      %v1774 = vadd.f32 %v1469, %v1773
      %v1775 = vpop.f32.mrf.mxu0
      %1776 = vmatprep.mubr.bf16.mxu0 %v979
      %1777 = vmatmul.mubr.bf16.gmra.mxu0 %v978
      %v1778 = vpop.f32.mrf.mxu0
      %v1779 = vadd.f32 %v1474, %v1778
      %v1780 = vpop.f32.mrf.mxu0
      %v1781 = vpop.f32.mrf.mxu0
      %v1782 = vadd.f32 %v1477, %v1781
      %v1783 = vpop.f32.mrf.mxu0
      %1784 = vmatprep.mubr.bf16.mxu0 %v982
      %1785 = vmatmul.mubr.bf16.gmra.mxu0 %v981
      %v1786 = vpop.f32.mrf.mxu0
      %v1787 = vadd.f32 %v1482, %v1786
      %v1788 = vpop.f32.mrf.mxu0
      %v1789 = vpop.f32.mrf.mxu0
      %v1790 = vadd.f32 %v1485, %v1789
      %v1791 = vpop.f32.mrf.mxu0
      %1792 = vmatprep.mubr.bf16.mxu0 %v985
      %1793 = vmatmul.mubr.bf16.gmra.mxu0 %v984
      %v1794 = vpop.f32.mrf.mxu0
      %v1795 = vadd.f32 %v1490, %v1794
      %v1796 = vpop.f32.mrf.mxu0
      %v1797 = vpop.f32.mrf.mxu0
      %v1798 = vadd.f32 %v1493, %v1797
      %v1799 = vpop.f32.mrf.mxu0
      %1800 = vmatprep.mubr.bf16.mxu0 %v988
      %1801 = vmatmul.mubr.bf16.gmra.mxu0 %v987
      %v1802 = vpop.f32.mrf.mxu0
      %v1803 = vadd.f32 %v1498, %v1802
      %v1804 = vpop.f32.mrf.mxu0
      %v1805 = vpop.f32.mrf.mxu0
      %v1806 = vadd.f32 %v1501, %v1805
      %v1807 = vpop.f32.mrf.mxu0
      %1808 = vmatprep.mubr.bf16.mxu0 %v991
      %1809 = vmatmul.mubr.bf16.gmra.mxu0 %v990
      %v1810 = vpop.f32.mrf.mxu0
      %v1811 = vadd.f32 %v1506, %v1810
      %v1812 = vpop.f32.mrf.mxu0
      %v1813 = vpop.f32.mrf.mxu0
      %v1814 = vadd.f32 %v1509, %v1813
      %v1815 = vpop.f32.mrf.mxu0
      %1816 = vmatprep.mubr.bf16.mxu0 %v994
      %1817 = vmatmul.mubr.bf16.gmra.mxu0 %v993
      %v1818 = vpop.f32.mrf.mxu0
      %v1819 = vadd.f32 %v1514, %v1818
      %v1820 = vpop.f32.mrf.mxu0
      %v1821 = vpop.f32.mrf.mxu0
      %v1822 = vadd.f32 %v1517, %v1821
      %v1823 = vpop.f32.mrf.mxu0
      %1824 = vmatprep.mubr.bf16.mxu0 %v997
      %1825 = vmatmul.mubr.bf16.gmra.mxu0 %v996
      %v1826 = vpop.f32.mrf.mxu0
      %v1827 = vadd.f32 %v1522, %v1826
      %v1828 = vpop.f32.mrf.mxu0
      %v1829 = vpop.f32.mrf.mxu0
      %v1830 = vadd.f32 %v1525, %v1829
      %v1831 = vpop.f32.mrf.mxu0
      %1832 = vmatprep.mubr.bf16.mxu0 %v1000
      %1833 = vmatmul.mubr.bf16.gmra.mxu0 %v999
      %v1834 = vpop.f32.mrf.mxu0
      %v1835 = vadd.f32 %v1530, %v1834
      %v1836 = vpop.f32.mrf.mxu0
      %v1837 = vpop.f32.mrf.mxu0
      %v1838 = vadd.f32 %v1533, %v1837
      %v1839 = vpop.f32.mrf.mxu0
      %1840 = vmatprep.mubr.bf16.mxu0 %v1003
      %1841 = vmatmul.mubr.bf16.gmra.mxu0 %v1002
      %v1842 = vpop.f32.mrf.mxu0
      %v1843 = vadd.f32 %v1538, %v1842
      %v1844 = vpop.f32.mrf.mxu0
      %v1845 = vpop.f32.mrf.mxu0
      %v1846 = vadd.f32 %v1541, %v1845
      %v1847 = vpop.f32.mrf.mxu0
      %1848 = vmatprep.mubr.bf16.mxu0 %v1006
      %1849 = vmatmul.mubr.bf16.gmra.mxu0 %v1005
      %v1850 = vpop.f32.mrf.mxu0
      %v1851 = vadd.f32 %v1546, %v1850
      %v1852 = vpop.f32.mrf.mxu0
      %v1853 = vpop.f32.mrf.mxu0
      %v1854 = vadd.f32 %v1549, %v1853
      %v1855 = vpop.f32.mrf.mxu0
      %1856 = vmatprep.mubr.bf16.mxu0 %v1009
      %1857 = vmatmul.mubr.bf16.gmra.mxu0 %v1008
      %v1858 = vpop.f32.mrf.mxu0
      %v1859 = vadd.f32 %v1554, %v1858
      %v1860 = vpop.f32.mrf.mxu0
      %v1861 = vpop.f32.mrf.mxu0
      %v1862 = vadd.f32 %v1557, %v1861
      %v1863 = vpop.f32.mrf.mxu0
      %1864 = vmatprep.mubr.bf16.mxu0 %v1012
      %1865 = vmatmul.mubr.bf16.gmra.mxu0 %v1011
      %v1866 = vpop.f32.mrf.mxu0
      %v1867 = vadd.f32 %v1562, %v1866
      %v1868 = vpop.f32.mrf.mxu0
      %v1869 = vpop.f32.mrf.mxu0
      %v1870 = vadd.f32 %v1565, %v1869
      %v1871 = vpop.f32.mrf.mxu0
      %1872 = vmatprep.mubr.bf16.mxu0 %v1015
      %1873 = vmatmul.mubr.bf16.gmra.mxu0 %v1014
      %v1874 = vpop.f32.mrf.mxu0
      %v1875 = vadd.f32 %v1570, %v1874
      %v1876 = vpop.f32.mrf.mxu0
      %v1877 = vpop.f32.mrf.mxu0
      %v1878 = vadd.f32 %v1573, %v1877
      %v1879 = vpop.f32.mrf.mxu0
      %1880 = vmatprep.mubr.bf16.mxu0 %v1018
      %1881 = vmatmul.mubr.bf16.gmra.mxu0 %v1017
      %v1882 = vpop.f32.mrf.mxu0
      %v1883 = vadd.f32 %v1578, %v1882
      %v1884 = vpop.f32.mrf.mxu0
      %v1885 = vpop.f32.mrf.mxu0
      %v1886 = vadd.f32 %v1581, %v1885
      %v1887 = vpop.f32.mrf.mxu0
      %1888 = vmatprep.mubr.bf16.mxu0 %v1021
      %1889 = vmatmul.mubr.bf16.gmra.mxu0 %v1020
      %v1890 = vpop.f32.mrf.mxu0
      %v1891 = vadd.f32 %v1586, %v1890
      %v1892 = vpop.f32.mrf.mxu0
      %v1893 = vpop.f32.mrf.mxu0
      %v1894 = vadd.f32 %v1589, %v1893
      %v1895 = vpop.f32.mrf.mxu0
      %1896 = vdwg.mxu0
      %1897 = vmatprep.subr.bf16.mxu0 0
      %1898 = vmatpush1.bf16.msra.mxu0 %v1711
      %1899 = vmatprep.subr.bf16.mxu0 0
      %1900 = vmatpush1.bf16.msra.mxu0 %v1710
      %1901 = vmatprep.subr.bf16.mxu0 0
      %1902 = vmatpush1.bf16.msra.mxu0 %v1709
      %1903 = vmatprep.subr.bf16.mxu0 0
      %1904 = vmatpush1.bf16.msra.mxu0 %v1708
      %1905 = vmatprep.subr.bf16.mxu0 0
      %1906 = vmatpush1.bf16.msra.mxu0 %v1707
      %1907 = vmatprep.subr.bf16.mxu0 0
      %1908 = vmatpush1.bf16.msra.mxu0 %v1706
      %1909 = vmatprep.subr.bf16.mxu0 0
      %1910 = vmatpush1.bf16.msra.mxu0 %v1705
      %1911 = vmatprep.subr.bf16.mxu0 0
      %1912 = vmatpush1.bf16.msra.mxu0 %v1704
      %1913 = vmatprep.subr.bf16.mxu0 0
      %1914 = vmatpush2.bf16.msra.mxu0 0
      %1915 = vmatprep.subr.bf16.mxu0 0
      %1916 = vmatpush2.bf16.msra.mxu0 0
      %1917 = vmatprep.subr.bf16.mxu0 0
      %1918 = vmatpush2.bf16.msra.mxu0 0
      %1919 = vmatprep.subr.bf16.mxu0 0
      %1920 = vmatpush2.bf16.msra.mxu0 0
      %1921 = vmatprep.subr.bf16.mxu0 0
      %1922 = vmatpush2.bf16.msra.mxu0 0
      %1923 = vmatprep.subr.bf16.mxu0 0
      %1924 = vmatpush2.bf16.msra.mxu0 0
      %1925 = vmatprep.subr.bf16.mxu0 0
      %1926 = vmatpush2.bf16.msra.mxu0 0
      %1927 = vmatprep.subr.bf16.mxu0 0
      %1928 = vmatpush2.bf16.msra.mxu0 0
      %1929 = vmatprep.mubr.bf16.mxu0 0
      %1930 = vmatmul.mubr.bf16.gmra.mxu0 %v977
      %v1931 = vpop.f32.mrf.mxu0
      %v1932 = vadd.f32 %v1771, %v1931
      %v1933 = vpop.f32.mrf.mxu0
      %v1934 = vpop.f32.mrf.mxu0
      %v1935 = vadd.f32 %v1774, %v1934
      %v1936 = vpop.f32.mrf.mxu0
      %1937 = vmatprep.mubr.bf16.mxu0 0
      %1938 = vmatmul.mubr.bf16.gmra.mxu0 %v980
      %v1939 = vpop.f32.mrf.mxu0
      %v1940 = vadd.f32 %v1779, %v1939
      %v1941 = vpop.f32.mrf.mxu0
      %v1942 = vpop.f32.mrf.mxu0
      %v1943 = vadd.f32 %v1782, %v1942
      %v1944 = vpop.f32.mrf.mxu0
      %1945 = vmatprep.mubr.bf16.mxu0 0
      %1946 = vmatmul.mubr.bf16.gmra.mxu0 %v983
      %v1947 = vpop.f32.mrf.mxu0
      %v1948 = vadd.f32 %v1787, %v1947
      %v1949 = vpop.f32.mrf.mxu0
      %v1950 = vpop.f32.mrf.mxu0
      %v1951 = vadd.f32 %v1790, %v1950
      %v1952 = vpop.f32.mrf.mxu0
      %1953 = vmatprep.mubr.bf16.mxu0 0
      %1954 = vmatmul.mubr.bf16.gmra.mxu0 %v986
      %v1955 = vpop.f32.mrf.mxu0
      %v1956 = vadd.f32 %v1795, %v1955
      %v1957 = vpop.f32.mrf.mxu0
      %v1958 = vpop.f32.mrf.mxu0
      %v1959 = vadd.f32 %v1798, %v1958
      %v1960 = vpop.f32.mrf.mxu0
      %1961 = vmatprep.mubr.bf16.mxu0 0
      %1962 = vmatmul.mubr.bf16.gmra.mxu0 %v989
      %v1963 = vpop.f32.mrf.mxu0
      %v1964 = vadd.f32 %v1803, %v1963
      %v1965 = vpop.f32.mrf.mxu0
      %v1966 = vpop.f32.mrf.mxu0
      %v1967 = vadd.f32 %v1806, %v1966
      %v1968 = vpop.f32.mrf.mxu0
      %1969 = vmatprep.mubr.bf16.mxu0 0
      %1970 = vmatmul.mubr.bf16.gmra.mxu0 %v992
      %v1971 = vpop.f32.mrf.mxu0
      %v1972 = vadd.f32 %v1811, %v1971
      %v1973 = vpop.f32.mrf.mxu0
      %v1974 = vpop.f32.mrf.mxu0
      %v1975 = vadd.f32 %v1814, %v1974
      %v1976 = vpop.f32.mrf.mxu0
      %1977 = vmatprep.mubr.bf16.mxu0 0
      %1978 = vmatmul.mubr.bf16.gmra.mxu0 %v995
      %v1979 = vpop.f32.mrf.mxu0
      %v1980 = vadd.f32 %v1819, %v1979
      %v1981 = vpop.f32.mrf.mxu0
      %v1982 = vpop.f32.mrf.mxu0
      %v1983 = vadd.f32 %v1822, %v1982
      %v1984 = vpop.f32.mrf.mxu0
      %1985 = vmatprep.mubr.bf16.mxu0 0
      %1986 = vmatmul.mubr.bf16.gmra.mxu0 %v998
      %v1987 = vpop.f32.mrf.mxu0
      %v1988 = vadd.f32 %v1827, %v1987
      %v1989 = vpop.f32.mrf.mxu0
      %v1990 = vpop.f32.mrf.mxu0
      %v1991 = vadd.f32 %v1830, %v1990
      %v1992 = vpop.f32.mrf.mxu0
      %1993 = vmatprep.mubr.bf16.mxu0 0
      %1994 = vmatmul.mubr.bf16.gmra.mxu0 %v1001
      %v1995 = vpop.f32.mrf.mxu0
      %v1996 = vadd.f32 %v1835, %v1995
      %v1997 = vpop.f32.mrf.mxu0
      %v1998 = vpop.f32.mrf.mxu0
      %v1999 = vadd.f32 %v1838, %v1998
      %v2000 = vpop.f32.mrf.mxu0
      %2001 = vmatprep.mubr.bf16.mxu0 0
      %2002 = vmatmul.mubr.bf16.gmra.mxu0 %v1004
      %v2003 = vpop.f32.mrf.mxu0
      %v2004 = vadd.f32 %v1843, %v2003
      %v2005 = vpop.f32.mrf.mxu0
      %v2006 = vpop.f32.mrf.mxu0
      %v2007 = vadd.f32 %v1846, %v2006
      %v2008 = vpop.f32.mrf.mxu0
      %2009 = vmatprep.mubr.bf16.mxu0 0
      %2010 = vmatmul.mubr.bf16.gmra.mxu0 %v1007
      %v2011 = vpop.f32.mrf.mxu0
      %v2012 = vadd.f32 %v1851, %v2011
      %v2013 = vpop.f32.mrf.mxu0
      %v2014 = vpop.f32.mrf.mxu0
      %v2015 = vadd.f32 %v1854, %v2014
      %v2016 = vpop.f32.mrf.mxu0
      %2017 = vmatprep.mubr.bf16.mxu0 0
      %2018 = vmatmul.mubr.bf16.gmra.mxu0 %v1010
      %v2019 = vpop.f32.mrf.mxu0
      %v2020 = vadd.f32 %v1859, %v2019
      %v2021 = vpop.f32.mrf.mxu0
      %v2022 = vpop.f32.mrf.mxu0
      %v2023 = vadd.f32 %v1862, %v2022
      %v2024 = vpop.f32.mrf.mxu0
      %2025 = vmatprep.mubr.bf16.mxu0 0
      %2026 = vmatmul.mubr.bf16.gmra.mxu0 %v1013
      %v2027 = vpop.f32.mrf.mxu0
      %v2028 = vadd.f32 %v1867, %v2027
      %v2029 = vpop.f32.mrf.mxu0
      %v2030 = vpop.f32.mrf.mxu0
      %v2031 = vadd.f32 %v1870, %v2030
      %v2032 = vpop.f32.mrf.mxu0
      %2033 = vmatprep.mubr.bf16.mxu0 0
      %2034 = vmatmul.mubr.bf16.gmra.mxu0 %v1016
      %v2035 = vpop.f32.mrf.mxu0
      %v2036 = vadd.f32 %v1875, %v2035
      %v2037 = vpop.f32.mrf.mxu0
      %v2038 = vpop.f32.mrf.mxu0
      %v2039 = vadd.f32 %v1878, %v2038
      %v2040 = vpop.f32.mrf.mxu0
      %2041 = vmatprep.mubr.bf16.mxu0 0
      %2042 = vmatmul.mubr.bf16.gmra.mxu0 %v1019
      %v2043 = vpop.f32.mrf.mxu0
      %v2044 = vadd.f32 %v1883, %v2043
      %v2045 = vpop.f32.mrf.mxu0
      %v2046 = vpop.f32.mrf.mxu0
      %v2047 = vadd.f32 %v1886, %v2046
      %v2048 = vpop.f32.mrf.mxu0
      %2049 = vmatprep.mubr.bf16.mxu0 0
      %2050 = vmatmul.mubr.bf16.gmra.mxu0 %v1022
      %v2051 = vpop.f32.mrf.mxu0
      %v2052 = vadd.f32 %v1891, %v2051
      %v2053 = vpop.f32.mrf.mxu0
      %v2054 = vpop.f32.mrf.mxu0
      %v2055 = vadd.f32 %v1894, %v2054
      %v2056 = vpop.f32.mrf.mxu0
      %2057 = vdwg.mxu0
      %s2058 = scalar_lea.vmem %s265, 384
      %v2059 = vld [vmem:[%s2058] sm:$0xf]
      %v2060 = vld [vmem:[%s2058 + $0x4] sm:$0xf]
      %v2061 = vld [vmem:[%s2058 + $0x8] sm:$0xf]
      %v2062 = vld [vmem:[%s2058 + $0xc] sm:$0xf]
      %v2063 = vld [vmem:[%s2058 + $0x10] sm:$0xf]
      %v2064 = vld [vmem:[%s2058 + $0x14] sm:$0xf]
      %v2065 = vld [vmem:[%s2058 + $0x18] sm:$0xf]
      %v2066 = vld [vmem:[%s2058 + $0x1c] sm:$0xf]
      %v2067 = vld [vmem:[%s2058 + $0x20] sm:$0xf]
      %v2068 = vld [vmem:[%s2058 + $0x24] sm:$0xf]
      %v2069 = vld [vmem:[%s2058 + $0x28] sm:$0xf]
      %v2070 = vld [vmem:[%s2058 + $0x2c] sm:$0xf]
      %v2071 = vld [vmem:[%s2058 + $0x30] sm:$0xf]
      %v2072 = vld [vmem:[%s2058 + $0x34] sm:$0xf]
      %v2073 = vld [vmem:[%s2058 + $0x38] sm:$0xf]
      %v2074 = vld [vmem:[%s2058 + $0x3c] sm:$0xf]
      %v2075 = vld [vmem:[%s2058 + $0x40] sm:$0xf]
      %v2076 = vld [vmem:[%s2058 + $0x44] sm:$0xf]
      %v2077 = vld [vmem:[%s2058 + $0x48] sm:$0xf]
      %v2078 = vld [vmem:[%s2058 + $0x4c] sm:$0xf]
      %v2079 = vld [vmem:[%s2058 + $0x50] sm:$0xf]
      %v2080 = vld [vmem:[%s2058 + $0x54] sm:$0xf]
      %v2081 = vld [vmem:[%s2058 + $0x58] sm:$0xf]
      %v2082 = vld [vmem:[%s2058 + $0x5c] sm:$0xf]
      %v2083 = vld [vmem:[%s2058 + $0x60] sm:$0xf]
      %v2084 = vld [vmem:[%s2058 + $0x64] sm:$0xf]
      %v2085 = vld [vmem:[%s2058 + $0x68] sm:$0xf]
      %v2086 = vld [vmem:[%s2058 + $0x6c] sm:$0xf]
      %v2087 = vld [vmem:[%s2058 + $0x70] sm:$0xf]
      %v2088 = vld [vmem:[%s2058 + $0x74] sm:$0xf]
      %v2089 = vld [vmem:[%s2058 + $0x78] sm:$0xf]
      %v2090 = vld [vmem:[%s2058 + $0x7c] sm:$0xf]
      %v2091 = vld [vmem:[%s2058 + $0x80] sm:$0xf]
      %v2092 = vld [vmem:[%s2058 + $0x84] sm:$0xf]
      %v2093 = vld [vmem:[%s2058 + $0x88] sm:$0xf]
      %v2094 = vld [vmem:[%s2058 + $0x8c] sm:$0xf]
      %v2095 = vld [vmem:[%s2058 + $0x90] sm:$0xf]
      %v2096 = vld [vmem:[%s2058 + $0x94] sm:$0xf]
      %v2097 = vld [vmem:[%s2058 + $0x98] sm:$0xf]
      %v2098 = vld [vmem:[%s2058 + $0x9c] sm:$0xf]
      %v2099 = vld [vmem:[%s2058 + $0xa0] sm:$0xf]
      %v2100 = vld [vmem:[%s2058 + $0xa4] sm:$0xf]
      %v2101 = vld [vmem:[%s2058 + $0xa8] sm:$0xf]
      %v2102 = vld [vmem:[%s2058 + $0xac] sm:$0xf]
      %v2103 = vld [vmem:[%s2058 + $0xb0] sm:$0xf]
      %v2104 = vld [vmem:[%s2058 + $0xb4] sm:$0xf]
      %v2105 = vld [vmem:[%s2058 + $0xb8] sm:$0xf]
      %v2106 = vld [vmem:[%s2058 + $0xbc] sm:$0xf]
      %v2155 = vunpack.c.l.b16 %v2059
      %v2156 = vunpack.c.l.b16 %v2060
      %v2157 = vunpack.c.l.b16 %v2061
      %v2158 = vunpack.c.l.b16 %v2062
      %v2159 = vunpack.c.l.b16 %v2063
      %v2160 = vunpack.c.l.b16 %v2064
      %v2161 = vunpack.c.l.b16 %v2065
      %v2162 = vunpack.c.l.b16 %v2066
      %v2163 = vunpack.c.l.b16 %v2067
      %v2164 = vunpack.c.l.b16 %v2068
      %v2165 = vunpack.c.l.b16 %v2069
      %v2166 = vunpack.c.l.b16 %v2070
      %v2167 = vunpack.c.l.b16 %v2071
      %v2168 = vunpack.c.l.b16 %v2072
      %v2169 = vunpack.c.l.b16 %v2073
      %v2170 = vunpack.c.l.b16 %v2074
      %v2171 = vunpack.c.l.b16 %v2075
      %v2172 = vunpack.c.l.b16 %v2076
      %v2173 = vunpack.c.l.b16 %v2077
      %v2174 = vunpack.c.l.b16 %v2078
      %v2175 = vunpack.c.l.b16 %v2079
      %v2176 = vunpack.c.l.b16 %v2080
      %v2177 = vunpack.c.l.b16 %v2081
      %v2178 = vunpack.c.l.b16 %v2082
      %v2179 = vunpack.c.l.b16 %v2083
      %v2180 = vunpack.c.l.b16 %v2084
      %v2181 = vunpack.c.l.b16 %v2085
      %v2182 = vunpack.c.l.b16 %v2086
      %v2183 = vunpack.c.l.b16 %v2087
      %v2184 = vunpack.c.l.b16 %v2088
      %v2185 = vunpack.c.l.b16 %v2089
      %v2186 = vunpack.c.l.b16 %v2090
      %v2187 = vunpack.c.l.b16 %v2091
      %v2188 = vunpack.c.l.b16 %v2092
      %v2189 = vunpack.c.l.b16 %v2093
      %v2190 = vunpack.c.l.b16 %v2094
      %v2191 = vunpack.c.l.b16 %v2095
      %v2192 = vunpack.c.l.b16 %v2096
      %v2193 = vunpack.c.l.b16 %v2097
      %v2194 = vunpack.c.l.b16 %v2098
      %v2195 = vunpack.c.l.b16 %v2099
      %v2196 = vunpack.c.l.b16 %v2100
      %v2197 = vunpack.c.l.b16 %v2101
      %v2198 = vunpack.c.l.b16 %v2102
      %v2199 = vunpack.c.l.b16 %v2103
      %v2200 = vunpack.c.l.b16 %v2104
      %v2201 = vunpack.c.l.b16 %v2105
      %v2202 = vunpack.c.l.b16 %v2106
      %v2203 = vpack.c.b16 %v2156, %v2155
      %v2204 = vpack.c.b16 %v2158, %v2157
      %v2205 = vpack.c.b16 %v2160, %v2159
      %v2206 = vpack.c.b16 %v2162, %v2161
      %v2207 = vpack.c.b16 %v2164, %v2163
      %v2208 = vpack.c.b16 %v2166, %v2165
      %v2209 = vpack.c.b16 %v2168, %v2167
      %v2210 = vpack.c.b16 %v2170, %v2169
      %v2211 = vpack.c.b16 %v2172, %v2171
      %v2212 = vpack.c.b16 %v2174, %v2173
      %v2213 = vpack.c.b16 %v2176, %v2175
      %v2214 = vpack.c.b16 %v2178, %v2177
      %v2215 = vpack.c.b16 %v2180, %v2179
      %v2216 = vpack.c.b16 %v2182, %v2181
      %v2217 = vpack.c.b16 %v2184, %v2183
      %v2218 = vpack.c.b16 %v2186, %v2185
      %v2219 = vpack.c.b16 %v2188, %v2187
      %v2220 = vpack.c.b16 %v2190, %v2189
      %v2221 = vpack.c.b16 %v2192, %v2191
      %v2222 = vpack.c.b16 %v2194, %v2193
      %v2223 = vpack.c.b16 %v2196, %v2195
      %v2224 = vpack.c.b16 %v2198, %v2197
      %v2225 = vpack.c.b16 %v2200, %v2199
      %v2226 = vpack.c.b16 %v2202, %v2201
      %2251 = vmatprep.subr.bf16.mxu0 0
      %2252 = vmatpush1.bf16.msra.mxu0 %v2210
      %2253 = vmatprep.subr.bf16.mxu0 0
      %2254 = vmatpush1.bf16.msra.mxu0 %v2209
      %2255 = vmatprep.subr.bf16.mxu0 0
      %2256 = vmatpush1.bf16.msra.mxu0 %v2208
      %2257 = vmatprep.subr.bf16.mxu0 0
      %2258 = vmatpush1.bf16.msra.mxu0 %v2207
      %2259 = vmatprep.subr.bf16.mxu0 0
      %2260 = vmatpush1.bf16.msra.mxu0 %v2206
      %2261 = vmatprep.subr.bf16.mxu0 0
      %2262 = vmatpush1.bf16.msra.mxu0 %v2205
      %2263 = vmatprep.subr.bf16.mxu0 0
      %2264 = vmatpush1.bf16.msra.mxu0 %v2204
      %2265 = vmatprep.subr.bf16.mxu0 0
      %2266 = vmatpush1.bf16.msra.mxu0 %v2203
      %2267 = vmatprep.subr.bf16.mxu0 0
      %2268 = vmatpush2.bf16.msra.mxu0 %v2218
      %2269 = vmatprep.subr.bf16.mxu0 0
      %2270 = vmatpush2.bf16.msra.mxu0 %v2217
      %2271 = vmatprep.subr.bf16.mxu0 0
      %2272 = vmatpush2.bf16.msra.mxu0 %v2216
      %2273 = vmatprep.subr.bf16.mxu0 0
      %2274 = vmatpush2.bf16.msra.mxu0 %v2215
      %2275 = vmatprep.subr.bf16.mxu0 0
      %2276 = vmatpush2.bf16.msra.mxu0 %v2214
      %2277 = vmatprep.subr.bf16.mxu0 0
      %2278 = vmatpush2.bf16.msra.mxu0 %v2213
      %2279 = vmatprep.subr.bf16.mxu0 0
      %2280 = vmatpush2.bf16.msra.mxu0 %v2212
      %2281 = vmatprep.subr.bf16.mxu0 0
      %2282 = vmatpush2.bf16.msra.mxu0 %v2211
      %2283 = vmatprep.mubr.bf16.mxu0 %v982
      %2284 = vmatmul.mubr.bf16.gmra.mxu0 %v981
      %v2285 = vpop.f32.mrf.mxu0
      %v2286 = vadd.f32 0.0, %v2285
      %v2287 = vpop.f32.mrf.mxu0
      %v2288 = vpop.f32.mrf.mxu0
      %v2289 = vadd.f32 0.0, %v2288
      %v2290 = vpop.f32.mrf.mxu0
      %2291 = vmatprep.mubr.bf16.mxu0 %v985
      %2292 = vmatmul.mubr.bf16.gmra.mxu0 %v984
      %v2293 = vpop.f32.mrf.mxu0
      %v2294 = vadd.f32 0.0, %v2293
      %v2295 = vpop.f32.mrf.mxu0
      %v2296 = vpop.f32.mrf.mxu0
      %v2297 = vadd.f32 0.0, %v2296
      %v2298 = vpop.f32.mrf.mxu0
      %2299 = vmatprep.mubr.bf16.mxu0 %v988
      %2300 = vmatmul.mubr.bf16.gmra.mxu0 %v987
      %v2301 = vpop.f32.mrf.mxu0
      %v2302 = vadd.f32 0.0, %v2301
      %v2303 = vpop.f32.mrf.mxu0
      %v2304 = vpop.f32.mrf.mxu0
      %v2305 = vadd.f32 0.0, %v2304
      %v2306 = vpop.f32.mrf.mxu0
      %2307 = vmatprep.mubr.bf16.mxu0 %v991
      %2308 = vmatmul.mubr.bf16.gmra.mxu0 %v990
      %v2309 = vpop.f32.mrf.mxu0
      %v2310 = vadd.f32 0.0, %v2309
      %v2311 = vpop.f32.mrf.mxu0
      %v2312 = vpop.f32.mrf.mxu0
      %v2313 = vadd.f32 0.0, %v2312
      %v2314 = vpop.f32.mrf.mxu0
      %2315 = vmatprep.mubr.bf16.mxu0 %v994
      %2316 = vmatmul.mubr.bf16.gmra.mxu0 %v993
      %v2317 = vpop.f32.mrf.mxu0
      %v2318 = vadd.f32 0.0, %v2317
      %v2319 = vpop.f32.mrf.mxu0
      %v2320 = vpop.f32.mrf.mxu0
      %v2321 = vadd.f32 0.0, %v2320
      %v2322 = vpop.f32.mrf.mxu0
      %2323 = vmatprep.mubr.bf16.mxu0 %v997
      %2324 = vmatmul.mubr.bf16.gmra.mxu0 %v996
      %v2325 = vpop.f32.mrf.mxu0
      %v2326 = vadd.f32 0.0, %v2325
      %v2327 = vpop.f32.mrf.mxu0
      %v2328 = vpop.f32.mrf.mxu0
      %v2329 = vadd.f32 0.0, %v2328
      %v2330 = vpop.f32.mrf.mxu0
      %2331 = vmatprep.mubr.bf16.mxu0 %v1000
      %2332 = vmatmul.mubr.bf16.gmra.mxu0 %v999
      %v2333 = vpop.f32.mrf.mxu0
      %v2334 = vadd.f32 0.0, %v2333
      %v2335 = vpop.f32.mrf.mxu0
      %v2336 = vpop.f32.mrf.mxu0
      %v2337 = vadd.f32 0.0, %v2336
      %v2338 = vpop.f32.mrf.mxu0
      %2339 = vmatprep.mubr.bf16.mxu0 %v1003
      %2340 = vmatmul.mubr.bf16.gmra.mxu0 %v1002
      %v2341 = vpop.f32.mrf.mxu0
      %v2342 = vadd.f32 0.0, %v2341
      %v2343 = vpop.f32.mrf.mxu0
      %v2344 = vpop.f32.mrf.mxu0
      %v2345 = vadd.f32 0.0, %v2344
      %v2346 = vpop.f32.mrf.mxu0
      %2347 = vmatprep.mubr.bf16.mxu0 %v1006
      %2348 = vmatmul.mubr.bf16.gmra.mxu0 %v1005
      %v2349 = vpop.f32.mrf.mxu0
      %v2350 = vadd.f32 0.0, %v2349
      %v2351 = vpop.f32.mrf.mxu0
      %v2352 = vpop.f32.mrf.mxu0
      %v2353 = vadd.f32 0.0, %v2352
      %v2354 = vpop.f32.mrf.mxu0
      %2355 = vmatprep.mubr.bf16.mxu0 %v1009
      %2356 = vmatmul.mubr.bf16.gmra.mxu0 %v1008
      %v2357 = vpop.f32.mrf.mxu0
      %v2358 = vadd.f32 0.0, %v2357
      %v2359 = vpop.f32.mrf.mxu0
      %v2360 = vpop.f32.mrf.mxu0
      %v2361 = vadd.f32 0.0, %v2360
      %v2362 = vpop.f32.mrf.mxu0
      %2363 = vmatprep.mubr.bf16.mxu0 %v1012
      %2364 = vmatmul.mubr.bf16.gmra.mxu0 %v1011
      %v2365 = vpop.f32.mrf.mxu0
      %v2366 = vadd.f32 0.0, %v2365
      %v2367 = vpop.f32.mrf.mxu0
      %v2368 = vpop.f32.mrf.mxu0
      %v2369 = vadd.f32 0.0, %v2368
      %v2370 = vpop.f32.mrf.mxu0
      %2371 = vmatprep.mubr.bf16.mxu0 %v1015
      %2372 = vmatmul.mubr.bf16.gmra.mxu0 %v1014
      %v2373 = vpop.f32.mrf.mxu0
      %v2374 = vadd.f32 0.0, %v2373
      %v2375 = vpop.f32.mrf.mxu0
      %v2376 = vpop.f32.mrf.mxu0
      %v2377 = vadd.f32 0.0, %v2376
      %v2378 = vpop.f32.mrf.mxu0
      %2379 = vmatprep.mubr.bf16.mxu0 %v1018
      %2380 = vmatmul.mubr.bf16.gmra.mxu0 %v1017
      %v2381 = vpop.f32.mrf.mxu0
      %v2382 = vadd.f32 0.0, %v2381
      %v2383 = vpop.f32.mrf.mxu0
      %v2384 = vpop.f32.mrf.mxu0
      %v2385 = vadd.f32 0.0, %v2384
      %v2386 = vpop.f32.mrf.mxu0
      %2387 = vmatprep.mubr.bf16.mxu0 %v1021
      %2388 = vmatmul.mubr.bf16.gmra.mxu0 %v1020
      %v2389 = vpop.f32.mrf.mxu0
      %v2390 = vadd.f32 0.0, %v2389
      %v2391 = vpop.f32.mrf.mxu0
      %v2392 = vpop.f32.mrf.mxu0
      %v2393 = vadd.f32 0.0, %v2392
      %v2394 = vpop.f32.mrf.mxu0
      %2395 = vmatprep.mubr.bf16.mxu0 %v1024
      %2396 = vmatmul.mubr.bf16.gmra.mxu0 %v1023
      %v2397 = vpop.f32.mrf.mxu0
      %v2398 = vadd.f32 0.0, %v2397
      %v2399 = vpop.f32.mrf.mxu0
      %v2400 = vpop.f32.mrf.mxu0
      %v2401 = vadd.f32 0.0, %v2400
      %v2402 = vpop.f32.mrf.mxu0
      %2403 = vmatprep.mubr.bf16.mxu0 %v1027
      %2404 = vmatmul.mubr.bf16.gmra.mxu0 %v1026
      %v2405 = vpop.f32.mrf.mxu0
      %v2406 = vadd.f32 0.0, %v2405
      %v2407 = vpop.f32.mrf.mxu0
      %v2408 = vpop.f32.mrf.mxu0
      %v2409 = vadd.f32 0.0, %v2408
      %v2410 = vpop.f32.mrf.mxu0
      %2411 = vdwg.mxu0
      %2412 = vmatprep.subr.bf16.mxu0 0
      %2413 = vmatpush1.bf16.msra.mxu0 %v2226
      %2414 = vmatprep.subr.bf16.mxu0 0
      %2415 = vmatpush1.bf16.msra.mxu0 %v2225
      %2416 = vmatprep.subr.bf16.mxu0 0
      %2417 = vmatpush1.bf16.msra.mxu0 %v2224
      %2418 = vmatprep.subr.bf16.mxu0 0
      %2419 = vmatpush1.bf16.msra.mxu0 %v2223
      %2420 = vmatprep.subr.bf16.mxu0 0
      %2421 = vmatpush1.bf16.msra.mxu0 %v2222
      %2422 = vmatprep.subr.bf16.mxu0 0
      %2423 = vmatpush1.bf16.msra.mxu0 %v2221
      %2424 = vmatprep.subr.bf16.mxu0 0
      %2425 = vmatpush1.bf16.msra.mxu0 %v2220
      %2426 = vmatprep.subr.bf16.mxu0 0
      %2427 = vmatpush1.bf16.msra.mxu0 %v2219
      %2428 = vmatprep.subr.bf16.mxu0 0
      %2429 = vmatpush2.bf16.msra.mxu0 0
      %2430 = vmatprep.subr.bf16.mxu0 0
      %2431 = vmatpush2.bf16.msra.mxu0 0
      %2432 = vmatprep.subr.bf16.mxu0 0
      %2433 = vmatpush2.bf16.msra.mxu0 0
      %2434 = vmatprep.subr.bf16.mxu0 0
      %2435 = vmatpush2.bf16.msra.mxu0 0
      %2436 = vmatprep.subr.bf16.mxu0 0
      %2437 = vmatpush2.bf16.msra.mxu0 0
      %2438 = vmatprep.subr.bf16.mxu0 0
      %2439 = vmatpush2.bf16.msra.mxu0 0
      %2440 = vmatprep.subr.bf16.mxu0 0
      %2441 = vmatpush2.bf16.msra.mxu0 0
      %2442 = vmatprep.subr.bf16.mxu0 0
      %2443 = vmatpush2.bf16.msra.mxu0 0
      %2444 = vmatprep.mubr.bf16.mxu0 0
      %2445 = vmatmul.mubr.bf16.gmra.mxu0 %v983
      %v2446 = vpop.f32.mrf.mxu0
      %v2447 = vadd.f32 %v2286, %v2446
      %v2448 = vpop.f32.mrf.mxu0
      %v2449 = vpop.f32.mrf.mxu0
      %v2450 = vadd.f32 %v2289, %v2449
      %v2451 = vpop.f32.mrf.mxu0
      %2452 = vmatprep.mubr.bf16.mxu0 0
      %2453 = vmatmul.mubr.bf16.gmra.mxu0 %v986
      %v2454 = vpop.f32.mrf.mxu0
      %v2455 = vadd.f32 %v2294, %v2454
      %v2456 = vpop.f32.mrf.mxu0
      %v2457 = vpop.f32.mrf.mxu0
      %v2458 = vadd.f32 %v2297, %v2457
      %v2459 = vpop.f32.mrf.mxu0
      %2460 = vmatprep.mubr.bf16.mxu0 0
      %2461 = vmatmul.mubr.bf16.gmra.mxu0 %v989
      %v2462 = vpop.f32.mrf.mxu0
      %v2463 = vadd.f32 %v2302, %v2462
      %v2464 = vpop.f32.mrf.mxu0
      %v2465 = vpop.f32.mrf.mxu0
      %v2466 = vadd.f32 %v2305, %v2465
      %v2467 = vpop.f32.mrf.mxu0
      %2468 = vmatprep.mubr.bf16.mxu0 0
      %2469 = vmatmul.mubr.bf16.gmra.mxu0 %v992
      %v2470 = vpop.f32.mrf.mxu0
      %v2471 = vadd.f32 %v2310, %v2470
      %v2472 = vpop.f32.mrf.mxu0
      %v2473 = vpop.f32.mrf.mxu0
      %v2474 = vadd.f32 %v2313, %v2473
      %v2475 = vpop.f32.mrf.mxu0
      %2476 = vmatprep.mubr.bf16.mxu0 0
      %2477 = vmatmul.mubr.bf16.gmra.mxu0 %v995
      %v2478 = vpop.f32.mrf.mxu0
      %v2479 = vadd.f32 %v2318, %v2478
      %v2480 = vpop.f32.mrf.mxu0
      %v2481 = vpop.f32.mrf.mxu0
      %v2482 = vadd.f32 %v2321, %v2481
      %v2483 = vpop.f32.mrf.mxu0
      %2484 = vmatprep.mubr.bf16.mxu0 0
      %2485 = vmatmul.mubr.bf16.gmra.mxu0 %v998
      %v2486 = vpop.f32.mrf.mxu0
      %v2487 = vadd.f32 %v2326, %v2486
      %v2488 = vpop.f32.mrf.mxu0
      %v2489 = vpop.f32.mrf.mxu0
      %v2490 = vadd.f32 %v2329, %v2489
      %v2491 = vpop.f32.mrf.mxu0
      %2492 = vmatprep.mubr.bf16.mxu0 0
      %2493 = vmatmul.mubr.bf16.gmra.mxu0 %v1001
      %v2494 = vpop.f32.mrf.mxu0
      %v2495 = vadd.f32 %v2334, %v2494
      %v2496 = vpop.f32.mrf.mxu0
      %v2497 = vpop.f32.mrf.mxu0
      %v2498 = vadd.f32 %v2337, %v2497
      %v2499 = vpop.f32.mrf.mxu0
      %2500 = vmatprep.mubr.bf16.mxu0 0
      %2501 = vmatmul.mubr.bf16.gmra.mxu0 %v1004
      %v2502 = vpop.f32.mrf.mxu0
      %v2503 = vadd.f32 %v2342, %v2502
      %v2504 = vpop.f32.mrf.mxu0
      %v2505 = vpop.f32.mrf.mxu0
      %v2506 = vadd.f32 %v2345, %v2505
      %v2507 = vpop.f32.mrf.mxu0
      %2508 = vmatprep.mubr.bf16.mxu0 0
      %2509 = vmatmul.mubr.bf16.gmra.mxu0 %v1007
      %v2510 = vpop.f32.mrf.mxu0
      %v2511 = vadd.f32 %v2350, %v2510
      %v2512 = vpop.f32.mrf.mxu0
      %v2513 = vpop.f32.mrf.mxu0
      %v2514 = vadd.f32 %v2353, %v2513
      %v2515 = vpop.f32.mrf.mxu0
      %2516 = vmatprep.mubr.bf16.mxu0 0
      %2517 = vmatmul.mubr.bf16.gmra.mxu0 %v1010
      %v2518 = vpop.f32.mrf.mxu0
      %v2519 = vadd.f32 %v2358, %v2518
      %v2520 = vpop.f32.mrf.mxu0
      %v2521 = vpop.f32.mrf.mxu0
      %v2522 = vadd.f32 %v2361, %v2521
      %v2523 = vpop.f32.mrf.mxu0
      %2524 = vmatprep.mubr.bf16.mxu0 0
      %2525 = vmatmul.mubr.bf16.gmra.mxu0 %v1013
      %v2526 = vpop.f32.mrf.mxu0
      %v2527 = vadd.f32 %v2366, %v2526
      %v2528 = vpop.f32.mrf.mxu0
      %v2529 = vpop.f32.mrf.mxu0
      %v2530 = vadd.f32 %v2369, %v2529
      %v2531 = vpop.f32.mrf.mxu0
      %2532 = vmatprep.mubr.bf16.mxu0 0
      %2533 = vmatmul.mubr.bf16.gmra.mxu0 %v1016
      %v2534 = vpop.f32.mrf.mxu0
      %v2535 = vadd.f32 %v2374, %v2534
      %v2536 = vpop.f32.mrf.mxu0
      %v2537 = vpop.f32.mrf.mxu0
      %v2538 = vadd.f32 %v2377, %v2537
      %v2539 = vpop.f32.mrf.mxu0
      %2540 = vmatprep.mubr.bf16.mxu0 0
      %2541 = vmatmul.mubr.bf16.gmra.mxu0 %v1019
      %v2542 = vpop.f32.mrf.mxu0
      %v2543 = vadd.f32 %v2382, %v2542
      %v2544 = vpop.f32.mrf.mxu0
      %v2545 = vpop.f32.mrf.mxu0
      %v2546 = vadd.f32 %v2385, %v2545
      %v2547 = vpop.f32.mrf.mxu0
      %2548 = vmatprep.mubr.bf16.mxu0 0
      %2549 = vmatmul.mubr.bf16.gmra.mxu0 %v1022
      %v2550 = vpop.f32.mrf.mxu0
      %v2551 = vadd.f32 %v2390, %v2550
      %v2552 = vpop.f32.mrf.mxu0
      %v2553 = vpop.f32.mrf.mxu0
      %v2554 = vadd.f32 %v2393, %v2553
      %v2555 = vpop.f32.mrf.mxu0
      %2556 = vmatprep.mubr.bf16.mxu0 0
      %2557 = vmatmul.mubr.bf16.gmra.mxu0 %v1025
      %v2558 = vpop.f32.mrf.mxu0
      %v2559 = vadd.f32 %v2398, %v2558
      %v2560 = vpop.f32.mrf.mxu0
      %v2561 = vpop.f32.mrf.mxu0
      %v2562 = vadd.f32 %v2401, %v2561
      %v2563 = vpop.f32.mrf.mxu0
      %2564 = vmatprep.mubr.bf16.mxu0 0
      %2565 = vmatmul.mubr.bf16.gmra.mxu0 %v1028
      %v2566 = vpop.f32.mrf.mxu0
      %v2567 = vadd.f32 %v2406, %v2566
      %v2568 = vpop.f32.mrf.mxu0
      %v2569 = vpop.f32.mrf.mxu0
      %v2570 = vadd.f32 %v2409, %v2569
      %v2571 = vpop.f32.mrf.mxu0
      %2572 = vdwg.mxu0
      %v2573 = vadd.f32 %v1932, %v2447
      %v2574 = vadd.f32 %v1935, %v2450
      %v2575 = vadd.f32 %v1940, %v2455
      %v2576 = vadd.f32 %v1943, %v2458
      %v2577 = vadd.f32 %v1948, %v2463
      %v2578 = vadd.f32 %v1951, %v2466
      %v2579 = vadd.f32 %v1956, %v2471
      %v2580 = vadd.f32 %v1959, %v2474
      %v2581 = vadd.f32 %v1964, %v2479
      %v2582 = vadd.f32 %v1967, %v2482
      %v2583 = vadd.f32 %v1972, %v2487
      %v2584 = vadd.f32 %v1975, %v2490
      %v2585 = vadd.f32 %v1980, %v2495
      %v2586 = vadd.f32 %v1983, %v2498
      %v2587 = vadd.f32 %v1988, %v2503
      %v2588 = vadd.f32 %v1991, %v2506
      %v2589 = vadd.f32 %v1996, %v2511
      %v2590 = vadd.f32 %v1999, %v2514
      %v2591 = vadd.f32 %v2004, %v2519
      %v2592 = vadd.f32 %v2007, %v2522
      %v2593 = vadd.f32 %v2012, %v2527
      %v2594 = vadd.f32 %v2015, %v2530
      %v2595 = vadd.f32 %v2020, %v2535
      %v2596 = vadd.f32 %v2023, %v2538
      %v2597 = vadd.f32 %v2028, %v2543
      %v2598 = vadd.f32 %v2031, %v2546
      %v2599 = vadd.f32 %v2036, %v2551
      %v2600 = vadd.f32 %v2039, %v2554
      %v2601 = vadd.f32 %v2044, %v2559
      %v2602 = vadd.f32 %v2047, %v2562
      %v2603 = vadd.f32 %v2052, %v2567
      %v2604 = vadd.f32 %v2055, %v2570
      %v2605 = vpack.c.bf16 %v2574, %v2573
      %v2606 = vpack.c.bf16 %v2576, %v2575
      %v2607 = vpack.c.bf16 %v2578, %v2577
      %v2608 = vpack.c.bf16 %v2580, %v2579
      %v2609 = vpack.c.bf16 %v2582, %v2581
      %v2610 = vpack.c.bf16 %v2584, %v2583
      %v2611 = vpack.c.bf16 %v2586, %v2585
      %v2612 = vpack.c.bf16 %v2588, %v2587
      %v2613 = vpack.c.bf16 %v2590, %v2589
      %v2614 = vpack.c.bf16 %v2592, %v2591
      %v2615 = vpack.c.bf16 %v2594, %v2593
      %v2616 = vpack.c.bf16 %v2596, %v2595
      %v2617 = vpack.c.bf16 %v2598, %v2597
      %v2618 = vpack.c.bf16 %v2600, %v2599
      %v2619 = vpack.c.bf16 %v2602, %v2601
      %v2620 = vpack.c.bf16 %v2604, %v2603
      %v2637 = vunpack.c.l.b16 %v2605
      %v2638 = vunpack.c.h.b16 %v2605
      %v2639 = vunpack.c.l.b16 %v2606
      %v2640 = vunpack.c.h.b16 %v2606
      %v2641 = vunpack.c.l.b16 %v2607
      %v2642 = vunpack.c.h.b16 %v2607
      %v2643 = vunpack.c.l.b16 %v2608
      %v2644 = vunpack.c.h.b16 %v2608
      %v2645 = vunpack.c.l.b16 %v2609
      %v2646 = vunpack.c.h.b16 %v2609
      %v2647 = vunpack.c.l.b16 %v2610
      %v2648 = vunpack.c.h.b16 %v2610
      %v2649 = vunpack.c.l.b16 %v2611
      %v2650 = vunpack.c.h.b16 %v2611
      %v2651 = vunpack.c.l.b16 %v2612
      %v2652 = vunpack.c.h.b16 %v2612
      %v2653 = vunpack.c.l.b16 %v2613
      %v2654 = vunpack.c.h.b16 %v2613
      %v2655 = vunpack.c.l.b16 %v2614
      %v2656 = vunpack.c.h.b16 %v2614
      %v2657 = vunpack.c.l.b16 %v2615
      %v2658 = vunpack.c.h.b16 %v2615
      %v2659 = vunpack.c.l.b16 %v2616
      %v2660 = vunpack.c.h.b16 %v2616
      %v2661 = vunpack.c.l.b16 %v2617
      %v2662 = vunpack.c.h.b16 %v2617
      %v2663 = vunpack.c.l.b16 %v2618
      %v2664 = vunpack.c.h.b16 %v2618
      %v2665 = vunpack.c.l.b16 %v2619
      %v2666 = vunpack.c.h.b16 %v2619
      %v2667 = vunpack.c.l.b16 %v2620
      %v2668 = vunpack.c.h.b16 %v2620
      %v2669 = vpack.c.b16 %v2637, %v2637
      %v2670 = vpack.c.b16 %v2638, %v2638
      %v2671 = vpack.c.b16 %v2639, %v2639
      %v2672 = vpack.c.b16 %v2640, %v2640
      %v2673 = vpack.c.b16 %v2641, %v2641
      %v2674 = vpack.c.b16 %v2642, %v2642
      %v2675 = vpack.c.b16 %v2643, %v2643
      %v2676 = vpack.c.b16 %v2644, %v2644
      %v2677 = vpack.c.b16 %v2645, %v2645
      %v2678 = vpack.c.b16 %v2646, %v2646
      %v2679 = vpack.c.b16 %v2647, %v2647
      %v2680 = vpack.c.b16 %v2648, %v2648
      %v2681 = vpack.c.b16 %v2649, %v2649
      %v2682 = vpack.c.b16 %v2650, %v2650
      %v2683 = vpack.c.b16 %v2651, %v2651
      %v2684 = vpack.c.b16 %v2652, %v2652
      %v2685 = vpack.c.b16 %v2653, %v2653
      %v2686 = vpack.c.b16 %v2654, %v2654
      %v2687 = vpack.c.b16 %v2655, %v2655
      %v2688 = vpack.c.b16 %v2656, %v2656
      %v2689 = vpack.c.b16 %v2657, %v2657
      %v2690 = vpack.c.b16 %v2658, %v2658
      %v2691 = vpack.c.b16 %v2659, %v2659
      %v2692 = vpack.c.b16 %v2660, %v2660
      %v2693 = vpack.c.b16 %v2661, %v2661
      %v2694 = vpack.c.b16 %v2662, %v2662
      %v2695 = vpack.c.b16 %v2663, %v2663
      %v2696 = vpack.c.b16 %v2664, %v2664
      %v2697 = vpack.c.b16 %v2665, %v2665
      %v2698 = vpack.c.b16 %v2666, %v2666
      %v2699 = vpack.c.b16 %v2667, %v2667
      %v2700 = vpack.c.b16 %v2668, %v2668
      %2733 = vst [vmem:[%s273] sm:$0xf] %v2669
      %2734 = vst [vmem:[%s273 + $0x4] sm:$0xf] %v2670
      %2735 = vst [vmem:[%s273 + $0x8] sm:$0xf] %v2671
      %2736 = vst [vmem:[%s273 + $0xc] sm:$0xf] %v2672
      %2737 = vst [vmem:[%s273 + $0x10] sm:$0xf] %v2673
      %2738 = vst [vmem:[%s273 + $0x14] sm:$0xf] %v2674
      %2739 = vst [vmem:[%s273 + $0x18] sm:$0xf] %v2675
      %2740 = vst [vmem:[%s273 + $0x1c] sm:$0xf] %v2676
      %2741 = vst [vmem:[%s273 + $0x20] sm:$0xf] %v2677
      %2742 = vst [vmem:[%s273 + $0x24] sm:$0xf] %v2678
      %2743 = vst [vmem:[%s273 + $0x28] sm:$0xf] %v2679
      %2744 = vst [vmem:[%s273 + $0x2c] sm:$0xf] %v2680
      %2745 = vst [vmem:[%s273 + $0x30] sm:$0xf] %v2681
      %2746 = vst [vmem:[%s273 + $0x34] sm:$0xf] %v2682
      %2747 = vst [vmem:[%s273 + $0x38] sm:$0xf] %v2683
      %2748 = vst [vmem:[%s273 + $0x3c] sm:$0xf] %v2684
      %2749 = vst [vmem:[%s273 + $0x40] sm:$0xf] %v2685
      %2750 = vst [vmem:[%s273 + $0x44] sm:$0xf] %v2686
      %2751 = vst [vmem:[%s273 + $0x48] sm:$0xf] %v2687
      %2752 = vst [vmem:[%s273 + $0x4c] sm:$0xf] %v2688
      %2753 = vst [vmem:[%s273 + $0x50] sm:$0xf] %v2689
      %2754 = vst [vmem:[%s273 + $0x54] sm:$0xf] %v2690
      %2755 = vst [vmem:[%s273 + $0x58] sm:$0xf] %v2691
      %2756 = vst [vmem:[%s273 + $0x5c] sm:$0xf] %v2692
      %2757 = vst [vmem:[%s273 + $0x60] sm:$0xf] %v2693
      %2758 = vst [vmem:[%s273 + $0x64] sm:$0xf] %v2694
      %2759 = vst [vmem:[%s273 + $0x68] sm:$0xf] %v2695
      %2760 = vst [vmem:[%s273 + $0x6c] sm:$0xf] %v2696
      %2761 = vst [vmem:[%s273 + $0x70] sm:$0xf] %v2697
      %2762 = vst [vmem:[%s273 + $0x74] sm:$0xf] %v2698
      %2763 = vst [vmem:[%s273 + $0x78] sm:$0xf] %v2699
      %2764 = vst [vmem:[%s273 + $0x7c] sm:$0xf] %v2700
      %v2765 = vadd.f32 %v2573, %v2574
      %v2766 = vadd.f32 %v2765, %v2575
      %v2767 = vadd.f32 %v2766, %v2576
      %v2768 = vadd.f32 %v2767, %v2577
      %v2769 = vadd.f32 %v2768, %v2578
      %v2770 = vadd.f32 %v2769, %v2579
      %v2771 = vadd.f32 %v2770, %v2580
      %v2772 = vadd.f32 %v2771, %v2581
      %v2773 = vadd.f32 %v2772, %v2582
      %v2774 = vadd.f32 %v2773, %v2583
      %v2775 = vadd.f32 %v2774, %v2584
      %v2776 = vadd.f32 %v2775, %v2585
      %v2777 = vadd.f32 %v2776, %v2586
      %v2778 = vadd.f32 %v2777, %v2587
      %v2779 = vadd.f32 %v2778, %v2588
      %v2780 = vadd.f32 %v2779, %v2589
      %v2781 = vadd.f32 %v2780, %v2590
      %v2782 = vadd.f32 %v2781, %v2591
      %v2783 = vadd.f32 %v2782, %v2592
      %v2784 = vadd.f32 %v2783, %v2593
      %v2785 = vadd.f32 %v2784, %v2594
      %v2786 = vadd.f32 %v2785, %v2595
      %v2787 = vadd.f32 %v2786, %v2596
      %v2788 = vadd.f32 %v2787, %v2597
      %v2789 = vadd.f32 %v2788, %v2598
      %v2790 = vadd.f32 %v2789, %v2599
      %v2791 = vadd.f32 %v2790, %v2600
      %v2792 = vadd.f32 %v2791, %v2601
      %v2793 = vadd.f32 %v2792, %v2602
      %v2794 = vadd.f32 %v2793, %v2603
      %v2795 = vadd.f32 %v2794, %v2604
      %v2796 = vrot.slane %v2795, 4
      %v2797 = vadd.f32 %v2795, %v2796
      %v2798 = vrot.slane %v2797, 2
      %v2799 = vadd.f32 %v2797, %v2798
      %v2800 = vrot.slane %v2799, 1
      %v2801 = vadd.f32 %v2799, %v2800
      %v2802 = vmul.f32 %v2573, %v2573
      %v2803 = vmul.f32 %v2574, %v2574
      %v2804 = vmul.f32 %v2575, %v2575
      %v2805 = vmul.f32 %v2576, %v2576
      %v2806 = vmul.f32 %v2577, %v2577
      %v2807 = vmul.f32 %v2578, %v2578
      %v2808 = vmul.f32 %v2579, %v2579
      %v2809 = vmul.f32 %v2580, %v2580
      %v2810 = vmul.f32 %v2581, %v2581
      %v2811 = vmul.f32 %v2582, %v2582
      %v2812 = vmul.f32 %v2583, %v2583
      %v2813 = vmul.f32 %v2584, %v2584
      %v2814 = vmul.f32 %v2585, %v2585
      %v2815 = vmul.f32 %v2586, %v2586
      %v2816 = vmul.f32 %v2587, %v2587
      %v2817 = vmul.f32 %v2588, %v2588
      %v2818 = vmul.f32 %v2589, %v2589
      %v2819 = vmul.f32 %v2590, %v2590
      %v2820 = vmul.f32 %v2591, %v2591
      %v2821 = vmul.f32 %v2592, %v2592
      %v2822 = vmul.f32 %v2593, %v2593
      %v2823 = vmul.f32 %v2594, %v2594
      %v2824 = vmul.f32 %v2595, %v2595
      %v2825 = vmul.f32 %v2596, %v2596
      %v2826 = vmul.f32 %v2597, %v2597
      %v2827 = vmul.f32 %v2598, %v2598
      %v2828 = vmul.f32 %v2599, %v2599
      %v2829 = vmul.f32 %v2600, %v2600
      %v2830 = vmul.f32 %v2601, %v2601
      %v2831 = vmul.f32 %v2602, %v2602
      %v2832 = vmul.f32 %v2603, %v2603
      %v2833 = vmul.f32 %v2604, %v2604
      %v2834 = vadd.f32 %v2802, %v2803
      %v2835 = vadd.f32 %v2834, %v2804
      %v2836 = vadd.f32 %v2835, %v2805
      %v2837 = vadd.f32 %v2836, %v2806
      %v2838 = vadd.f32 %v2837, %v2807
      %v2839 = vadd.f32 %v2838, %v2808
      %v2840 = vadd.f32 %v2839, %v2809
      %v2841 = vadd.f32 %v2840, %v2810
      %v2842 = vadd.f32 %v2841, %v2811
      %v2843 = vadd.f32 %v2842, %v2812
      %v2844 = vadd.f32 %v2843, %v2813
      %v2845 = vadd.f32 %v2844, %v2814
      %v2846 = vadd.f32 %v2845, %v2815
      %v2847 = vadd.f32 %v2846, %v2816
      %v2848 = vadd.f32 %v2847, %v2817
      %v2849 = vadd.f32 %v2848, %v2818
      %v2850 = vadd.f32 %v2849, %v2819
      %v2851 = vadd.f32 %v2850, %v2820
      %v2852 = vadd.f32 %v2851, %v2821
      %v2853 = vadd.f32 %v2852, %v2822
      %v2854 = vadd.f32 %v2853, %v2823
      %v2855 = vadd.f32 %v2854, %v2824
      %v2856 = vadd.f32 %v2855, %v2825
      %v2857 = vadd.f32 %v2856, %v2826
      %v2858 = vadd.f32 %v2857, %v2827
      %v2859 = vadd.f32 %v2858, %v2828
      %v2860 = vadd.f32 %v2859, %v2829
      %v2861 = vadd.f32 %v2860, %v2830
      %v2862 = vadd.f32 %v2861, %v2831
      %v2863 = vadd.f32 %v2862, %v2832
      %v2864 = vadd.f32 %v2863, %v2833
      %v2865 = vrot.slane %v2864, 4
      %v2866 = vadd.f32 %v2864, %v2865
      %v2867 = vrot.slane %v2866, 2
      %v2868 = vadd.f32 %v2866, %v2867
      %v2869 = vrot.slane %v2868, 1
      %v2870 = vadd.f32 %v2868, %v2869
      %vm2871 = vcmp.eq.s32.totalorder %v825, 1
      %v2872 = vsel %vm2871, %v2870, 0.0
      %v2873 = vsel %vm830, %v2801, %v2872
      %2874 = vst [vmem:[%s280] sm:$0xff] %v2873
      %p2875 = scmp.lt.s32.totalorder %s21, 1
      %s2876 = scalar_select %p2875, %s21, 1
      %p2877 = scmp.lt.s32.totalorder %s22, 0
      %s2878 = scalar_select %p2877, %s22, 0
      %s2879 = smul.addr %s2876, 32
      %s2880 = sadd.s32 %s2878, %s2879
      %s2881 = smul.addr %s2880, 4
      %s2882 = scalar_lea.vmem %s4, %s2881
      %p2883 = scmp.lt.s32.totalorder %s21, 1
      %s2884 = scalar_select %p2883, %s21, 1
      %p2885 = scmp.lt.s32.totalorder %s22, 0
      %s2886 = scalar_select %p2885, %s22, 0
      %s2887 = sadd.s32 %s2886, %s2884
      %s2888 = smul.addr %s2887, 8
      %s2889 = scalar_lea.vmem %s5, %s2888
      // Predicated region
      $region37: #{residual_module_forward.6} parent=35 // pred_check
        %p2890 = pneg %p143
      $region38: #{residual_module_forward.6} parent=35 // pred_check_branch
        %2892 = sbr.rel (%p2890) target = $region40
      $region39: #{residual_module_forward.6} parent=35 // pred_region
        _
      $region40: #{residual_module_forward.6} parent=35 // pred_fallthru
        _
      // Predicated region
      $region41: #{residual_module_forward.6} parent=35 // pred_check
        %p2893 = pneg %p171
      $region42: #{residual_module_forward.6} parent=35 // pred_check_branch
        %2895 = sbr.rel (%p2893) target = $region44
      $region43: #{residual_module_forward.6} parent=35 // pred_region
        _
      $region44: #{residual_module_forward.6} parent=35 // pred_fallthru
        _
    $region36: #{residual_module_forward.6} parent=5 // pred_fallthru
      _
    %p2896 = scmp.le.s32.totalorder 2, %s12
    // Predicated region
    $region45: #{residual_module_forward.6} parent=5 // pred_check
      %p2897 = pneg %p2896
    $region46: #{residual_module_forward.6} parent=5 // pred_check_branch
      %2899 = sbr.rel (%p2897) target = $region48
    $region47: #{residual_module_forward.6} parent=5 // pred_region
      %s2900 = ssub.s32 %s12, 2
      // Predicated region
      $region49: #{residual_module_forward.6} parent=47 // pred_check
        %p2901 = pneg %p149
      $region50: #{residual_module_forward.6} parent=47 // pred_check_branch
        %2903 = sbr.rel (%p2901) target = $region52
      $region51: #{residual_module_forward.6} parent=47 // pred_region
        %p2904 = scmp.lt.s32.totalorder %s23, 1
        %s2905 = scalar_select %p2904, %s23, 1
        %p2906 = scmp.lt.s32.totalorder %s24, 0
        %s2907 = scalar_select %p2906, %s24, 0
        %s2908 = smul.addr %s2905, 32
        %s2909 = sadd.s32 %s2907, %s2908
        %s2910 = smul.addr %s2909, 4
        %s2911 = scalar_lea.vmem %s4, %s2910
      $region52: #{residual_module_forward.6} parent=47 // pred_fallthru
        _
      // Predicated region
      $region53: #{residual_module_forward.6} parent=47 // pred_check
        %p2912 = pneg %p177
      $region54: #{residual_module_forward.6} parent=47 // pred_check_branch
        %2914 = sbr.rel (%p2912) target = $region56
      $region55: #{residual_module_forward.6} parent=47 // pred_region
        %p2915 = scmp.lt.s32.totalorder %s23, 1
        %s2916 = scalar_select %p2915, %s23, 1
        %p2917 = scmp.lt.s32.totalorder %s24, 0
        %s2918 = scalar_select %p2917, %s24, 0
        %s2919 = sadd.s32 %s2918, %s2916
        %s2920 = smul.addr %s2919, 8
        %s2921 = scalar_lea.vmem %s5, %s2920
      $region56: #{residual_module_forward.6} parent=47 // pred_fallthru
        _
    $region48: #{residual_module_forward.6} parent=5 // pred_fallthru
      _
  $region6: #{residual_module_forward.6} parent=0 // loop_footer
    %s16 = sadd.s32 1, %s12
  $region7: #{residual_module_forward.6} parent=0 // loop_footer_branch
    %11 = sbr.rel target = $region3
  $region8: #{residual_module_forward.6} parent=0 // loop_exit
    _

</llo_original>
